<compile_context>
chip_gen: v7x
topology: tpu7x:2x2x1
jax: 0.10.0
libtpu: 0.0.40
codegen_flags: <defaults>
</compile_context>

<pallas_src>
import functools

import jax
import jax.numpy as jnp
from jax.experimental import pallas as pl
from jax.experimental.pallas import tpu as pltpu

# Small shapes consistent with LSTMModel(input_size, hidden_size, num_layers,
# output_size, bidirectional=True).
INPUT_SIZE = 16
HIDDEN_SIZE = 32          # power of two (lane-mask trick relies on it)
NUM_LAYERS = 3
OUTPUT_SIZE = 5
BATCH = 2
SEQ_LEN = 8

# Packed gate-block order (indices into PyTorch's [i, f, g, o]):
# [ i | f | o | g ]  ->  sigmoid(first 6H lanes), tanh(last 2H lanes).
GATE_ORDER = (0, 1, 3, 2)

_VMEM = pl.BlockSpec(memory_space=pltpu.MemorySpace.VMEM)


# ------------------------------ fused kernel --------------------------------
def _fused_lstm_mlp_kernel(x_ref, len_ref, *refs, seq_len, batch, hidden,
                           num_layers):
    """Entire LSTMModel forward in one kernel.

    Packed weight column layout is gate-major [i|f|o|g], direction-interleaved
    within each gate block:  [ g_fwd (H) | g_bwd (H) ]  -> per-gate slices of
    the (B, 8H) gate register are contiguous 2H-lane blocks that line up with
    the stacked state layout h = [h_fwd | h_bwd].

    x_ref:   (T*B, D_in)  time-major flattened inputs (row t*B+b = x[b, t])
    len_ref: (B, 1) int32 valid lengths
    per layer: wih (D_in, 8H) bf16, whh (2H, 8H) bf16 block-diagonal,
               bias (1, 8H) f32
    head:    w1 (2H, H/2), b1 (1, H/2), w2 (H/2, O), b2 (1, O)   (all f32)
    out_ref: (B, O)
    """
    T, B, H = seq_len, batch, hidden
    layer_refs = [refs[3 * l: 3 * l + 3] for l in range(num_layers)]
    (w1_ref, b1_ref, w2_ref, b2_ref, out_ref) = refs[3 * num_layers:]

    lens = len_ref[...]                                        # (B, 1) int32

    # Lane masks selecting "forward direction" lanes (H is a power of two).
    lane_g = jax.lax.broadcasted_iota(jnp.int32, (1, 8 * H), 1)
    is_fwd_gate = (lane_g & H) == 0                            # (1, 8H) bool
    lane_s = jax.lax.broadcasted_iota(jnp.int32, (1, 2 * H), 1)
    is_fwd_state = lane_s < H                                  # (1, 2H) bool

    # Per-step packed-sequence masks, identical across layers -> compute once.
    # fwd lanes process time s, bwd lanes time T-1-s.
    step_masks = []
    for s in range(T):
        t_vec = jnp.where(is_fwd_state, s, T - 1 - s)          # (1, 2H) int32
        step_masks.append(t_vec < lens)                        # (B, 2H) bool

    x_slab = x_ref[...].astype(jnp.bfloat16)                   # (T*B, D_in)

    h = jnp.zeros((B, 2 * H), jnp.float32)
    for l, (wih_ref, whh_ref, b_ref) in enumerate(layer_refs):
        wih = wih_ref[...]                                     # bf16
        whh = whh_ref[...]                                     # bf16 (2H, 8H)
        bias = b_ref[...]                                      # f32 (1, 8H)

        # ---- batched input projection: ONE wide matmul for all timesteps ----
        gx_all = jnp.dot(x_slab, wih,
                         preferred_element_type=jnp.float32) + bias  # (T*B, 8H)

        not_last = (l + 1 < num_layers)
        if not_last:
            seq_f = [None] * T       # next-layer fwd inputs, kept in registers
            seq_b = [None] * T       # next-layer bwd inputs, kept in registers

        h = jnp.zeros((B, 2 * H), jnp.float32)
        c = jnp.zeros((B, 2 * H), jnp.float32)
        for s in range(T):          # fully unrolled: T small and static
            # Direction-selected gate input produced at consumption time:
            # fwd lanes take time s, bwd lanes take time T-1-s.
            gf = gx_all[s * B:(s + 1) * B, :]
            gb = gx_all[(T - 1 - s) * B:(T - s) * B, :]
            gx = jnp.where(is_fwd_gate, gf, gb)                # (B, 8H)
            # Single 256-lane MXU matmul (bf16 operands, f32 accumulation)
            # produces both directions' gates from the stacked hidden state.
            gates = gx + jnp.dot(h.astype(jnp.bfloat16), whh,
                                 preferred_element_type=jnp.float32)
            sg = jax.nn.sigmoid(gates[:, 0:6 * H])             # i | f | o
            g_g = jnp.tanh(gates[:, 6 * H:8 * H])              # g only
            i_g = sg[:, 0:2 * H]
            f_g = sg[:, 2 * H:4 * H]
            o_g = sg[:, 4 * H:6 * H]
            c_new = f_g * c + i_g * g_g
            h_new = o_g * jnp.tanh(c_new)
            m = step_masks[s]
            c = jnp.where(m, c_new, c)
            h = jnp.where(m, h_new, h)
            if not_last:                       # next-layer input, in registers
                seq_f[s] = h[:, 0:H]           # fwd output at time s
                seq_b[T - 1 - s] = h[:, H:2 * H]   # bwd output at time T-1-s

        if not_last:
            # (T*B, 2H) slab: row block t = [fwd_out[t] | bwd_out[t]]
            x_slab = jnp.concatenate(
                [jnp.concatenate(seq_f, axis=0),
                 jnp.concatenate(seq_b, axis=0)], axis=1).astype(jnp.bfloat16)

    # classifier head (f32, one-shot) on the final [fwd | bwd] hidden state
    z = jnp.dot(h, w1_ref[...], preferred_element_type=jnp.float32) + b1_ref[...]
    z = jnp.maximum(z, 0.0)
    out_ref[...] = (jnp.dot(z, w2_ref[...],
                            preferred_element_type=jnp.float32) + b2_ref[...])


# ----------------------------- weight packing --------------------------------
def _interleave_gate_cols(wt_f, wt_b, H):
    """(K, 4H) fwd/bwd (PyTorch gate order i,f,g,o) -> (K, 8H) packed
    [i_f i_b | f_f f_b | o_f o_b | g_f g_b]."""
    cols = []
    for g in GATE_ORDER:
        cols.append(wt_f[:, g * H:(g + 1) * H])
        cols.append(wt_b[:, g * H:(g + 1) * H])
    return jnp.concatenate(cols, axis=1)


def _pack_whh(w_hh_f, w_hh_b, H):
    """Block-diagonal (2H, 8H): fwd h rows feed fwd columns only, same for bwd."""
    wtf = w_hh_f.T                                             # (H, 4H)
    wtb = w_hh_b.T
    whh = jnp.zeros((2 * H, 8 * H), jnp.float32)
    for gp, g in enumerate(GATE_ORDER):
        whh = whh.at[0:H, (2 * gp) * H:(2 * gp + 1) * H].set(
            wtf[:, g * H:(g + 1) * H])
        whh = whh.at[H:2 * H, (2 * gp + 1) * H:(2 * gp + 2) * H].set(
            wtb[:, g * H:(g + 1) * H])
    return whh


def _pack_bias(b_f, b_b, H):
    segs = []
    for g in GATE_ORDER:
        segs.append(b_f[g * H:(g + 1) * H])
        segs.append(b_b[g * H:(g + 1) * H])
    return jnp.concatenate(segs).reshape(1, 8 * H)


def pack_params(params):
    """One-time repacking of PyTorch-layout weights into the kernel layout."""
    H = HIDDEN_SIZE
    layers = []
    for layer in params["lstm"]:
        w_ih_f, w_hh_f, b_ih_f, b_hh_f = layer["fwd"]
        w_ih_b, w_hh_b, b_ih_b, b_hh_b = layer["bwd"]
        # LSTM matmul operands pre-cast to bf16 (f32 accumulation in-kernel).
        wih = _interleave_gate_cols(w_ih_f.T, w_ih_b.T, H).astype(jnp.bfloat16)
        whh = _pack_whh(w_hh_f, w_hh_b, H).astype(jnp.bfloat16)
        b = _pack_bias(b_ih_f + b_hh_f, b_ih_b + b_hh_b, H).astype(jnp.float32)
        layers.append((wih, whh, b))
    w1, b1 = params["fc1"]
    w2, b2 = params["fc2"]
    head = (w1.T.astype(jnp.float32), b1.reshape(1, -1).astype(jnp.float32),
            w2.T.astype(jnp.float32), b2.reshape(1, -1).astype(jnp.float32))
    return layers, head


# ------------------------------ JAX wrapper ----------------------------------
def lstm_model_forward(packed, x, lengths):
    """x: (B, T, input_size) batch-first like PyTorch; lengths: (B,) int."""
    layers, head = packed
    B, T, D = x.shape
    H = HIDDEN_SIZE
    # time-major, flattened to a (T*B, D) slab for the batched projections
    x_flat = jnp.transpose(x, (1, 0, 2)).reshape(T * B, D).astype(jnp.float32)
    lens = lengths.reshape(B, 1).astype(jnp.int32)
    flat_w = [w for layer in layers for w in layer]
    kernel = functools.partial(_fused_lstm_mlp_kernel, seq_len=T, batch=B,
                               hidden=H, num_layers=len(layers))
    n_in = 2 + len(flat_w) + 4
    return pl.pallas_call(
        kernel,
        out_shape=jax.ShapeDtypeStruct((B, head[2].shape[1]), jnp.float32),
        in_specs=[_VMEM] * n_in,
        out_specs=_VMEM,
    )(x_flat, lens, *flat_w, *head)


# ------------------------------ parameters -----------------------------------
def init_params(key):
    k = 1.0 / float(jnp.sqrt(jnp.float32(HIDDEN_SIZE)))
    layers = []
    for l in range(NUM_LAYERS):
        din = INPUT_SIZE if l == 0 else 2 * HIDDEN_SIZE
        d = {}
        for name in ("fwd", "bwd"):
            key, k1, k2, k3, k4 = jax.random.split(key, 5)
            d[name] = (
                jax.random.uniform(k1, (4 * HIDDEN_SIZE, din), jnp.float32, -k, k),
                jax.random.uniform(k2, (4 * HIDDEN_SIZE, HIDDEN_SIZE), jnp.float32, -k, k),
                jax.random.uniform(k3, (4 * HIDDEN_SIZE,), jnp.float32, -k, k),
                jax.random.uniform(k4, (4 * HIDDEN_SIZE,), jnp.float32, -k, k),
            )
        layers.append(d)
    fc1_in, fc1_out = 2 * HIDDEN_SIZE, HIDDEN_SIZE // 2
    key, k1, k2, k3, k4 = jax.random.split(key, 5)
    kf1 = 1.0 / float(jnp.sqrt(jnp.float32(fc1_in)))
    kf2 = 1.0 / float(jnp.sqrt(jnp.float32(fc1_out)))
    fc1 = (jax.random.uniform(k1, (fc1_out, fc1_in), jnp.float32, -kf1, kf1),
           jax.random.uniform(k2, (fc1_out,), jnp.float32, -kf1, kf1))
    fc2 = (jax.random.uniform(k3, (OUTPUT_SIZE, fc1_out), jnp.float32, -kf2, kf2),
           jax.random.uniform(k4, (OUTPUT_SIZE,), jnp.float32, -kf2, kf2))
    return {"lstm": layers, "fc1": fc1, "fc2": fc2}


# ------------------------- pure-JAX reference check --------------------------
def reference_forward(params, x, lengths):
    B, T, _ = x.shape
    H = HIDDEN_SIZE
    inp = x.astype(jnp.float32)
    lasts = None
    for layer in params["lstm"]:
        outs, lasts = [], []
        for name, reverse in (("fwd", False), ("bwd", True)):
            w_ih, w_hh, b_ih, b_hh = layer[name]
            h = jnp.zeros((B, H), jnp.float32)
            c = jnp.zeros((B, H), jnp.float32)
            out = jnp.zeros((B, T, H), jnp.float32)
            ts = range(T - 1, -1, -1) if reverse else range(T)
            for t in ts:
                gates = inp[:, t, :] @ w_ih.T + h @ w_hh.T + b_ih + b_hh
                i_g = jax.nn.sigmoid(gates[:, 0 * H:1 * H])
                f_g = jax.nn.sigmoid(gates[:, 1 * H:2 * H])
                g_g = jnp.tanh(gates[:, 2 * H:3 * H])
                o_g = jax.nn.sigmoid(gates[:, 3 * H:4 * H])
                c_new = f_g * c + i_g * g_g
                h_new = o_g * jnp.tanh(c_new)
                mask = (t < lengths)[:, None]
                h = jnp.where(mask, h_new, h)
                c = jnp.where(mask, c_new, c)
                out = out.at[:, t, :].set(h)
            outs.append(out)
            lasts.append(h)
        inp = jnp.concatenate(outs, axis=-1)
    hidden = jnp.concatenate(lasts, axis=-1)
    w1, b1 = params["fc1"]
    w2, b2 = params["fc2"]
    z = jnp.maximum(hidden @ w1.T + b1, 0.0)
    return z @ w2.T + b2


if __name__ == "__main__":
    key = jax.random.PRNGKey(0)
    pkey, xkey = jax.random.split(key)
    params = init_params(pkey)
    x = jax.random.normal(xkey, (BATCH, SEQ_LEN, INPUT_SIZE), jnp.float32)
    lengths = jnp.array([SEQ_LEN, 5], dtype=jnp.int32)   # variable lengths

    packed = pack_params(params)                         # one-time repack
    forward = jax.jit(lstm_model_forward)
    out = jax.block_until_ready(forward(packed, x, lengths))

    ref = reference_forward(params, x, lengths)
    max_err = float(jnp.max(jnp.abs(out - ref)))
    assert out.shape == (BATCH, OUTPUT_SIZE), out.shape
    # bf16 MXU operands (per perf review) vs. an all-f32 reference: f32
    # accumulation + f32 element-wise math keeps the compounded rounding of
    # 3 layers x 8 steps well below this bound; structural bugs would be >>0.1.
    assert max_err < 2e-2, f"max abs err {max_err}"
    print("KERNEL_OK")
</pallas_src>

<mosaic_0001>
module attributes {stable_mosaic.version = 11 : i64} {
  func.func @_fused_lstm_mlp_kernel(%arg0: memref<16x16xf32, #tpu.memory_space<vmem>>, %arg1: memref<2x1xi32, #tpu.memory_space<vmem>>, %arg2: memref<16x256xbf16, #tpu.memory_space<vmem>>, %arg3: memref<64x256xbf16, #tpu.memory_space<vmem>>, %arg4: memref<1x256xf32, #tpu.memory_space<vmem>>, %arg5: memref<64x256xbf16, #tpu.memory_space<vmem>>, %arg6: memref<64x256xbf16, #tpu.memory_space<vmem>>, %arg7: memref<1x256xf32, #tpu.memory_space<vmem>>, %arg8: memref<64x256xbf16, #tpu.memory_space<vmem>>, %arg9: memref<64x256xbf16, #tpu.memory_space<vmem>>, %arg10: memref<1x256xf32, #tpu.memory_space<vmem>>, %arg11: memref<64x16xf32, #tpu.memory_space<vmem>>, %arg12: memref<1x16xf32, #tpu.memory_space<vmem>>, %arg13: memref<16x5xf32, #tpu.memory_space<vmem>>, %arg14: memref<1x5xf32, #tpu.memory_space<vmem>>, %arg15: memref<2x5xf32, #tpu.memory_space<vmem>>) attributes {dimension_semantics = [], scalar_prefetch = 0 : i64, scratch_operands = 0 : i64, tpu.core_type = #tpu.core_type<tc>} {
    %c0 = arith.constant 0 : index
    %c0_0 = arith.constant 0 : index
    %0 = vector.load %arg1[%c0, %c0_0] : memref<2x1xi32, #tpu.memory_space<vmem>>, vector<2x1xi32>
    %1 = tpu.iota {dimensions = array<i32: 1>} : vector<1x256xi32>
    %c32_i32 = arith.constant 32 : i32
    %2 = vector.broadcast %c32_i32 : i32 to vector<1x256xi32>
    %3 = arith.andi %1, %2 : vector<1x256xi32>
    %c0_i32 = arith.constant 0 : i32
    %4 = vector.broadcast %c0_i32 : i32 to vector<1x256xi32>
    %5 = arith.cmpi eq, %3, %4 : vector<1x256xi32>
    %6 = tpu.iota {dimensions = array<i32: 1>} : vector<1x64xi32>
    %c32_i32_1 = arith.constant 32 : i32
    %7 = vector.broadcast %c32_i32_1 : i32 to vector<1x64xi32>
    %8 = arith.cmpi slt, %6, %7 : vector<1x64xi32>
    %c0_i32_2 = arith.constant 0 : i32
    %c7_i32 = arith.constant 7 : i32
    %9 = vector.broadcast %c0_i32_2 : i32 to vector<1x64xi32>
    %10 = vector.broadcast %c7_i32 : i32 to vector<1x64xi32>
    %11 = arith.select %8, %9, %10 : vector<1x64xi1>, vector<1x64xi32>
    %12 = vector.broadcast %11 : vector<1x64xi32> to vector<2x64xi32>
    %13 = vector.broadcast %0 : vector<2x1xi32> to vector<2x64xi32>
    %14 = arith.cmpi slt, %12, %13 : vector<2x64xi32>
    %c1_i32 = arith.constant 1 : i32
    %c6_i32 = arith.constant 6 : i32
    %15 = vector.broadcast %c1_i32 : i32 to vector<1x64xi32>
    %16 = vector.broadcast %c6_i32 : i32 to vector<1x64xi32>
    %17 = arith.select %8, %15, %16 : vector<1x64xi1>, vector<1x64xi32>
    %18 = vector.broadcast %17 : vector<1x64xi32> to vector<2x64xi32>
    %19 = vector.broadcast %0 : vector<2x1xi32> to vector<2x64xi32>
    %20 = arith.cmpi slt, %18, %19 : vector<2x64xi32>
    %c2_i32 = arith.constant 2 : i32
    %c5_i32 = arith.constant 5 : i32
    %21 = vector.broadcast %c2_i32 : i32 to vector<1x64xi32>
    %22 = vector.broadcast %c5_i32 : i32 to vector<1x64xi32>
    %23 = arith.select %8, %21, %22 : vector<1x64xi1>, vector<1x64xi32>
    %24 = vector.broadcast %23 : vector<1x64xi32> to vector<2x64xi32>
    %25 = vector.broadcast %0 : vector<2x1xi32> to vector<2x64xi32>
    %26 = arith.cmpi slt, %24, %25 : vector<2x64xi32>
    %c3_i32 = arith.constant 3 : i32
    %c4_i32 = arith.constant 4 : i32
    %27 = vector.broadcast %c3_i32 : i32 to vector<1x64xi32>
    %28 = vector.broadcast %c4_i32 : i32 to vector<1x64xi32>
    %29 = arith.select %8, %27, %28 : vector<1x64xi1>, vector<1x64xi32>
    %30 = vector.broadcast %29 : vector<1x64xi32> to vector<2x64xi32>
    %31 = vector.broadcast %0 : vector<2x1xi32> to vector<2x64xi32>
    %32 = arith.cmpi slt, %30, %31 : vector<2x64xi32>
    %c4_i32_3 = arith.constant 4 : i32
    %c3_i32_4 = arith.constant 3 : i32
    %33 = vector.broadcast %c4_i32_3 : i32 to vector<1x64xi32>
    %34 = vector.broadcast %c3_i32_4 : i32 to vector<1x64xi32>
    %35 = arith.select %8, %33, %34 : vector<1x64xi1>, vector<1x64xi32>
    %36 = vector.broadcast %35 : vector<1x64xi32> to vector<2x64xi32>
    %37 = vector.broadcast %0 : vector<2x1xi32> to vector<2x64xi32>
    %38 = arith.cmpi slt, %36, %37 : vector<2x64xi32>
    %c5_i32_5 = arith.constant 5 : i32
    %c2_i32_6 = arith.constant 2 : i32
    %39 = vector.broadcast %c5_i32_5 : i32 to vector<1x64xi32>
    %40 = vector.broadcast %c2_i32_6 : i32 to vector<1x64xi32>
    %41 = arith.select %8, %39, %40 : vector<1x64xi1>, vector<1x64xi32>
    %42 = vector.broadcast %41 : vector<1x64xi32> to vector<2x64xi32>
    %43 = vector.broadcast %0 : vector<2x1xi32> to vector<2x64xi32>
    %44 = arith.cmpi slt, %42, %43 : vector<2x64xi32>
    %c6_i32_7 = arith.constant 6 : i32
    %c1_i32_8 = arith.constant 1 : i32
    %45 = vector.broadcast %c6_i32_7 : i32 to vector<1x64xi32>
    %46 = vector.broadcast %c1_i32_8 : i32 to vector<1x64xi32>
    %47 = arith.select %8, %45, %46 : vector<1x64xi1>, vector<1x64xi32>
    %48 = vector.broadcast %47 : vector<1x64xi32> to vector<2x64xi32>
    %49 = vector.broadcast %0 : vector<2x1xi32> to vector<2x64xi32>
    %50 = arith.cmpi slt, %48, %49 : vector<2x64xi32>
    %c7_i32_9 = arith.constant 7 : i32
    %c0_i32_10 = arith.constant 0 : i32
    %51 = vector.broadcast %c7_i32_9 : i32 to vector<1x64xi32>
    %52 = vector.broadcast %c0_i32_10 : i32 to vector<1x64xi32>
    %53 = arith.select %8, %51, %52 : vector<1x64xi1>, vector<1x64xi32>
    %54 = vector.broadcast %53 : vector<1x64xi32> to vector<2x64xi32>
    %55 = vector.broadcast %0 : vector<2x1xi32> to vector<2x64xi32>
    %56 = arith.cmpi slt, %54, %55 : vector<2x64xi32>
    %c0_11 = arith.constant 0 : index
    %c0_12 = arith.constant 0 : index
    %57 = vector.load %arg0[%c0_11, %c0_12] : memref<16x16xf32, #tpu.memory_space<vmem>>, vector<16x16xf32>
    %58 = arith.truncf %57 : vector<16x16xf32> to vector<16x16xbf16>
    %c0_13 = arith.constant 0 : index
    %c0_14 = arith.constant 0 : index
    %59 = vector.load %arg2[%c0_13, %c0_14] : memref<16x256xbf16, #tpu.memory_space<vmem>>, vector<16x256xbf16>
    %c0_15 = arith.constant 0 : index
    %c0_16 = arith.constant 0 : index
    %60 = vector.load %arg3[%c0_15, %c0_16] : memref<64x256xbf16, #tpu.memory_space<vmem>>, vector<64x256xbf16>
    %c0_17 = arith.constant 0 : index
    %c0_18 = arith.constant 0 : index
    %61 = vector.load %arg4[%c0_17, %c0_18] : memref<1x256xf32, #tpu.memory_space<vmem>>, vector<1x256xf32>
    %cst = arith.constant dense<0.000000e+00> : vector<16x256xf32>
    %62 = tpu.matmul %58, %59, %cst {dimension_numbers = #tpu.dot_dimension_numbers<[1], [0], [0], [1], [0, 0, 1, 1], [], []>} : vector<16x16xbf16>, vector<16x256xbf16>, vector<16x256xf32> -> vector<16x256xf32>
    %63 = vector.broadcast %61 : vector<1x256xf32> to vector<16x256xf32>
    %64 = arith.addf %62, %63 : vector<16x256xf32>
    %cst_19 = arith.constant 0.000000e+00 : f32
    %65 = vector.broadcast %cst_19 : f32 to vector<2x64xf32>
    %cst_20 = arith.constant 0.000000e+00 : f32
    %66 = vector.broadcast %cst_20 : f32 to vector<2x64xf32>
    %67 = vector.extract_strided_slice %64 {offsets = [0, 0], sizes = [2, 256], strides = [1, 1]} : vector<16x256xf32> to vector<2x256xf32>
    %68 = vector.extract_strided_slice %64 {offsets = [14, 0], sizes = [2, 256], strides = [1, 1]} : vector<16x256xf32> to vector<2x256xf32>
    %69 = vector.shape_cast %5 : vector<1x256xi1> to vector<1x256xi1>
    %70 = vector.broadcast %69 : vector<1x256xi1> to vector<2x256xi1>
    %71 = arith.select %70, %67, %68 : vector<2x256xi1>, vector<2x256xf32>
    %72 = arith.truncf %65 : vector<2x64xf32> to vector<2x64xbf16>
    %cst_21 = arith.constant dense<0.000000e+00> : vector<2x256xf32>
    %73 = tpu.matmul %72, %60, %cst_21 {dimension_numbers = #tpu.dot_dimension_numbers<[1], [0], [0], [1], [0, 0, 1, 1], [], []>} : vector<2x64xbf16>, vector<64x256xbf16>, vector<2x256xf32> -> vector<2x256xf32>
    %74 = arith.addf %71, %73 : vector<2x256xf32>
    %75 = vector.extract_strided_slice %74 {offsets = [0, 0], sizes = [2, 192], strides = [1, 1]} : vector<2x256xf32> to vector<2x192xf32>
    %76 = arith.negf %75 : vector<2x192xf32>
    %77 = math.exp %76 : vector<2x192xf32>
    %cst_22 = arith.constant 1.000000e+00 : f32
    %78 = vector.broadcast %cst_22 : f32 to vector<2x192xf32>
    %79 = arith.addf %78, %77 : vector<2x192xf32>
    %80 = arith.divf %78, %79 : vector<2x192xf32>
    %81 = vector.extract_strided_slice %74 {offsets = [0, 192], sizes = [2, 64], strides = [1, 1]} : vector<2x256xf32> to vector<2x64xf32>
    %82 = math.tanh %81 : vector<2x64xf32>
    %83 = vector.extract_strided_slice %80 {offsets = [0, 0], sizes = [2, 64], strides = [1, 1]} : vector<2x192xf32> to vector<2x64xf32>
    %84 = vector.extract_strided_slice %80 {offsets = [0, 64], sizes = [2, 64], strides = [1, 1]} : vector<2x192xf32> to vector<2x64xf32>
    %85 = vector.extract_strided_slice %80 {offsets = [0, 128], sizes = [2, 64], strides = [1, 1]} : vector<2x192xf32> to vector<2x64xf32>
    %86 = arith.mulf %84, %66 : vector<2x64xf32>
    %87 = arith.mulf %83, %82 : vector<2x64xf32>
    %88 = arith.addf %86, %87 : vector<2x64xf32>
    %89 = math.tanh %88 : vector<2x64xf32>
    %90 = arith.mulf %85, %89 : vector<2x64xf32>
    %91 = arith.select %14, %88, %66 : vector<2x64xi1>, vector<2x64xf32>
    %92 = arith.select %14, %90, %65 : vector<2x64xi1>, vector<2x64xf32>
    %93 = vector.extract_strided_slice %92 {offsets = [0, 0], sizes = [2, 32], strides = [1, 1]} : vector<2x64xf32> to vector<2x32xf32>
    %94 = vector.extract_strided_slice %92 {offsets = [0, 32], sizes = [2, 32], strides = [1, 1]} : vector<2x64xf32> to vector<2x32xf32>
    %95 = vector.extract_strided_slice %64 {offsets = [2, 0], sizes = [2, 256], strides = [1, 1]} : vector<16x256xf32> to vector<2x256xf32>
    %96 = vector.extract_strided_slice %64 {offsets = [12, 0], sizes = [2, 256], strides = [1, 1]} : vector<16x256xf32> to vector<2x256xf32>
    %97 = vector.shape_cast %5 : vector<1x256xi1> to vector<1x256xi1>
    %98 = vector.broadcast %97 : vector<1x256xi1> to vector<2x256xi1>
    %99 = arith.select %98, %95, %96 : vector<2x256xi1>, vector<2x256xf32>
    %100 = arith.truncf %92 : vector<2x64xf32> to vector<2x64xbf16>
    %cst_23 = arith.constant dense<0.000000e+00> : vector<2x256xf32>
    %101 = tpu.matmul %100, %60, %cst_23 {dimension_numbers = #tpu.dot_dimension_numbers<[1], [0], [0], [1], [0, 0, 1, 1], [], []>} : vector<2x64xbf16>, vector<64x256xbf16>, vector<2x256xf32> -> vector<2x256xf32>
    %102 = arith.addf %99, %101 : vector<2x256xf32>
    %103 = vector.extract_strided_slice %102 {offsets = [0, 0], sizes = [2, 192], strides = [1, 1]} : vector<2x256xf32> to vector<2x192xf32>
    %104 = arith.negf %103 : vector<2x192xf32>
    %105 = math.exp %104 : vector<2x192xf32>
    %cst_24 = arith.constant 1.000000e+00 : f32
    %106 = vector.broadcast %cst_24 : f32 to vector<2x192xf32>
    %107 = arith.addf %106, %105 : vector<2x192xf32>
    %108 = arith.divf %106, %107 : vector<2x192xf32>
    %109 = vector.extract_strided_slice %102 {offsets = [0, 192], sizes = [2, 64], strides = [1, 1]} : vector<2x256xf32> to vector<2x64xf32>
    %110 = math.tanh %109 : vector<2x64xf32>
    %111 = vector.extract_strided_slice %108 {offsets = [0, 0], sizes = [2, 64], strides = [1, 1]} : vector<2x192xf32> to vector<2x64xf32>
    %112 = vector.extract_strided_slice %108 {offsets = [0, 64], sizes = [2, 64], strides = [1, 1]} : vector<2x192xf32> to vector<2x64xf32>
    %113 = vector.extract_strided_slice %108 {offsets = [0, 128], sizes = [2, 64], strides = [1, 1]} : vector<2x192xf32> to vector<2x64xf32>
    %114 = arith.mulf %112, %91 : vector<2x64xf32>
    %115 = arith.mulf %111, %110 : vector<2x64xf32>
    %116 = arith.addf %114, %115 : vector<2x64xf32>
    %117 = math.tanh %116 : vector<2x64xf32>
    %118 = arith.mulf %113, %117 : vector<2x64xf32>
    %119 = arith.select %20, %116, %91 : vector<2x64xi1>, vector<2x64xf32>
    %120 = arith.select %20, %118, %92 : vector<2x64xi1>, vector<2x64xf32>
    %121 = vector.extract_strided_slice %120 {offsets = [0, 0], sizes = [2, 32], strides = [1, 1]} : vector<2x64xf32> to vector<2x32xf32>
    %122 = vector.extract_strided_slice %120 {offsets = [0, 32], sizes = [2, 32], strides = [1, 1]} : vector<2x64xf32> to vector<2x32xf32>
    %123 = vector.extract_strided_slice %64 {offsets = [4, 0], sizes = [2, 256], strides = [1, 1]} : vector<16x256xf32> to vector<2x256xf32>
    %124 = vector.extract_strided_slice %64 {offsets = [10, 0], sizes = [2, 256], strides = [1, 1]} : vector<16x256xf32> to vector<2x256xf32>
    %125 = vector.shape_cast %5 : vector<1x256xi1> to vector<1x256xi1>
    %126 = vector.broadcast %125 : vector<1x256xi1> to vector<2x256xi1>
    %127 = arith.select %126, %123, %124 : vector<2x256xi1>, vector<2x256xf32>
    %128 = arith.truncf %120 : vector<2x64xf32> to vector<2x64xbf16>
    %cst_25 = arith.constant dense<0.000000e+00> : vector<2x256xf32>
    %129 = tpu.matmul %128, %60, %cst_25 {dimension_numbers = #tpu.dot_dimension_numbers<[1], [0], [0], [1], [0, 0, 1, 1], [], []>} : vector<2x64xbf16>, vector<64x256xbf16>, vector<2x256xf32> -> vector<2x256xf32>
    %130 = arith.addf %127, %129 : vector<2x256xf32>
    %131 = vector.extract_strided_slice %130 {offsets = [0, 0], sizes = [2, 192], strides = [1, 1]} : vector<2x256xf32> to vector<2x192xf32>
    %132 = arith.negf %131 : vector<2x192xf32>
    %133 = math.exp %132 : vector<2x192xf32>
    %cst_26 = arith.constant 1.000000e+00 : f32
    %134 = vector.broadcast %cst_26 : f32 to vector<2x192xf32>
    %135 = arith.addf %134, %133 : vector<2x192xf32>
    %136 = arith.divf %134, %135 : vector<2x192xf32>
    %137 = vector.extract_strided_slice %130 {offsets = [0, 192], sizes = [2, 64], strides = [1, 1]} : vector<2x256xf32> to vector<2x64xf32>
    %138 = math.tanh %137 : vector<2x64xf32>
    %139 = vector.extract_strided_slice %136 {offsets = [0, 0], sizes = [2, 64], strides = [1, 1]} : vector<2x192xf32> to vector<2x64xf32>
    %140 = vector.extract_strided_slice %136 {offsets = [0, 64], sizes = [2, 64], strides = [1, 1]} : vector<2x192xf32> to vector<2x64xf32>
    %141 = vector.extract_strided_slice %136 {offsets = [0, 128], sizes = [2, 64], strides = [1, 1]} : vector<2x192xf32> to vector<2x64xf32>
    %142 = arith.mulf %140, %119 : vector<2x64xf32>
    %143 = arith.mulf %139, %138 : vector<2x64xf32>
    %144 = arith.addf %142, %143 : vector<2x64xf32>
    %145 = math.tanh %144 : vector<2x64xf32>
    %146 = arith.mulf %141, %145 : vector<2x64xf32>
    %147 = arith.select %26, %144, %119 : vector<2x64xi1>, vector<2x64xf32>
    %148 = arith.select %26, %146, %120 : vector<2x64xi1>, vector<2x64xf32>
    %149 = vector.extract_strided_slice %148 {offsets = [0, 0], sizes = [2, 32], strides = [1, 1]} : vector<2x64xf32> to vector<2x32xf32>
    %150 = vector.extract_strided_slice %148 {offsets = [0, 32], sizes = [2, 32], strides = [1, 1]} : vector<2x64xf32> to vector<2x32xf32>
    %151 = vector.extract_strided_slice %64 {offsets = [6, 0], sizes = [2, 256], strides = [1, 1]} : vector<16x256xf32> to vector<2x256xf32>
    %152 = vector.extract_strided_slice %64 {offsets = [8, 0], sizes = [2, 256], strides = [1, 1]} : vector<16x256xf32> to vector<2x256xf32>
    %153 = vector.shape_cast %5 : vector<1x256xi1> to vector<1x256xi1>
    %154 = vector.broadcast %153 : vector<1x256xi1> to vector<2x256xi1>
    %155 = arith.select %154, %151, %152 : vector<2x256xi1>, vector<2x256xf32>
    %156 = arith.truncf %148 : vector<2x64xf32> to vector<2x64xbf16>
    %cst_27 = arith.constant dense<0.000000e+00> : vector<2x256xf32>
    %157 = tpu.matmul %156, %60, %cst_27 {dimension_numbers = #tpu.dot_dimension_numbers<[1], [0], [0], [1], [0, 0, 1, 1], [], []>} : vector<2x64xbf16>, vector<64x256xbf16>, vector<2x256xf32> -> vector<2x256xf32>
    %158 = arith.addf %155, %157 : vector<2x256xf32>
    %159 = vector.extract_strided_slice %158 {offsets = [0, 0], sizes = [2, 192], strides = [1, 1]} : vector<2x256xf32> to vector<2x192xf32>
    %160 = arith.negf %159 : vector<2x192xf32>
    %161 = math.exp %160 : vector<2x192xf32>
    %cst_28 = arith.constant 1.000000e+00 : f32
    %162 = vector.broadcast %cst_28 : f32 to vector<2x192xf32>
    %163 = arith.addf %162, %161 : vector<2x192xf32>
    %164 = arith.divf %162, %163 : vector<2x192xf32>
    %165 = vector.extract_strided_slice %158 {offsets = [0, 192], sizes = [2, 64], strides = [1, 1]} : vector<2x256xf32> to vector<2x64xf32>
    %166 = math.tanh %165 : vector<2x64xf32>
    %167 = vector.extract_strided_slice %164 {offsets = [0, 0], sizes = [2, 64], strides = [1, 1]} : vector<2x192xf32> to vector<2x64xf32>
    %168 = vector.extract_strided_slice %164 {offsets = [0, 64], sizes = [2, 64], strides = [1, 1]} : vector<2x192xf32> to vector<2x64xf32>
    %169 = vector.extract_strided_slice %164 {offsets = [0, 128], sizes = [2, 64], strides = [1, 1]} : vector<2x192xf32> to vector<2x64xf32>
    %170 = arith.mulf %168, %147 : vector<2x64xf32>
    %171 = arith.mulf %167, %166 : vector<2x64xf32>
    %172 = arith.addf %170, %171 : vector<2x64xf32>
    %173 = math.tanh %172 : vector<2x64xf32>
    %174 = arith.mulf %169, %173 : vector<2x64xf32>
    %175 = arith.select %32, %172, %147 : vector<2x64xi1>, vector<2x64xf32>
    %176 = arith.select %32, %174, %148 : vector<2x64xi1>, vector<2x64xf32>
    %177 = vector.extract_strided_slice %176 {offsets = [0, 0], sizes = [2, 32], strides = [1, 1]} : vector<2x64xf32> to vector<2x32xf32>
    %178 = vector.extract_strided_slice %176 {offsets = [0, 32], sizes = [2, 32], strides = [1, 1]} : vector<2x64xf32> to vector<2x32xf32>
    %179 = vector.extract_strided_slice %64 {offsets = [8, 0], sizes = [2, 256], strides = [1, 1]} : vector<16x256xf32> to vector<2x256xf32>
    %180 = vector.extract_strided_slice %64 {offsets = [6, 0], sizes = [2, 256], strides = [1, 1]} : vector<16x256xf32> to vector<2x256xf32>
    %181 = vector.shape_cast %5 : vector<1x256xi1> to vector<1x256xi1>
    %182 = vector.broadcast %181 : vector<1x256xi1> to vector<2x256xi1>
    %183 = arith.select %182, %179, %180 : vector<2x256xi1>, vector<2x256xf32>
    %184 = arith.truncf %176 : vector<2x64xf32> to vector<2x64xbf16>
    %cst_29 = arith.constant dense<0.000000e+00> : vector<2x256xf32>
    %185 = tpu.matmul %184, %60, %cst_29 {dimension_numbers = #tpu.dot_dimension_numbers<[1], [0], [0], [1], [0, 0, 1, 1], [], []>} : vector<2x64xbf16>, vector<64x256xbf16>, vector<2x256xf32> -> vector<2x256xf32>
    %186 = arith.addf %183, %185 : vector<2x256xf32>
    %187 = vector.extract_strided_slice %186 {offsets = [0, 0], sizes = [2, 192], strides = [1, 1]} : vector<2x256xf32> to vector<2x192xf32>
    %188 = arith.negf %187 : vector<2x192xf32>
    %189 = math.exp %188 : vector<2x192xf32>
    %cst_30 = arith.constant 1.000000e+00 : f32
    %190 = vector.broadcast %cst_30 : f32 to vector<2x192xf32>
    %191 = arith.addf %190, %189 : vector<2x192xf32>
    %192 = arith.divf %190, %191 : vector<2x192xf32>
    %193 = vector.extract_strided_slice %186 {offsets = [0, 192], sizes = [2, 64], strides = [1, 1]} : vector<2x256xf32> to vector<2x64xf32>
    %194 = math.tanh %193 : vector<2x64xf32>
    %195 = vector.extract_strided_slice %192 {offsets = [0, 0], sizes = [2, 64], strides = [1, 1]} : vector<2x192xf32> to vector<2x64xf32>
    %196 = vector.extract_strided_slice %192 {offsets = [0, 64], sizes = [2, 64], strides = [1, 1]} : vector<2x192xf32> to vector<2x64xf32>
    %197 = vector.extract_strided_slice %192 {offsets = [0, 128], sizes = [2, 64], strides = [1, 1]} : vector<2x192xf32> to vector<2x64xf32>
    %198 = arith.mulf %196, %175 : vector<2x64xf32>
    %199 = arith.mulf %195, %194 : vector<2x64xf32>
    %200 = arith.addf %198, %199 : vector<2x64xf32>
    %201 = math.tanh %200 : vector<2x64xf32>
    %202 = arith.mulf %197, %201 : vector<2x64xf32>
    %203 = arith.select %38, %200, %175 : vector<2x64xi1>, vector<2x64xf32>
    %204 = arith.select %38, %202, %176 : vector<2x64xi1>, vector<2x64xf32>
    %205 = vector.extract_strided_slice %204 {offsets = [0, 0], sizes = [2, 32], strides = [1, 1]} : vector<2x64xf32> to vector<2x32xf32>
    %206 = vector.extract_strided_slice %204 {offsets = [0, 32], sizes = [2, 32], strides = [1, 1]} : vector<2x64xf32> to vector<2x32xf32>
    %207 = vector.extract_strided_slice %64 {offsets = [10, 0], sizes = [2, 256], strides = [1, 1]} : vector<16x256xf32> to vector<2x256xf32>
    %208 = vector.extract_strided_slice %64 {offsets = [4, 0], sizes = [2, 256], strides = [1, 1]} : vector<16x256xf32> to vector<2x256xf32>
    %209 = vector.shape_cast %5 : vector<1x256xi1> to vector<1x256xi1>
    %210 = vector.broadcast %209 : vector<1x256xi1> to vector<2x256xi1>
    %211 = arith.select %210, %207, %208 : vector<2x256xi1>, vector<2x256xf32>
    %212 = arith.truncf %204 : vector<2x64xf32> to vector<2x64xbf16>
    %cst_31 = arith.constant dense<0.000000e+00> : vector<2x256xf32>
    %213 = tpu.matmul %212, %60, %cst_31 {dimension_numbers = #tpu.dot_dimension_numbers<[1], [0], [0], [1], [0, 0, 1, 1], [], []>} : vector<2x64xbf16>, vector<64x256xbf16>, vector<2x256xf32> -> vector<2x256xf32>
    %214 = arith.addf %211, %213 : vector<2x256xf32>
    %215 = vector.extract_strided_slice %214 {offsets = [0, 0], sizes = [2, 192], strides = [1, 1]} : vector<2x256xf32> to vector<2x192xf32>
    %216 = arith.negf %215 : vector<2x192xf32>
    %217 = math.exp %216 : vector<2x192xf32>
    %cst_32 = arith.constant 1.000000e+00 : f32
    %218 = vector.broadcast %cst_32 : f32 to vector<2x192xf32>
    %219 = arith.addf %218, %217 : vector<2x192xf32>
    %220 = arith.divf %218, %219 : vector<2x192xf32>
    %221 = vector.extract_strided_slice %214 {offsets = [0, 192], sizes = [2, 64], strides = [1, 1]} : vector<2x256xf32> to vector<2x64xf32>
    %222 = math.tanh %221 : vector<2x64xf32>
    %223 = vector.extract_strided_slice %220 {offsets = [0, 0], sizes = [2, 64], strides = [1, 1]} : vector<2x192xf32> to vector<2x64xf32>
    %224 = vector.extract_strided_slice %220 {offsets = [0, 64], sizes = [2, 64], strides = [1, 1]} : vector<2x192xf32> to vector<2x64xf32>
    %225 = vector.extract_strided_slice %220 {offsets = [0, 128], sizes = [2, 64], strides = [1, 1]} : vector<2x192xf32> to vector<2x64xf32>
    %226 = arith.mulf %224, %203 : vector<2x64xf32>
    %227 = arith.mulf %223, %222 : vector<2x64xf32>
    %228 = arith.addf %226, %227 : vector<2x64xf32>
    %229 = math.tanh %228 : vector<2x64xf32>
    %230 = arith.mulf %225, %229 : vector<2x64xf32>
    %231 = arith.select %44, %228, %203 : vector<2x64xi1>, vector<2x64xf32>
    %232 = arith.select %44, %230, %204 : vector<2x64xi1>, vector<2x64xf32>
    %233 = vector.extract_strided_slice %232 {offsets = [0, 0], sizes = [2, 32], strides = [1, 1]} : vector<2x64xf32> to vector<2x32xf32>
    %234 = vector.extract_strided_slice %232 {offsets = [0, 32], sizes = [2, 32], strides = [1, 1]} : vector<2x64xf32> to vector<2x32xf32>
    %235 = vector.extract_strided_slice %64 {offsets = [12, 0], sizes = [2, 256], strides = [1, 1]} : vector<16x256xf32> to vector<2x256xf32>
    %236 = vector.extract_strided_slice %64 {offsets = [2, 0], sizes = [2, 256], strides = [1, 1]} : vector<16x256xf32> to vector<2x256xf32>
    %237 = vector.shape_cast %5 : vector<1x256xi1> to vector<1x256xi1>
    %238 = vector.broadcast %237 : vector<1x256xi1> to vector<2x256xi1>
    %239 = arith.select %238, %235, %236 : vector<2x256xi1>, vector<2x256xf32>
    %240 = arith.truncf %232 : vector<2x64xf32> to vector<2x64xbf16>
    %cst_33 = arith.constant dense<0.000000e+00> : vector<2x256xf32>
    %241 = tpu.matmul %240, %60, %cst_33 {dimension_numbers = #tpu.dot_dimension_numbers<[1], [0], [0], [1], [0, 0, 1, 1], [], []>} : vector<2x64xbf16>, vector<64x256xbf16>, vector<2x256xf32> -> vector<2x256xf32>
    %242 = arith.addf %239, %241 : vector<2x256xf32>
    %243 = vector.extract_strided_slice %242 {offsets = [0, 0], sizes = [2, 192], strides = [1, 1]} : vector<2x256xf32> to vector<2x192xf32>
    %244 = arith.negf %243 : vector<2x192xf32>
    %245 = math.exp %244 : vector<2x192xf32>
    %cst_34 = arith.constant 1.000000e+00 : f32
    %246 = vector.broadcast %cst_34 : f32 to vector<2x192xf32>
    %247 = arith.addf %246, %245 : vector<2x192xf32>
    %248 = arith.divf %246, %247 : vector<2x192xf32>
    %249 = vector.extract_strided_slice %242 {offsets = [0, 192], sizes = [2, 64], strides = [1, 1]} : vector<2x256xf32> to vector<2x64xf32>
    %250 = math.tanh %249 : vector<2x64xf32>
    %251 = vector.extract_strided_slice %248 {offsets = [0, 0], sizes = [2, 64], strides = [1, 1]} : vector<2x192xf32> to vector<2x64xf32>
    %252 = vector.extract_strided_slice %248 {offsets = [0, 64], sizes = [2, 64], strides = [1, 1]} : vector<2x192xf32> to vector<2x64xf32>
    %253 = vector.extract_strided_slice %248 {offsets = [0, 128], sizes = [2, 64], strides = [1, 1]} : vector<2x192xf32> to vector<2x64xf32>
    %254 = arith.mulf %252, %231 : vector<2x64xf32>
    %255 = arith.mulf %251, %250 : vector<2x64xf32>
    %256 = arith.addf %254, %255 : vector<2x64xf32>
    %257 = math.tanh %256 : vector<2x64xf32>
    %258 = arith.mulf %253, %257 : vector<2x64xf32>
    %259 = arith.select %50, %256, %231 : vector<2x64xi1>, vector<2x64xf32>
    %260 = arith.select %50, %258, %232 : vector<2x64xi1>, vector<2x64xf32>
    %261 = vector.extract_strided_slice %260 {offsets = [0, 0], sizes = [2, 32], strides = [1, 1]} : vector<2x64xf32> to vector<2x32xf32>
    %262 = vector.extract_strided_slice %260 {offsets = [0, 32], sizes = [2, 32], strides = [1, 1]} : vector<2x64xf32> to vector<2x32xf32>
    %263 = vector.extract_strided_slice %64 {offsets = [14, 0], sizes = [2, 256], strides = [1, 1]} : vector<16x256xf32> to vector<2x256xf32>
    %264 = vector.extract_strided_slice %64 {offsets = [0, 0], sizes = [2, 256], strides = [1, 1]} : vector<16x256xf32> to vector<2x256xf32>
    %265 = vector.shape_cast %5 : vector<1x256xi1> to vector<1x256xi1>
    %266 = vector.broadcast %265 : vector<1x256xi1> to vector<2x256xi1>
    %267 = arith.select %266, %263, %264 : vector<2x256xi1>, vector<2x256xf32>
    %268 = arith.truncf %260 : vector<2x64xf32> to vector<2x64xbf16>
    %cst_35 = arith.constant dense<0.000000e+00> : vector<2x256xf32>
    %269 = tpu.matmul %268, %60, %cst_35 {dimension_numbers = #tpu.dot_dimension_numbers<[1], [0], [0], [1], [0, 0, 1, 1], [], []>} : vector<2x64xbf16>, vector<64x256xbf16>, vector<2x256xf32> -> vector<2x256xf32>
    %270 = arith.addf %267, %269 : vector<2x256xf32>
    %271 = vector.extract_strided_slice %270 {offsets = [0, 0], sizes = [2, 192], strides = [1, 1]} : vector<2x256xf32> to vector<2x192xf32>
    %272 = arith.negf %271 : vector<2x192xf32>
    %273 = math.exp %272 : vector<2x192xf32>
    %cst_36 = arith.constant 1.000000e+00 : f32
    %274 = vector.broadcast %cst_36 : f32 to vector<2x192xf32>
    %275 = arith.addf %274, %273 : vector<2x192xf32>
    %276 = arith.divf %274, %275 : vector<2x192xf32>
    %277 = vector.extract_strided_slice %270 {offsets = [0, 192], sizes = [2, 64], strides = [1, 1]} : vector<2x256xf32> to vector<2x64xf32>
    %278 = math.tanh %277 : vector<2x64xf32>
    %279 = vector.extract_strided_slice %276 {offsets = [0, 0], sizes = [2, 64], strides = [1, 1]} : vector<2x192xf32> to vector<2x64xf32>
    %280 = vector.extract_strided_slice %276 {offsets = [0, 64], sizes = [2, 64], strides = [1, 1]} : vector<2x192xf32> to vector<2x64xf32>
    %281 = vector.extract_strided_slice %276 {offsets = [0, 128], sizes = [2, 64], strides = [1, 1]} : vector<2x192xf32> to vector<2x64xf32>
    %282 = arith.mulf %280, %259 : vector<2x64xf32>
    %283 = arith.mulf %279, %278 : vector<2x64xf32>
    %284 = arith.addf %282, %283 : vector<2x64xf32>
    %285 = math.tanh %284 : vector<2x64xf32>
    %286 = arith.mulf %281, %285 : vector<2x64xf32>
    %287 = arith.select %56, %286, %260 : vector<2x64xi1>, vector<2x64xf32>
    %288 = vector.extract_strided_slice %287 {offsets = [0, 0], sizes = [2, 32], strides = [1, 1]} : vector<2x64xf32> to vector<2x32xf32>
    %289 = vector.extract_strided_slice %287 {offsets = [0, 32], sizes = [2, 32], strides = [1, 1]} : vector<2x64xf32> to vector<2x32xf32>
    %290 = tpu.concatenate %93, %121, %149, %177, %205, %233, %261, %288 in 0 : vector<2x32xf32>, vector<2x32xf32>, vector<2x32xf32>, vector<2x32xf32>, vector<2x32xf32>, vector<2x32xf32>, vector<2x32xf32>, vector<2x32xf32> -> vector<16x32xf32>
    %291 = tpu.concatenate %289, %262, %234, %206, %178, %150, %122, %94 in 0 : vector<2x32xf32>, vector<2x32xf32>, vector<2x32xf32>, vector<2x32xf32>, vector<2x32xf32>, vector<2x32xf32>, vector<2x32xf32>, vector<2x32xf32> -> vector<16x32xf32>
    %292 = tpu.concatenate %290, %291 in 1 : vector<16x32xf32>, vector<16x32xf32> -> vector<16x64xf32>
    %293 = arith.truncf %292 : vector<16x64xf32> to vector<16x64xbf16>
    %c0_37 = arith.constant 0 : index
    %c0_38 = arith.constant 0 : index
    %294 = vector.load %arg5[%c0_37, %c0_38] : memref<64x256xbf16, #tpu.memory_space<vmem>>, vector<64x256xbf16>
    %c0_39 = arith.constant 0 : index
    %c0_40 = arith.constant 0 : index
    %295 = vector.load %arg6[%c0_39, %c0_40] : memref<64x256xbf16, #tpu.memory_space<vmem>>, vector<64x256xbf16>
    %c0_41 = arith.constant 0 : index
    %c0_42 = arith.constant 0 : index
    %296 = vector.load %arg7[%c0_41, %c0_42] : memref<1x256xf32, #tpu.memory_space<vmem>>, vector<1x256xf32>
    %cst_43 = arith.constant dense<0.000000e+00> : vector<16x256xf32>
    %297 = tpu.matmul %293, %294, %cst_43 {dimension_numbers = #tpu.dot_dimension_numbers<[1], [0], [0], [1], [0, 0, 1, 1], [], []>} : vector<16x64xbf16>, vector<64x256xbf16>, vector<16x256xf32> -> vector<16x256xf32>
    %298 = vector.broadcast %296 : vector<1x256xf32> to vector<16x256xf32>
    %299 = arith.addf %297, %298 : vector<16x256xf32>
    %cst_44 = arith.constant 0.000000e+00 : f32
    %300 = vector.broadcast %cst_44 : f32 to vector<2x64xf32>
    %cst_45 = arith.constant 0.000000e+00 : f32
    %301 = vector.broadcast %cst_45 : f32 to vector<2x64xf32>
    %302 = vector.extract_strided_slice %299 {offsets = [0, 0], sizes = [2, 256], strides = [1, 1]} : vector<16x256xf32> to vector<2x256xf32>
    %303 = vector.extract_strided_slice %299 {offsets = [14, 0], sizes = [2, 256], strides = [1, 1]} : vector<16x256xf32> to vector<2x256xf32>
    %304 = vector.shape_cast %5 : vector<1x256xi1> to vector<1x256xi1>
    %305 = vector.broadcast %304 : vector<1x256xi1> to vector<2x256xi1>
    %306 = arith.select %305, %302, %303 : vector<2x256xi1>, vector<2x256xf32>
    %307 = arith.truncf %300 : vector<2x64xf32> to vector<2x64xbf16>
    %cst_46 = arith.constant dense<0.000000e+00> : vector<2x256xf32>
    %308 = tpu.matmul %307, %295, %cst_46 {dimension_numbers = #tpu.dot_dimension_numbers<[1], [0], [0], [1], [0, 0, 1, 1], [], []>} : vector<2x64xbf16>, vector<64x256xbf16>, vector<2x256xf32> -> vector<2x256xf32>
    %309 = arith.addf %306, %308 : vector<2x256xf32>
    %310 = vector.extract_strided_slice %309 {offsets = [0, 0], sizes = [2, 192], strides = [1, 1]} : vector<2x256xf32> to vector<2x192xf32>
    %311 = arith.negf %310 : vector<2x192xf32>
    %312 = math.exp %311 : vector<2x192xf32>
    %cst_47 = arith.constant 1.000000e+00 : f32
    %313 = vector.broadcast %cst_47 : f32 to vector<2x192xf32>
    %314 = arith.addf %313, %312 : vector<2x192xf32>
    %315 = arith.divf %313, %314 : vector<2x192xf32>
    %316 = vector.extract_strided_slice %309 {offsets = [0, 192], sizes = [2, 64], strides = [1, 1]} : vector<2x256xf32> to vector<2x64xf32>
    %317 = math.tanh %316 : vector<2x64xf32>
    %318 = vector.extract_strided_slice %315 {offsets = [0, 0], sizes = [2, 64], strides = [1, 1]} : vector<2x192xf32> to vector<2x64xf32>
    %319 = vector.extract_strided_slice %315 {offsets = [0, 64], sizes = [2, 64], strides = [1, 1]} : vector<2x192xf32> to vector<2x64xf32>
    %320 = vector.extract_strided_slice %315 {offsets = [0, 128], sizes = [2, 64], strides = [1, 1]} : vector<2x192xf32> to vector<2x64xf32>
    %321 = arith.mulf %319, %301 : vector<2x64xf32>
    %322 = arith.mulf %318, %317 : vector<2x64xf32>
    %323 = arith.addf %321, %322 : vector<2x64xf32>
    %324 = math.tanh %323 : vector<2x64xf32>
    %325 = arith.mulf %320, %324 : vector<2x64xf32>
    %326 = arith.select %14, %323, %301 : vector<2x64xi1>, vector<2x64xf32>
    %327 = arith.select %14, %325, %300 : vector<2x64xi1>, vector<2x64xf32>
    %328 = vector.extract_strided_slice %327 {offsets = [0, 0], sizes = [2, 32], strides = [1, 1]} : vector<2x64xf32> to vector<2x32xf32>
    %329 = vector.extract_strided_slice %327 {offsets = [0, 32], sizes = [2, 32], strides = [1, 1]} : vector<2x64xf32> to vector<2x32xf32>
    %330 = vector.extract_strided_slice %299 {offsets = [2, 0], sizes = [2, 256], strides = [1, 1]} : vector<16x256xf32> to vector<2x256xf32>
    %331 = vector.extract_strided_slice %299 {offsets = [12, 0], sizes = [2, 256], strides = [1, 1]} : vector<16x256xf32> to vector<2x256xf32>
    %332 = vector.shape_cast %5 : vector<1x256xi1> to vector<1x256xi1>
    %333 = vector.broadcast %332 : vector<1x256xi1> to vector<2x256xi1>
    %334 = arith.select %333, %330, %331 : vector<2x256xi1>, vector<2x256xf32>
    %335 = arith.truncf %327 : vector<2x64xf32> to vector<2x64xbf16>
    %cst_48 = arith.constant dense<0.000000e+00> : vector<2x256xf32>
    %336 = tpu.matmul %335, %295, %cst_48 {dimension_numbers = #tpu.dot_dimension_numbers<[1], [0], [0], [1], [0, 0, 1, 1], [], []>} : vector<2x64xbf16>, vector<64x256xbf16>, vector<2x256xf32> -> vector<2x256xf32>
    %337 = arith.addf %334, %336 : vector<2x256xf32>
    %338 = vector.extract_strided_slice %337 {offsets = [0, 0], sizes = [2, 192], strides = [1, 1]} : vector<2x256xf32> to vector<2x192xf32>
    %339 = arith.negf %338 : vector<2x192xf32>
    %340 = math.exp %339 : vector<2x192xf32>
    %cst_49 = arith.constant 1.000000e+00 : f32
    %341 = vector.broadcast %cst_49 : f32 to vector<2x192xf32>
    %342 = arith.addf %341, %340 : vector<2x192xf32>
    %343 = arith.divf %341, %342 : vector<2x192xf32>
    %344 = vector.extract_strided_slice %337 {offsets = [0, 192], sizes = [2, 64], strides = [1, 1]} : vector<2x256xf32> to vector<2x64xf32>
    %345 = math.tanh %344 : vector<2x64xf32>
    %346 = vector.extract_strided_slice %343 {offsets = [0, 0], sizes = [2, 64], strides = [1, 1]} : vector<2x192xf32> to vector<2x64xf32>
    %347 = vector.extract_strided_slice %343 {offsets = [0, 64], sizes = [2, 64], strides = [1, 1]} : vector<2x192xf32> to vector<2x64xf32>
    %348 = vector.extract_strided_slice %343 {offsets = [0, 128], sizes = [2, 64], strides = [1, 1]} : vector<2x192xf32> to vector<2x64xf32>
    %349 = arith.mulf %347, %326 : vector<2x64xf32>
    %350 = arith.mulf %346, %345 : vector<2x64xf32>
    %351 = arith.addf %349, %350 : vector<2x64xf32>
    %352 = math.tanh %351 : vector<2x64xf32>
    %353 = arith.mulf %348, %352 : vector<2x64xf32>
    %354 = arith.select %20, %351, %326 : vector<2x64xi1>, vector<2x64xf32>
    %355 = arith.select %20, %353, %327 : vector<2x64xi1>, vector<2x64xf32>
    %356 = vector.extract_strided_slice %355 {offsets = [0, 0], sizes = [2, 32], strides = [1, 1]} : vector<2x64xf32> to vector<2x32xf32>
    %357 = vector.extract_strided_slice %355 {offsets = [0, 32], sizes = [2, 32], strides = [1, 1]} : vector<2x64xf32> to vector<2x32xf32>
    %358 = vector.extract_strided_slice %299 {offsets = [4, 0], sizes = [2, 256], strides = [1, 1]} : vector<16x256xf32> to vector<2x256xf32>
    %359 = vector.extract_strided_slice %299 {offsets = [10, 0], sizes = [2, 256], strides = [1, 1]} : vector<16x256xf32> to vector<2x256xf32>
    %360 = vector.shape_cast %5 : vector<1x256xi1> to vector<1x256xi1>
    %361 = vector.broadcast %360 : vector<1x256xi1> to vector<2x256xi1>
    %362 = arith.select %361, %358, %359 : vector<2x256xi1>, vector<2x256xf32>
    %363 = arith.truncf %355 : vector<2x64xf32> to vector<2x64xbf16>
    %cst_50 = arith.constant dense<0.000000e+00> : vector<2x256xf32>
    %364 = tpu.matmul %363, %295, %cst_50 {dimension_numbers = #tpu.dot_dimension_numbers<[1], [0], [0], [1], [0, 0, 1, 1], [], []>} : vector<2x64xbf16>, vector<64x256xbf16>, vector<2x256xf32> -> vector<2x256xf32>
    %365 = arith.addf %362, %364 : vector<2x256xf32>
    %366 = vector.extract_strided_slice %365 {offsets = [0, 0], sizes = [2, 192], strides = [1, 1]} : vector<2x256xf32> to vector<2x192xf32>
    %367 = arith.negf %366 : vector<2x192xf32>
    %368 = math.exp %367 : vector<2x192xf32>
    %cst_51 = arith.constant 1.000000e+00 : f32
    %369 = vector.broadcast %cst_51 : f32 to vector<2x192xf32>
    %370 = arith.addf %369, %368 : vector<2x192xf32>
    %371 = arith.divf %369, %370 : vector<2x192xf32>
    %372 = vector.extract_strided_slice %365 {offsets = [0, 192], sizes = [2, 64], strides = [1, 1]} : vector<2x256xf32> to vector<2x64xf32>
    %373 = math.tanh %372 : vector<2x64xf32>
    %374 = vector.extract_strided_slice %371 {offsets = [0, 0], sizes = [2, 64], strides = [1, 1]} : vector<2x192xf32> to vector<2x64xf32>
    %375 = vector.extract_strided_slice %371 {offsets = [0, 64], sizes = [2, 64], strides = [1, 1]} : vector<2x192xf32> to vector<2x64xf32>
    %376 = vector.extract_strided_slice %371 {offsets = [0, 128], sizes = [2, 64], strides = [1, 1]} : vector<2x192xf32> to vector<2x64xf32>
    %377 = arith.mulf %375, %354 : vector<2x64xf32>
    %378 = arith.mulf %374, %373 : vector<2x64xf32>
    %379 = arith.addf %377, %378 : vector<2x64xf32>
    %380 = math.tanh %379 : vector<2x64xf32>
    %381 = arith.mulf %376, %380 : vector<2x64xf32>
    %382 = arith.select %26, %379, %354 : vector<2x64xi1>, vector<2x64xf32>
    %383 = arith.select %26, %381, %355 : vector<2x64xi1>, vector<2x64xf32>
    %384 = vector.extract_strided_slice %383 {offsets = [0, 0], sizes = [2, 32], strides = [1, 1]} : vector<2x64xf32> to vector<2x32xf32>
    %385 = vector.extract_strided_slice %383 {offsets = [0, 32], sizes = [2, 32], strides = [1, 1]} : vector<2x64xf32> to vector<2x32xf32>
    %386 = vector.extract_strided_slice %299 {offsets = [6, 0], sizes = [2, 256], strides = [1, 1]} : vector<16x256xf32> to vector<2x256xf32>
    %387 = vector.extract_strided_slice %299 {offsets = [8, 0], sizes = [2, 256], strides = [1, 1]} : vector<16x256xf32> to vector<2x256xf32>
    %388 = vector.shape_cast %5 : vector<1x256xi1> to vector<1x256xi1>
    %389 = vector.broadcast %388 : vector<1x256xi1> to vector<2x256xi1>
    %390 = arith.select %389, %386, %387 : vector<2x256xi1>, vector<2x256xf32>
    %391 = arith.truncf %383 : vector<2x64xf32> to vector<2x64xbf16>
    %cst_52 = arith.constant dense<0.000000e+00> : vector<2x256xf32>
    %392 = tpu.matmul %391, %295, %cst_52 {dimension_numbers = #tpu.dot_dimension_numbers<[1], [0], [0], [1], [0, 0, 1, 1], [], []>} : vector<2x64xbf16>, vector<64x256xbf16>, vector<2x256xf32> -> vector<2x256xf32>
    %393 = arith.addf %390, %392 : vector<2x256xf32>
    %394 = vector.extract_strided_slice %393 {offsets = [0, 0], sizes = [2, 192], strides = [1, 1]} : vector<2x256xf32> to vector<2x192xf32>
    %395 = arith.negf %394 : vector<2x192xf32>
    %396 = math.exp %395 : vector<2x192xf32>
    %cst_53 = arith.constant 1.000000e+00 : f32
    %397 = vector.broadcast %cst_53 : f32 to vector<2x192xf32>
    %398 = arith.addf %397, %396 : vector<2x192xf32>
    %399 = arith.divf %397, %398 : vector<2x192xf32>
    %400 = vector.extract_strided_slice %393 {offsets = [0, 192], sizes = [2, 64], strides = [1, 1]} : vector<2x256xf32> to vector<2x64xf32>
    %401 = math.tanh %400 : vector<2x64xf32>
    %402 = vector.extract_strided_slice %399 {offsets = [0, 0], sizes = [2, 64], strides = [1, 1]} : vector<2x192xf32> to vector<2x64xf32>
    %403 = vector.extract_strided_slice %399 {offsets = [0, 64], sizes = [2, 64], strides = [1, 1]} : vector<2x192xf32> to vector<2x64xf32>
    %404 = vector.extract_strided_slice %399 {offsets = [0, 128], sizes = [2, 64], strides = [1, 1]} : vector<2x192xf32> to vector<2x64xf32>
    %405 = arith.mulf %403, %382 : vector<2x64xf32>
    %406 = arith.mulf %402, %401 : vector<2x64xf32>
    %407 = arith.addf %405, %406 : vector<2x64xf32>
    %408 = math.tanh %407 : vector<2x64xf32>
    %409 = arith.mulf %404, %408 : vector<2x64xf32>
    %410 = arith.select %32, %407, %382 : vector<2x64xi1>, vector<2x64xf32>
    %411 = arith.select %32, %409, %383 : vector<2x64xi1>, vector<2x64xf32>
    %412 = vector.extract_strided_slice %411 {offsets = [0, 0], sizes = [2, 32], strides = [1, 1]} : vector<2x64xf32> to vector<2x32xf32>
    %413 = vector.extract_strided_slice %411 {offsets = [0, 32], sizes = [2, 32], strides = [1, 1]} : vector<2x64xf32> to vector<2x32xf32>
    %414 = vector.extract_strided_slice %299 {offsets = [8, 0], sizes = [2, 256], strides = [1, 1]} : vector<16x256xf32> to vector<2x256xf32>
    %415 = vector.extract_strided_slice %299 {offsets = [6, 0], sizes = [2, 256], strides = [1, 1]} : vector<16x256xf32> to vector<2x256xf32>
    %416 = vector.shape_cast %5 : vector<1x256xi1> to vector<1x256xi1>
    %417 = vector.broadcast %416 : vector<1x256xi1> to vector<2x256xi1>
    %418 = arith.select %417, %414, %415 : vector<2x256xi1>, vector<2x256xf32>
    %419 = arith.truncf %411 : vector<2x64xf32> to vector<2x64xbf16>
    %cst_54 = arith.constant dense<0.000000e+00> : vector<2x256xf32>
    %420 = tpu.matmul %419, %295, %cst_54 {dimension_numbers = #tpu.dot_dimension_numbers<[1], [0], [0], [1], [0, 0, 1, 1], [], []>} : vector<2x64xbf16>, vector<64x256xbf16>, vector<2x256xf32> -> vector<2x256xf32>
    %421 = arith.addf %418, %420 : vector<2x256xf32>
    %422 = vector.extract_strided_slice %421 {offsets = [0, 0], sizes = [2, 192], strides = [1, 1]} : vector<2x256xf32> to vector<2x192xf32>
    %423 = arith.negf %422 : vector<2x192xf32>
    %424 = math.exp %423 : vector<2x192xf32>
    %cst_55 = arith.constant 1.000000e+00 : f32
    %425 = vector.broadcast %cst_55 : f32 to vector<2x192xf32>
    %426 = arith.addf %425, %424 : vector<2x192xf32>
    %427 = arith.divf %425, %426 : vector<2x192xf32>
    %428 = vector.extract_strided_slice %421 {offsets = [0, 192], sizes = [2, 64], strides = [1, 1]} : vector<2x256xf32> to vector<2x64xf32>
    %429 = math.tanh %428 : vector<2x64xf32>
    %430 = vector.extract_strided_slice %427 {offsets = [0, 0], sizes = [2, 64], strides = [1, 1]} : vector<2x192xf32> to vector<2x64xf32>
    %431 = vector.extract_strided_slice %427 {offsets = [0, 64], sizes = [2, 64], strides = [1, 1]} : vector<2x192xf32> to vector<2x64xf32>
    %432 = vector.extract_strided_slice %427 {offsets = [0, 128], sizes = [2, 64], strides = [1, 1]} : vector<2x192xf32> to vector<2x64xf32>
    %433 = arith.mulf %431, %410 : vector<2x64xf32>
    %434 = arith.mulf %430, %429 : vector<2x64xf32>
    %435 = arith.addf %433, %434 : vector<2x64xf32>
    %436 = math.tanh %435 : vector<2x64xf32>
    %437 = arith.mulf %432, %436 : vector<2x64xf32>
    %438 = arith.select %38, %435, %410 : vector<2x64xi1>, vector<2x64xf32>
    %439 = arith.select %38, %437, %411 : vector<2x64xi1>, vector<2x64xf32>
    %440 = vector.extract_strided_slice %439 {offsets = [0, 0], sizes = [2, 32], strides = [1, 1]} : vector<2x64xf32> to vector<2x32xf32>
    %441 = vector.extract_strided_slice %439 {offsets = [0, 32], sizes = [2, 32], strides = [1, 1]} : vector<2x64xf32> to vector<2x32xf32>
    %442 = vector.extract_strided_slice %299 {offsets = [10, 0], sizes = [2, 256], strides = [1, 1]} : vector<16x256xf32> to vector<2x256xf32>
    %443 = vector.extract_strided_slice %299 {offsets = [4, 0], sizes = [2, 256], strides = [1, 1]} : vector<16x256xf32> to vector<2x256xf32>
    %444 = vector.shape_cast %5 : vector<1x256xi1> to vector<1x256xi1>
    %445 = vector.broadcast %444 : vector<1x256xi1> to vector<2x256xi1>
    %446 = arith.select %445, %442, %443 : vector<2x256xi1>, vector<2x256xf32>
    %447 = arith.truncf %439 : vector<2x64xf32> to vector<2x64xbf16>
    %cst_56 = arith.constant dense<0.000000e+00> : vector<2x256xf32>
    %448 = tpu.matmul %447, %295, %cst_56 {dimension_numbers = #tpu.dot_dimension_numbers<[1], [0], [0], [1], [0, 0, 1, 1], [], []>} : vector<2x64xbf16>, vector<64x256xbf16>, vector<2x256xf32> -> vector<2x256xf32>
    %449 = arith.addf %446, %448 : vector<2x256xf32>
    %450 = vector.extract_strided_slice %449 {offsets = [0, 0], sizes = [2, 192], strides = [1, 1]} : vector<2x256xf32> to vector<2x192xf32>
    %451 = arith.negf %450 : vector<2x192xf32>
    %452 = math.exp %451 : vector<2x192xf32>
    %cst_57 = arith.constant 1.000000e+00 : f32
    %453 = vector.broadcast %cst_57 : f32 to vector<2x192xf32>
    %454 = arith.addf %453, %452 : vector<2x192xf32>
    %455 = arith.divf %453, %454 : vector<2x192xf32>
    %456 = vector.extract_strided_slice %449 {offsets = [0, 192], sizes = [2, 64], strides = [1, 1]} : vector<2x256xf32> to vector<2x64xf32>
    %457 = math.tanh %456 : vector<2x64xf32>
    %458 = vector.extract_strided_slice %455 {offsets = [0, 0], sizes = [2, 64], strides = [1, 1]} : vector<2x192xf32> to vector<2x64xf32>
    %459 = vector.extract_strided_slice %455 {offsets = [0, 64], sizes = [2, 64], strides = [1, 1]} : vector<2x192xf32> to vector<2x64xf32>
    %460 = vector.extract_strided_slice %455 {offsets = [0, 128], sizes = [2, 64], strides = [1, 1]} : vector<2x192xf32> to vector<2x64xf32>
    %461 = arith.mulf %459, %438 : vector<2x64xf32>
    %462 = arith.mulf %458, %457 : vector<2x64xf32>
    %463 = arith.addf %461, %462 : vector<2x64xf32>
    %464 = math.tanh %463 : vector<2x64xf32>
    %465 = arith.mulf %460, %464 : vector<2x64xf32>
    %466 = arith.select %44, %463, %438 : vector<2x64xi1>, vector<2x64xf32>
    %467 = arith.select %44, %465, %439 : vector<2x64xi1>, vector<2x64xf32>
    %468 = vector.extract_strided_slice %467 {offsets = [0, 0], sizes = [2, 32], strides = [1, 1]} : vector<2x64xf32> to vector<2x32xf32>
    %469 = vector.extract_strided_slice %467 {offsets = [0, 32], sizes = [2, 32], strides = [1, 1]} : vector<2x64xf32> to vector<2x32xf32>
    %470 = vector.extract_strided_slice %299 {offsets = [12, 0], sizes = [2, 256], strides = [1, 1]} : vector<16x256xf32> to vector<2x256xf32>
    %471 = vector.extract_strided_slice %299 {offsets = [2, 0], sizes = [2, 256], strides = [1, 1]} : vector<16x256xf32> to vector<2x256xf32>
    %472 = vector.shape_cast %5 : vector<1x256xi1> to vector<1x256xi1>
    %473 = vector.broadcast %472 : vector<1x256xi1> to vector<2x256xi1>
    %474 = arith.select %473, %470, %471 : vector<2x256xi1>, vector<2x256xf32>
    %475 = arith.truncf %467 : vector<2x64xf32> to vector<2x64xbf16>
    %cst_58 = arith.constant dense<0.000000e+00> : vector<2x256xf32>
    %476 = tpu.matmul %475, %295, %cst_58 {dimension_numbers = #tpu.dot_dimension_numbers<[1], [0], [0], [1], [0, 0, 1, 1], [], []>} : vector<2x64xbf16>, vector<64x256xbf16>, vector<2x256xf32> -> vector<2x256xf32>
    %477 = arith.addf %474, %476 : vector<2x256xf32>
    %478 = vector.extract_strided_slice %477 {offsets = [0, 0], sizes = [2, 192], strides = [1, 1]} : vector<2x256xf32> to vector<2x192xf32>
    %479 = arith.negf %478 : vector<2x192xf32>
    %480 = math.exp %479 : vector<2x192xf32>
    %cst_59 = arith.constant 1.000000e+00 : f32
    %481 = vector.broadcast %cst_59 : f32 to vector<2x192xf32>
    %482 = arith.addf %481, %480 : vector<2x192xf32>
    %483 = arith.divf %481, %482 : vector<2x192xf32>
    %484 = vector.extract_strided_slice %477 {offsets = [0, 192], sizes = [2, 64], strides = [1, 1]} : vector<2x256xf32> to vector<2x64xf32>
    %485 = math.tanh %484 : vector<2x64xf32>
    %486 = vector.extract_strided_slice %483 {offsets = [0, 0], sizes = [2, 64], strides = [1, 1]} : vector<2x192xf32> to vector<2x64xf32>
    %487 = vector.extract_strided_slice %483 {offsets = [0, 64], sizes = [2, 64], strides = [1, 1]} : vector<2x192xf32> to vector<2x64xf32>
    %488 = vector.extract_strided_slice %483 {offsets = [0, 128], sizes = [2, 64], strides = [1, 1]} : vector<2x192xf32> to vector<2x64xf32>
    %489 = arith.mulf %487, %466 : vector<2x64xf32>
    %490 = arith.mulf %486, %485 : vector<2x64xf32>
    %491 = arith.addf %489, %490 : vector<2x64xf32>
    %492 = math.tanh %491 : vector<2x64xf32>
    %493 = arith.mulf %488, %492 : vector<2x64xf32>
    %494 = arith.select %50, %491, %466 : vector<2x64xi1>, vector<2x64xf32>
    %495 = arith.select %50, %493, %467 : vector<2x64xi1>, vector<2x64xf32>
    %496 = vector.extract_strided_slice %495 {offsets = [0, 0], sizes = [2, 32], strides = [1, 1]} : vector<2x64xf32> to vector<2x32xf32>
    %497 = vector.extract_strided_slice %495 {offsets = [0, 32], sizes = [2, 32], strides = [1, 1]} : vector<2x64xf32> to vector<2x32xf32>
    %498 = vector.extract_strided_slice %299 {offsets = [14, 0], sizes = [2, 256], strides = [1, 1]} : vector<16x256xf32> to vector<2x256xf32>
    %499 = vector.extract_strided_slice %299 {offsets = [0, 0], sizes = [2, 256], strides = [1, 1]} : vector<16x256xf32> to vector<2x256xf32>
    %500 = vector.shape_cast %5 : vector<1x256xi1> to vector<1x256xi1>
    %501 = vector.broadcast %500 : vector<1x256xi1> to vector<2x256xi1>
    %502 = arith.select %501, %498, %499 : vector<2x256xi1>, vector<2x256xf32>
    %503 = arith.truncf %495 : vector<2x64xf32> to vector<2x64xbf16>
    %cst_60 = arith.constant dense<0.000000e+00> : vector<2x256xf32>
    %504 = tpu.matmul %503, %295, %cst_60 {dimension_numbers = #tpu.dot_dimension_numbers<[1], [0], [0], [1], [0, 0, 1, 1], [], []>} : vector<2x64xbf16>, vector<64x256xbf16>, vector<2x256xf32> -> vector<2x256xf32>
    %505 = arith.addf %502, %504 : vector<2x256xf32>
    %506 = vector.extract_strided_slice %505 {offsets = [0, 0], sizes = [2, 192], strides = [1, 1]} : vector<2x256xf32> to vector<2x192xf32>
    %507 = arith.negf %506 : vector<2x192xf32>
    %508 = math.exp %507 : vector<2x192xf32>
    %cst_61 = arith.constant 1.000000e+00 : f32
    %509 = vector.broadcast %cst_61 : f32 to vector<2x192xf32>
    %510 = arith.addf %509, %508 : vector<2x192xf32>
    %511 = arith.divf %509, %510 : vector<2x192xf32>
    %512 = vector.extract_strided_slice %505 {offsets = [0, 192], sizes = [2, 64], strides = [1, 1]} : vector<2x256xf32> to vector<2x64xf32>
    %513 = math.tanh %512 : vector<2x64xf32>
    %514 = vector.extract_strided_slice %511 {offsets = [0, 0], sizes = [2, 64], strides = [1, 1]} : vector<2x192xf32> to vector<2x64xf32>
    %515 = vector.extract_strided_slice %511 {offsets = [0, 64], sizes = [2, 64], strides = [1, 1]} : vector<2x192xf32> to vector<2x64xf32>
    %516 = vector.extract_strided_slice %511 {offsets = [0, 128], sizes = [2, 64], strides = [1, 1]} : vector<2x192xf32> to vector<2x64xf32>
    %517 = arith.mulf %515, %494 : vector<2x64xf32>
    %518 = arith.mulf %514, %513 : vector<2x64xf32>
    %519 = arith.addf %517, %518 : vector<2x64xf32>
    %520 = math.tanh %519 : vector<2x64xf32>
    %521 = arith.mulf %516, %520 : vector<2x64xf32>
    %522 = arith.select %56, %521, %495 : vector<2x64xi1>, vector<2x64xf32>
    %523 = vector.extract_strided_slice %522 {offsets = [0, 0], sizes = [2, 32], strides = [1, 1]} : vector<2x64xf32> to vector<2x32xf32>
    %524 = vector.extract_strided_slice %522 {offsets = [0, 32], sizes = [2, 32], strides = [1, 1]} : vector<2x64xf32> to vector<2x32xf32>
    %525 = tpu.concatenate %328, %356, %384, %412, %440, %468, %496, %523 in 0 : vector<2x32xf32>, vector<2x32xf32>, vector<2x32xf32>, vector<2x32xf32>, vector<2x32xf32>, vector<2x32xf32>, vector<2x32xf32>, vector<2x32xf32> -> vector<16x32xf32>
    %526 = tpu.concatenate %524, %497, %469, %441, %413, %385, %357, %329 in 0 : vector<2x32xf32>, vector<2x32xf32>, vector<2x32xf32>, vector<2x32xf32>, vector<2x32xf32>, vector<2x32xf32>, vector<2x32xf32>, vector<2x32xf32> -> vector<16x32xf32>
    %527 = tpu.concatenate %525, %526 in 1 : vector<16x32xf32>, vector<16x32xf32> -> vector<16x64xf32>
    %528 = arith.truncf %527 : vector<16x64xf32> to vector<16x64xbf16>
    %c0_62 = arith.constant 0 : index
    %c0_63 = arith.constant 0 : index
    %529 = vector.load %arg8[%c0_62, %c0_63] : memref<64x256xbf16, #tpu.memory_space<vmem>>, vector<64x256xbf16>
    %c0_64 = arith.constant 0 : index
    %c0_65 = arith.constant 0 : index
    %530 = vector.load %arg9[%c0_64, %c0_65] : memref<64x256xbf16, #tpu.memory_space<vmem>>, vector<64x256xbf16>
    %c0_66 = arith.constant 0 : index
    %c0_67 = arith.constant 0 : index
    %531 = vector.load %arg10[%c0_66, %c0_67] : memref<1x256xf32, #tpu.memory_space<vmem>>, vector<1x256xf32>
    %cst_68 = arith.constant dense<0.000000e+00> : vector<16x256xf32>
    %532 = tpu.matmul %528, %529, %cst_68 {dimension_numbers = #tpu.dot_dimension_numbers<[1], [0], [0], [1], [0, 0, 1, 1], [], []>} : vector<16x64xbf16>, vector<64x256xbf16>, vector<16x256xf32> -> vector<16x256xf32>
    %533 = vector.broadcast %531 : vector<1x256xf32> to vector<16x256xf32>
    %534 = arith.addf %532, %533 : vector<16x256xf32>
    %cst_69 = arith.constant 0.000000e+00 : f32
    %535 = vector.broadcast %cst_69 : f32 to vector<2x64xf32>
    %cst_70 = arith.constant 0.000000e+00 : f32
    %536 = vector.broadcast %cst_70 : f32 to vector<2x64xf32>
    %537 = vector.extract_strided_slice %534 {offsets = [0, 0], sizes = [2, 256], strides = [1, 1]} : vector<16x256xf32> to vector<2x256xf32>
    %538 = vector.extract_strided_slice %534 {offsets = [14, 0], sizes = [2, 256], strides = [1, 1]} : vector<16x256xf32> to vector<2x256xf32>
    %539 = vector.shape_cast %5 : vector<1x256xi1> to vector<1x256xi1>
    %540 = vector.broadcast %539 : vector<1x256xi1> to vector<2x256xi1>
    %541 = arith.select %540, %537, %538 : vector<2x256xi1>, vector<2x256xf32>
    %542 = arith.truncf %535 : vector<2x64xf32> to vector<2x64xbf16>
    %cst_71 = arith.constant dense<0.000000e+00> : vector<2x256xf32>
    %543 = tpu.matmul %542, %530, %cst_71 {dimension_numbers = #tpu.dot_dimension_numbers<[1], [0], [0], [1], [0, 0, 1, 1], [], []>} : vector<2x64xbf16>, vector<64x256xbf16>, vector<2x256xf32> -> vector<2x256xf32>
    %544 = arith.addf %541, %543 : vector<2x256xf32>
    %545 = vector.extract_strided_slice %544 {offsets = [0, 0], sizes = [2, 192], strides = [1, 1]} : vector<2x256xf32> to vector<2x192xf32>
    %546 = arith.negf %545 : vector<2x192xf32>
    %547 = math.exp %546 : vector<2x192xf32>
    %cst_72 = arith.constant 1.000000e+00 : f32
    %548 = vector.broadcast %cst_72 : f32 to vector<2x192xf32>
    %549 = arith.addf %548, %547 : vector<2x192xf32>
    %550 = arith.divf %548, %549 : vector<2x192xf32>
    %551 = vector.extract_strided_slice %544 {offsets = [0, 192], sizes = [2, 64], strides = [1, 1]} : vector<2x256xf32> to vector<2x64xf32>
    %552 = math.tanh %551 : vector<2x64xf32>
    %553 = vector.extract_strided_slice %550 {offsets = [0, 0], sizes = [2, 64], strides = [1, 1]} : vector<2x192xf32> to vector<2x64xf32>
    %554 = vector.extract_strided_slice %550 {offsets = [0, 64], sizes = [2, 64], strides = [1, 1]} : vector<2x192xf32> to vector<2x64xf32>
    %555 = vector.extract_strided_slice %550 {offsets = [0, 128], sizes = [2, 64], strides = [1, 1]} : vector<2x192xf32> to vector<2x64xf32>
    %556 = arith.mulf %554, %536 : vector<2x64xf32>
    %557 = arith.mulf %553, %552 : vector<2x64xf32>
    %558 = arith.addf %556, %557 : vector<2x64xf32>
    %559 = math.tanh %558 : vector<2x64xf32>
    %560 = arith.mulf %555, %559 : vector<2x64xf32>
    %561 = arith.select %14, %558, %536 : vector<2x64xi1>, vector<2x64xf32>
    %562 = arith.select %14, %560, %535 : vector<2x64xi1>, vector<2x64xf32>
    %563 = vector.extract_strided_slice %534 {offsets = [2, 0], sizes = [2, 256], strides = [1, 1]} : vector<16x256xf32> to vector<2x256xf32>
    %564 = vector.extract_strided_slice %534 {offsets = [12, 0], sizes = [2, 256], strides = [1, 1]} : vector<16x256xf32> to vector<2x256xf32>
    %565 = vector.shape_cast %5 : vector<1x256xi1> to vector<1x256xi1>
    %566 = vector.broadcast %565 : vector<1x256xi1> to vector<2x256xi1>
    %567 = arith.select %566, %563, %564 : vector<2x256xi1>, vector<2x256xf32>
    %568 = arith.truncf %562 : vector<2x64xf32> to vector<2x64xbf16>
    %cst_73 = arith.constant dense<0.000000e+00> : vector<2x256xf32>
    %569 = tpu.matmul %568, %530, %cst_73 {dimension_numbers = #tpu.dot_dimension_numbers<[1], [0], [0], [1], [0, 0, 1, 1], [], []>} : vector<2x64xbf16>, vector<64x256xbf16>, vector<2x256xf32> -> vector<2x256xf32>
    %570 = arith.addf %567, %569 : vector<2x256xf32>
    %571 = vector.extract_strided_slice %570 {offsets = [0, 0], sizes = [2, 192], strides = [1, 1]} : vector<2x256xf32> to vector<2x192xf32>
    %572 = arith.negf %571 : vector<2x192xf32>
    %573 = math.exp %572 : vector<2x192xf32>
    %cst_74 = arith.constant 1.000000e+00 : f32
    %574 = vector.broadcast %cst_74 : f32 to vector<2x192xf32>
    %575 = arith.addf %574, %573 : vector<2x192xf32>
    %576 = arith.divf %574, %575 : vector<2x192xf32>
    %577 = vector.extract_strided_slice %570 {offsets = [0, 192], sizes = [2, 64], strides = [1, 1]} : vector<2x256xf32> to vector<2x64xf32>
    %578 = math.tanh %577 : vector<2x64xf32>
    %579 = vector.extract_strided_slice %576 {offsets = [0, 0], sizes = [2, 64], strides = [1, 1]} : vector<2x192xf32> to vector<2x64xf32>
    %580 = vector.extract_strided_slice %576 {offsets = [0, 64], sizes = [2, 64], strides = [1, 1]} : vector<2x192xf32> to vector<2x64xf32>
    %581 = vector.extract_strided_slice %576 {offsets = [0, 128], sizes = [2, 64], strides = [1, 1]} : vector<2x192xf32> to vector<2x64xf32>
    %582 = arith.mulf %580, %561 : vector<2x64xf32>
    %583 = arith.mulf %579, %578 : vector<2x64xf32>
    %584 = arith.addf %582, %583 : vector<2x64xf32>
    %585 = math.tanh %584 : vector<2x64xf32>
    %586 = arith.mulf %581, %585 : vector<2x64xf32>
    %587 = arith.select %20, %584, %561 : vector<2x64xi1>, vector<2x64xf32>
    %588 = arith.select %20, %586, %562 : vector<2x64xi1>, vector<2x64xf32>
    %589 = vector.extract_strided_slice %534 {offsets = [4, 0], sizes = [2, 256], strides = [1, 1]} : vector<16x256xf32> to vector<2x256xf32>
    %590 = vector.extract_strided_slice %534 {offsets = [10, 0], sizes = [2, 256], strides = [1, 1]} : vector<16x256xf32> to vector<2x256xf32>
    %591 = vector.shape_cast %5 : vector<1x256xi1> to vector<1x256xi1>
    %592 = vector.broadcast %591 : vector<1x256xi1> to vector<2x256xi1>
    %593 = arith.select %592, %589, %590 : vector<2x256xi1>, vector<2x256xf32>
    %594 = arith.truncf %588 : vector<2x64xf32> to vector<2x64xbf16>
    %cst_75 = arith.constant dense<0.000000e+00> : vector<2x256xf32>
    %595 = tpu.matmul %594, %530, %cst_75 {dimension_numbers = #tpu.dot_dimension_numbers<[1], [0], [0], [1], [0, 0, 1, 1], [], []>} : vector<2x64xbf16>, vector<64x256xbf16>, vector<2x256xf32> -> vector<2x256xf32>
    %596 = arith.addf %593, %595 : vector<2x256xf32>
    %597 = vector.extract_strided_slice %596 {offsets = [0, 0], sizes = [2, 192], strides = [1, 1]} : vector<2x256xf32> to vector<2x192xf32>
    %598 = arith.negf %597 : vector<2x192xf32>
    %599 = math.exp %598 : vector<2x192xf32>
    %cst_76 = arith.constant 1.000000e+00 : f32
    %600 = vector.broadcast %cst_76 : f32 to vector<2x192xf32>
    %601 = arith.addf %600, %599 : vector<2x192xf32>
    %602 = arith.divf %600, %601 : vector<2x192xf32>
    %603 = vector.extract_strided_slice %596 {offsets = [0, 192], sizes = [2, 64], strides = [1, 1]} : vector<2x256xf32> to vector<2x64xf32>
    %604 = math.tanh %603 : vector<2x64xf32>
    %605 = vector.extract_strided_slice %602 {offsets = [0, 0], sizes = [2, 64], strides = [1, 1]} : vector<2x192xf32> to vector<2x64xf32>
    %606 = vector.extract_strided_slice %602 {offsets = [0, 64], sizes = [2, 64], strides = [1, 1]} : vector<2x192xf32> to vector<2x64xf32>
    %607 = vector.extract_strided_slice %602 {offsets = [0, 128], sizes = [2, 64], strides = [1, 1]} : vector<2x192xf32> to vector<2x64xf32>
    %608 = arith.mulf %606, %587 : vector<2x64xf32>
    %609 = arith.mulf %605, %604 : vector<2x64xf32>
    %610 = arith.addf %608, %609 : vector<2x64xf32>
    %611 = math.tanh %610 : vector<2x64xf32>
    %612 = arith.mulf %607, %611 : vector<2x64xf32>
    %613 = arith.select %26, %610, %587 : vector<2x64xi1>, vector<2x64xf32>
    %614 = arith.select %26, %612, %588 : vector<2x64xi1>, vector<2x64xf32>
    %615 = vector.extract_strided_slice %534 {offsets = [6, 0], sizes = [2, 256], strides = [1, 1]} : vector<16x256xf32> to vector<2x256xf32>
    %616 = vector.extract_strided_slice %534 {offsets = [8, 0], sizes = [2, 256], strides = [1, 1]} : vector<16x256xf32> to vector<2x256xf32>
    %617 = vector.shape_cast %5 : vector<1x256xi1> to vector<1x256xi1>
    %618 = vector.broadcast %617 : vector<1x256xi1> to vector<2x256xi1>
    %619 = arith.select %618, %615, %616 : vector<2x256xi1>, vector<2x256xf32>
    %620 = arith.truncf %614 : vector<2x64xf32> to vector<2x64xbf16>
    %cst_77 = arith.constant dense<0.000000e+00> : vector<2x256xf32>
    %621 = tpu.matmul %620, %530, %cst_77 {dimension_numbers = #tpu.dot_dimension_numbers<[1], [0], [0], [1], [0, 0, 1, 1], [], []>} : vector<2x64xbf16>, vector<64x256xbf16>, vector<2x256xf32> -> vector<2x256xf32>
    %622 = arith.addf %619, %621 : vector<2x256xf32>
    %623 = vector.extract_strided_slice %622 {offsets = [0, 0], sizes = [2, 192], strides = [1, 1]} : vector<2x256xf32> to vector<2x192xf32>
    %624 = arith.negf %623 : vector<2x192xf32>
    %625 = math.exp %624 : vector<2x192xf32>
    %cst_78 = arith.constant 1.000000e+00 : f32
    %626 = vector.broadcast %cst_78 : f32 to vector<2x192xf32>
    %627 = arith.addf %626, %625 : vector<2x192xf32>
    %628 = arith.divf %626, %627 : vector<2x192xf32>
    %629 = vector.extract_strided_slice %622 {offsets = [0, 192], sizes = [2, 64], strides = [1, 1]} : vector<2x256xf32> to vector<2x64xf32>
    %630 = math.tanh %629 : vector<2x64xf32>
    %631 = vector.extract_strided_slice %628 {offsets = [0, 0], sizes = [2, 64], strides = [1, 1]} : vector<2x192xf32> to vector<2x64xf32>
    %632 = vector.extract_strided_slice %628 {offsets = [0, 64], sizes = [2, 64], strides = [1, 1]} : vector<2x192xf32> to vector<2x64xf32>
    %633 = vector.extract_strided_slice %628 {offsets = [0, 128], sizes = [2, 64], strides = [1, 1]} : vector<2x192xf32> to vector<2x64xf32>
    %634 = arith.mulf %632, %613 : vector<2x64xf32>
    %635 = arith.mulf %631, %630 : vector<2x64xf32>
    %636 = arith.addf %634, %635 : vector<2x64xf32>
    %637 = math.tanh %636 : vector<2x64xf32>
    %638 = arith.mulf %633, %637 : vector<2x64xf32>
    %639 = arith.select %32, %636, %613 : vector<2x64xi1>, vector<2x64xf32>
    %640 = arith.select %32, %638, %614 : vector<2x64xi1>, vector<2x64xf32>
    %641 = vector.extract_strided_slice %534 {offsets = [8, 0], sizes = [2, 256], strides = [1, 1]} : vector<16x256xf32> to vector<2x256xf32>
    %642 = vector.extract_strided_slice %534 {offsets = [6, 0], sizes = [2, 256], strides = [1, 1]} : vector<16x256xf32> to vector<2x256xf32>
    %643 = vector.shape_cast %5 : vector<1x256xi1> to vector<1x256xi1>
    %644 = vector.broadcast %643 : vector<1x256xi1> to vector<2x256xi1>
    %645 = arith.select %644, %641, %642 : vector<2x256xi1>, vector<2x256xf32>
    %646 = arith.truncf %640 : vector<2x64xf32> to vector<2x64xbf16>
    %cst_79 = arith.constant dense<0.000000e+00> : vector<2x256xf32>
    %647 = tpu.matmul %646, %530, %cst_79 {dimension_numbers = #tpu.dot_dimension_numbers<[1], [0], [0], [1], [0, 0, 1, 1], [], []>} : vector<2x64xbf16>, vector<64x256xbf16>, vector<2x256xf32> -> vector<2x256xf32>
    %648 = arith.addf %645, %647 : vector<2x256xf32>
    %649 = vector.extract_strided_slice %648 {offsets = [0, 0], sizes = [2, 192], strides = [1, 1]} : vector<2x256xf32> to vector<2x192xf32>
    %650 = arith.negf %649 : vector<2x192xf32>
    %651 = math.exp %650 : vector<2x192xf32>
    %cst_80 = arith.constant 1.000000e+00 : f32
    %652 = vector.broadcast %cst_80 : f32 to vector<2x192xf32>
    %653 = arith.addf %652, %651 : vector<2x192xf32>
    %654 = arith.divf %652, %653 : vector<2x192xf32>
    %655 = vector.extract_strided_slice %648 {offsets = [0, 192], sizes = [2, 64], strides = [1, 1]} : vector<2x256xf32> to vector<2x64xf32>
    %656 = math.tanh %655 : vector<2x64xf32>
    %657 = vector.extract_strided_slice %654 {offsets = [0, 0], sizes = [2, 64], strides = [1, 1]} : vector<2x192xf32> to vector<2x64xf32>
    %658 = vector.extract_strided_slice %654 {offsets = [0, 64], sizes = [2, 64], strides = [1, 1]} : vector<2x192xf32> to vector<2x64xf32>
    %659 = vector.extract_strided_slice %654 {offsets = [0, 128], sizes = [2, 64], strides = [1, 1]} : vector<2x192xf32> to vector<2x64xf32>
    %660 = arith.mulf %658, %639 : vector<2x64xf32>
    %661 = arith.mulf %657, %656 : vector<2x64xf32>
    %662 = arith.addf %660, %661 : vector<2x64xf32>
    %663 = math.tanh %662 : vector<2x64xf32>
    %664 = arith.mulf %659, %663 : vector<2x64xf32>
    %665 = arith.select %38, %662, %639 : vector<2x64xi1>, vector<2x64xf32>
    %666 = arith.select %38, %664, %640 : vector<2x64xi1>, vector<2x64xf32>
    %667 = vector.extract_strided_slice %534 {offsets = [10, 0], sizes = [2, 256], strides = [1, 1]} : vector<16x256xf32> to vector<2x256xf32>
    %668 = vector.extract_strided_slice %534 {offsets = [4, 0], sizes = [2, 256], strides = [1, 1]} : vector<16x256xf32> to vector<2x256xf32>
    %669 = vector.shape_cast %5 : vector<1x256xi1> to vector<1x256xi1>
    %670 = vector.broadcast %669 : vector<1x256xi1> to vector<2x256xi1>
    %671 = arith.select %670, %667, %668 : vector<2x256xi1>, vector<2x256xf32>
    %672 = arith.truncf %666 : vector<2x64xf32> to vector<2x64xbf16>
    %cst_81 = arith.constant dense<0.000000e+00> : vector<2x256xf32>
    %673 = tpu.matmul %672, %530, %cst_81 {dimension_numbers = #tpu.dot_dimension_numbers<[1], [0], [0], [1], [0, 0, 1, 1], [], []>} : vector<2x64xbf16>, vector<64x256xbf16>, vector<2x256xf32> -> vector<2x256xf32>
    %674 = arith.addf %671, %673 : vector<2x256xf32>
    %675 = vector.extract_strided_slice %674 {offsets = [0, 0], sizes = [2, 192], strides = [1, 1]} : vector<2x256xf32> to vector<2x192xf32>
    %676 = arith.negf %675 : vector<2x192xf32>
    %677 = math.exp %676 : vector<2x192xf32>
    %cst_82 = arith.constant 1.000000e+00 : f32
    %678 = vector.broadcast %cst_82 : f32 to vector<2x192xf32>
    %679 = arith.addf %678, %677 : vector<2x192xf32>
    %680 = arith.divf %678, %679 : vector<2x192xf32>
    %681 = vector.extract_strided_slice %674 {offsets = [0, 192], sizes = [2, 64], strides = [1, 1]} : vector<2x256xf32> to vector<2x64xf32>
    %682 = math.tanh %681 : vector<2x64xf32>
    %683 = vector.extract_strided_slice %680 {offsets = [0, 0], sizes = [2, 64], strides = [1, 1]} : vector<2x192xf32> to vector<2x64xf32>
    %684 = vector.extract_strided_slice %680 {offsets = [0, 64], sizes = [2, 64], strides = [1, 1]} : vector<2x192xf32> to vector<2x64xf32>
    %685 = vector.extract_strided_slice %680 {offsets = [0, 128], sizes = [2, 64], strides = [1, 1]} : vector<2x192xf32> to vector<2x64xf32>
    %686 = arith.mulf %684, %665 : vector<2x64xf32>
    %687 = arith.mulf %683, %682 : vector<2x64xf32>
    %688 = arith.addf %686, %687 : vector<2x64xf32>
    %689 = math.tanh %688 : vector<2x64xf32>
    %690 = arith.mulf %685, %689 : vector<2x64xf32>
    %691 = arith.select %44, %688, %665 : vector<2x64xi1>, vector<2x64xf32>
    %692 = arith.select %44, %690, %666 : vector<2x64xi1>, vector<2x64xf32>
    %693 = vector.extract_strided_slice %534 {offsets = [12, 0], sizes = [2, 256], strides = [1, 1]} : vector<16x256xf32> to vector<2x256xf32>
    %694 = vector.extract_strided_slice %534 {offsets = [2, 0], sizes = [2, 256], strides = [1, 1]} : vector<16x256xf32> to vector<2x256xf32>
    %695 = vector.shape_cast %5 : vector<1x256xi1> to vector<1x256xi1>
    %696 = vector.broadcast %695 : vector<1x256xi1> to vector<2x256xi1>
    %697 = arith.select %696, %693, %694 : vector<2x256xi1>, vector<2x256xf32>
    %698 = arith.truncf %692 : vector<2x64xf32> to vector<2x64xbf16>
    %cst_83 = arith.constant dense<0.000000e+00> : vector<2x256xf32>
    %699 = tpu.matmul %698, %530, %cst_83 {dimension_numbers = #tpu.dot_dimension_numbers<[1], [0], [0], [1], [0, 0, 1, 1], [], []>} : vector<2x64xbf16>, vector<64x256xbf16>, vector<2x256xf32> -> vector<2x256xf32>
    %700 = arith.addf %697, %699 : vector<2x256xf32>
    %701 = vector.extract_strided_slice %700 {offsets = [0, 0], sizes = [2, 192], strides = [1, 1]} : vector<2x256xf32> to vector<2x192xf32>
    %702 = arith.negf %701 : vector<2x192xf32>
    %703 = math.exp %702 : vector<2x192xf32>
    %cst_84 = arith.constant 1.000000e+00 : f32
    %704 = vector.broadcast %cst_84 : f32 to vector<2x192xf32>
    %705 = arith.addf %704, %703 : vector<2x192xf32>
    %706 = arith.divf %704, %705 : vector<2x192xf32>
    %707 = vector.extract_strided_slice %700 {offsets = [0, 192], sizes = [2, 64], strides = [1, 1]} : vector<2x256xf32> to vector<2x64xf32>
    %708 = math.tanh %707 : vector<2x64xf32>
    %709 = vector.extract_strided_slice %706 {offsets = [0, 0], sizes = [2, 64], strides = [1, 1]} : vector<2x192xf32> to vector<2x64xf32>
    %710 = vector.extract_strided_slice %706 {offsets = [0, 64], sizes = [2, 64], strides = [1, 1]} : vector<2x192xf32> to vector<2x64xf32>
    %711 = vector.extract_strided_slice %706 {offsets = [0, 128], sizes = [2, 64], strides = [1, 1]} : vector<2x192xf32> to vector<2x64xf32>
    %712 = arith.mulf %710, %691 : vector<2x64xf32>
    %713 = arith.mulf %709, %708 : vector<2x64xf32>
    %714 = arith.addf %712, %713 : vector<2x64xf32>
    %715 = math.tanh %714 : vector<2x64xf32>
    %716 = arith.mulf %711, %715 : vector<2x64xf32>
    %717 = arith.select %50, %714, %691 : vector<2x64xi1>, vector<2x64xf32>
    %718 = arith.select %50, %716, %692 : vector<2x64xi1>, vector<2x64xf32>
    %719 = vector.extract_strided_slice %534 {offsets = [14, 0], sizes = [2, 256], strides = [1, 1]} : vector<16x256xf32> to vector<2x256xf32>
    %720 = vector.extract_strided_slice %534 {offsets = [0, 0], sizes = [2, 256], strides = [1, 1]} : vector<16x256xf32> to vector<2x256xf32>
    %721 = vector.shape_cast %5 : vector<1x256xi1> to vector<1x256xi1>
    %722 = vector.broadcast %721 : vector<1x256xi1> to vector<2x256xi1>
    %723 = arith.select %722, %719, %720 : vector<2x256xi1>, vector<2x256xf32>
    %724 = arith.truncf %718 : vector<2x64xf32> to vector<2x64xbf16>
    %cst_85 = arith.constant dense<0.000000e+00> : vector<2x256xf32>
    %725 = tpu.matmul %724, %530, %cst_85 {dimension_numbers = #tpu.dot_dimension_numbers<[1], [0], [0], [1], [0, 0, 1, 1], [], []>} : vector<2x64xbf16>, vector<64x256xbf16>, vector<2x256xf32> -> vector<2x256xf32>
    %726 = arith.addf %723, %725 : vector<2x256xf32>
    %727 = vector.extract_strided_slice %726 {offsets = [0, 0], sizes = [2, 192], strides = [1, 1]} : vector<2x256xf32> to vector<2x192xf32>
    %728 = arith.negf %727 : vector<2x192xf32>
    %729 = math.exp %728 : vector<2x192xf32>
    %cst_86 = arith.constant 1.000000e+00 : f32
    %730 = vector.broadcast %cst_86 : f32 to vector<2x192xf32>
    %731 = arith.addf %730, %729 : vector<2x192xf32>
    %732 = arith.divf %730, %731 : vector<2x192xf32>
    %733 = vector.extract_strided_slice %726 {offsets = [0, 192], sizes = [2, 64], strides = [1, 1]} : vector<2x256xf32> to vector<2x64xf32>
    %734 = math.tanh %733 : vector<2x64xf32>
    %735 = vector.extract_strided_slice %732 {offsets = [0, 0], sizes = [2, 64], strides = [1, 1]} : vector<2x192xf32> to vector<2x64xf32>
    %736 = vector.extract_strided_slice %732 {offsets = [0, 64], sizes = [2, 64], strides = [1, 1]} : vector<2x192xf32> to vector<2x64xf32>
    %737 = vector.extract_strided_slice %732 {offsets = [0, 128], sizes = [2, 64], strides = [1, 1]} : vector<2x192xf32> to vector<2x64xf32>
    %738 = arith.mulf %736, %717 : vector<2x64xf32>
    %739 = arith.mulf %735, %734 : vector<2x64xf32>
    %740 = arith.addf %738, %739 : vector<2x64xf32>
    %741 = math.tanh %740 : vector<2x64xf32>
    %742 = arith.mulf %737, %741 : vector<2x64xf32>
    %743 = arith.select %56, %742, %718 : vector<2x64xi1>, vector<2x64xf32>
    %c0_87 = arith.constant 0 : index
    %c0_88 = arith.constant 0 : index
    %744 = vector.load %arg11[%c0_87, %c0_88] : memref<64x16xf32, #tpu.memory_space<vmem>>, vector<64x16xf32>
    %cst_89 = arith.constant dense<0.000000e+00> : vector<2x16xf32>
    %745 = tpu.matmul %743, %744, %cst_89 {dimension_numbers = #tpu.dot_dimension_numbers<[1], [0], [0], [1], [0, 0, 1, 1], [], []>} : vector<2x64xf32>, vector<64x16xf32>, vector<2x16xf32> -> vector<2x16xf32>
    %c0_90 = arith.constant 0 : index
    %c0_91 = arith.constant 0 : index
    %746 = vector.load %arg12[%c0_90, %c0_91] : memref<1x16xf32, #tpu.memory_space<vmem>>, vector<1x16xf32>
    %747 = vector.broadcast %746 : vector<1x16xf32> to vector<2x16xf32>
    %748 = arith.addf %745, %747 : vector<2x16xf32>
    %cst_92 = arith.constant 0.000000e+00 : f32
    %749 = vector.broadcast %cst_92 : f32 to vector<2x16xf32>
    %750 = arith.maximumf %748, %749 : vector<2x16xf32>
    %c0_93 = arith.constant 0 : index
    %c0_94 = arith.constant 0 : index
    %751 = vector.load %arg13[%c0_93, %c0_94] : memref<16x5xf32, #tpu.memory_space<vmem>>, vector<16x5xf32>
    %cst_95 = arith.constant dense<0.000000e+00> : vector<2x5xf32>
    %752 = tpu.matmul %750, %751, %cst_95 {dimension_numbers = #tpu.dot_dimension_numbers<[1], [0], [0], [1], [0, 0, 1, 1], [], []>} : vector<2x16xf32>, vector<16x5xf32>, vector<2x5xf32> -> vector<2x5xf32>
    %c0_96 = arith.constant 0 : index
    %c0_97 = arith.constant 0 : index
    %753 = vector.load %arg14[%c0_96, %c0_97] : memref<1x5xf32, #tpu.memory_space<vmem>>, vector<1x5xf32>
    %754 = vector.broadcast %753 : vector<1x5xf32> to vector<2x5xf32>
    %755 = arith.addf %752, %754 : vector<2x5xf32>
    %c0_98 = arith.constant 0 : index
    %c0_99 = arith.constant 0 : index
    %756 = vector.load %arg15[%c0_98, %c0_99] : memref<2x5xf32, #tpu.memory_space<vmem>>, vector<2x5xf32>
    tpu.vector_store %arg15[%c0_98, %c0_99], %755 {strides = array<i32>} : memref<2x5xf32, #tpu.memory_space<vmem>>, vector<2x5xf32>,
    return
  }
}

</mosaic_0001>

<llo_original>
// kernel: lstm_model_forward.1
$region0: #{lstm_model_forward.1}
  #allocation0 [shape = 'u32[]', space=smem, size = 0x4, offset = 0x4, fixed_abs, tag = 'smem constant byte address 0x4 - core index']
  #allocation1 [shape = 'u32[144,128]{1,0:T(1,128)}', space=vmem, size = 0x12000, scoped, tag = 'internal scratch']
  %s0 = inlined_call_operand.vmem [shape: f32[16,16], index: 0, kind: input, shape index: {}]
  %s1 = inlined_call_operand.vmem [shape: s32[2,1], index: 1, kind: input, shape index: {}]
  %s2 = inlined_call_operand.vmem [shape: bf16[16,256], index: 2, kind: input, shape index: {}]
  %s3 = inlined_call_operand.vmem [shape: bf16[64,256], index: 3, kind: input, shape index: {}]
  %s4 = inlined_call_operand.hbm [shape: f32[1,256], index: 4, kind: input, shape index: {}]
  %s5 = inlined_call_operand.vmem [shape: bf16[64,256], index: 5, kind: input, shape index: {}]
  %s6 = inlined_call_operand.hbm [shape: bf16[64,256], index: 6, kind: input, shape index: {}]
  %s7 = inlined_call_operand.hbm [shape: f32[1,256], index: 7, kind: input, shape index: {}]
  %s8 = inlined_call_operand.hbm [shape: bf16[64,256], index: 8, kind: input, shape index: {}]
  %s9 = inlined_call_operand.hbm [shape: bf16[64,256], index: 9, kind: input, shape index: {}]
  %s10 = inlined_call_operand.hbm [shape: f32[1,256], index: 10, kind: input, shape index: {}]
  %s11 = inlined_call_operand.vmem [shape: f32[64,16], index: 11, kind: input, shape index: {}]
  %s12 = inlined_call_operand.vmem [shape: f32[1,16], index: 12, kind: input, shape index: {}]
  %s13 = inlined_call_operand.vmem [shape: f32[16,5], index: 13, kind: input, shape index: {}]
  %s14 = inlined_call_operand.vmem [shape: f32[1,5], index: 14, kind: input, shape index: {}]
  %s15 = inlined_call_operand.hbm [shape: f32[2,5], index: 15, kind: output, shape index: {}]
  %s16 = sld [smem:[#allocation0]]
  $region94: #{lstm_model_forward.1} parent=0
    _
  %s18 = ssub.s32 1, %s16
  %s19 = scalar_select 0, %s18, %s16
  $region1: #{lstm_model_forward.1} parent=0
    #allocation2 [shape = 'u8[1024]{0}', space=vmem, size = 0x400, scoped, tag = 'input window, operand 4, single buffered']
    #allocation3 [shape = 's32[1]{0}', space=sflag, size = 0x4, scoped, tag = 'scoped memory for lstm_model_forward.1']
    #allocation4 [shape = 's32[1]{0}', space=sflag, size = 0x4, scoped, tag = 'scoped memory for lstm_model_forward.1']
    #allocation5 [shape = 'u8[32768]{0}', space=vmem, size = 0x8000, scoped, tag = 'input window, operand 6, single buffered']
    #allocation6 [shape = 's32[1]{0}', space=sflag, size = 0x4, scoped, tag = 'scoped memory for lstm_model_forward.1']
    #allocation7 [shape = 'u8[1024]{0}', space=vmem, size = 0x400, scoped, tag = 'input window, operand 7, single buffered']
    #allocation8 [shape = 'u8[32768]{0}', space=vmem, size = 0x8000, scoped, tag = 'input window, operand 8, single buffered']
    #allocation9 [shape = 's32[1]{0}', space=sflag, size = 0x4, scoped, tag = 'scoped memory for lstm_model_forward.1']
    #allocation10 [shape = 'u8[32768]{0}', space=vmem, size = 0x8000, scoped, tag = 'input window, operand 9, single buffered']
    #allocation11 [shape = 'u8[1024]{0}', space=vmem, size = 0x400, scoped, tag = 'input window, operand 10, single buffered']
    #allocation12 [shape = 's32[1]{0}', space=sflag, size = 0x4, scoped, tag = 'scoped memory for lstm_model_forward.1']
    #allocation13 [shape = 'u8[1024]{0}', space=vmem, size = 0x400, scoped, tag = 'output window, operand 0, single buffered']
    %20 = vsyncpa [#allocation3], 0
    %21 = vsyncpa [#allocation6], 0
    %22 = vsyncpa [#allocation9], 0
    %23 = vsyncpa [#allocation12], 0
    %24 = vsyncpa [#allocation4], 0
    // Predicated region
    $region2: #{lstm_model_forward.1} parent=1 // pred_check
      _
    $region3: #{lstm_model_forward.1} parent=1 // pred_check_branch
      %26 = sbr.rel (0) target = $region5
    $region4: #{lstm_model_forward.1} parent=1 // pred_region
      _
    $region5: #{lstm_model_forward.1} parent=1 // pred_fallthru
      _
    // Predicated region
    $region6: #{lstm_model_forward.1} parent=1 // pred_check
      _
    $region7: #{lstm_model_forward.1} parent=1 // pred_check_branch
      %28 = sbr.rel (0) target = $region9
    $region8: #{lstm_model_forward.1} parent=1 // pred_region
      _
    $region9: #{lstm_model_forward.1} parent=1 // pred_fallthru
      _
    // Predicated region
    $region10: #{lstm_model_forward.1} parent=1 // pred_check
      _
    $region11: #{lstm_model_forward.1} parent=1 // pred_check_branch
      %30 = sbr.rel (0) target = $region13
    $region12: #{lstm_model_forward.1} parent=1 // pred_region
      _
    $region13: #{lstm_model_forward.1} parent=1 // pred_fallthru
      _
    // Predicated region
    $region14: #{lstm_model_forward.1} parent=1 // pred_check
      _
    $region15: #{lstm_model_forward.1} parent=1 // pred_check_branch
      %32 = sbr.rel (0) target = $region17
    $region16: #{lstm_model_forward.1} parent=1 // pred_region
      _
    $region17: #{lstm_model_forward.1} parent=1 // pred_fallthru
      _
    // Predicated region
    $region18: #{lstm_model_forward.1} parent=1 // pred_check
      _
    $region19: #{lstm_model_forward.1} parent=1 // pred_check_branch
      %34 = sbr.rel (0) target = $region21
    $region20: #{lstm_model_forward.1} parent=1 // pred_region
      %s36 = ssub.s32 32, 32
      %37 = vsyncadd [#allocation3], %s36
      %s39 = sshll.u32 [#allocation2], 4
      %s40 = int_to_ptr.vmem [resolvable:$true] %s39
      %42 = dma.hbm_to_vmem [thread:$0]  %s4, 32, %s40, [#allocation3]
    $region21: #{lstm_model_forward.1} parent=1 // pred_fallthru
      _
    // Predicated region
    $region22: #{lstm_model_forward.1} parent=1 // pred_check
      _
    $region23: #{lstm_model_forward.1} parent=1 // pred_check_branch
      %44 = sbr.rel (0) target = $region25
    $region24: #{lstm_model_forward.1} parent=1 // pred_region
      _
    $region25: #{lstm_model_forward.1} parent=1 // pred_fallthru
      _
    // Predicated region
    $region26: #{lstm_model_forward.1} parent=1 // pred_check
      _
    $region27: #{lstm_model_forward.1} parent=1 // pred_check_branch
      %46 = sbr.rel (0) target = $region29
    $region28: #{lstm_model_forward.1} parent=1 // pred_region
      %s48 = ssub.s32 1024, 1024
      %49 = vsyncadd [#allocation6], %s48
      %s50 = sshll.u32 [#allocation5], 4
      %s51 = int_to_ptr.vmem [resolvable:$true] %s50
      %56 = dma.hbm_to_vmem [thread:$0]  %s6, 1024, %s51, [#allocation6], 128, 128, 8
    $region29: #{lstm_model_forward.1} parent=1 // pred_fallthru
      _
    // Predicated region
    $region30: #{lstm_model_forward.1} parent=1 // pred_check
      _
    $region31: #{lstm_model_forward.1} parent=1 // pred_check_branch
      %58 = sbr.rel (0) target = $region33
    $region32: #{lstm_model_forward.1} parent=1 // pred_region
      %s60 = ssub.s32 32, 32
      %61 = vsyncadd [#allocation6], %s60
      %s63 = sshll.u32 [#allocation7], 4
      %s64 = int_to_ptr.vmem [resolvable:$true] %s63
      %66 = dma.hbm_to_vmem [thread:$0]  %s7, 32, %s64, [#allocation6]
    $region33: #{lstm_model_forward.1} parent=1 // pred_fallthru
      _
    // Predicated region
    $region34: #{lstm_model_forward.1} parent=1 // pred_check
      _
    $region35: #{lstm_model_forward.1} parent=1 // pred_check_branch
      %68 = sbr.rel (0) target = $region37
    $region36: #{lstm_model_forward.1} parent=1 // pred_region
      %s70 = ssub.s32 1024, 1024
      %71 = vsyncadd [#allocation9], %s70
      %s72 = sshll.u32 [#allocation8], 4
      %s73 = int_to_ptr.vmem [resolvable:$true] %s72
      %78 = dma.hbm_to_vmem [thread:$0]  %s8, 1024, %s73, [#allocation9], 128, 128, 8
    $region37: #{lstm_model_forward.1} parent=1 // pred_fallthru
      _
    // Predicated region
    $region38: #{lstm_model_forward.1} parent=1 // pred_check
      _
    $region39: #{lstm_model_forward.1} parent=1 // pred_check_branch
      %80 = sbr.rel (0) target = $region41
    $region40: #{lstm_model_forward.1} parent=1 // pred_region
      %s82 = ssub.s32 1024, 1024
      %83 = vsyncadd [#allocation9], %s82
      %s84 = sshll.u32 [#allocation10], 4
      %s85 = int_to_ptr.vmem [resolvable:$true] %s84
      %90 = dma.hbm_to_vmem [thread:$0]  %s9, 1024, %s85, [#allocation9], 128, 128, 8
    $region41: #{lstm_model_forward.1} parent=1 // pred_fallthru
      _
    // Predicated region
    $region42: #{lstm_model_forward.1} parent=1 // pred_check
      _
    $region43: #{lstm_model_forward.1} parent=1 // pred_check_branch
      %92 = sbr.rel (0) target = $region45
    $region44: #{lstm_model_forward.1} parent=1 // pred_region
      %s94 = ssub.s32 32, 32
      %95 = vsyncadd [#allocation12], %s94
      %s97 = sshll.u32 [#allocation11], 4
      %s98 = int_to_ptr.vmem [resolvable:$true] %s97
      %100 = dma.hbm_to_vmem [thread:$0]  %s10, 32, %s98, [#allocation12]
    $region45: #{lstm_model_forward.1} parent=1 // pred_fallthru
      _
    // Predicated region
    $region46: #{lstm_model_forward.1} parent=1 // pred_check
      _
    $region47: #{lstm_model_forward.1} parent=1 // pred_check_branch
      %102 = sbr.rel (0) target = $region49
    $region48: #{lstm_model_forward.1} parent=1 // pred_region
      _
    $region49: #{lstm_model_forward.1} parent=1 // pred_fallthru
      _
    // Predicated region
    $region50: #{lstm_model_forward.1} parent=1 // pred_check
      _
    $region51: #{lstm_model_forward.1} parent=1 // pred_check_branch
      %104 = sbr.rel (0) target = $region53
    $region52: #{lstm_model_forward.1} parent=1 // pred_region
      _
    $region53: #{lstm_model_forward.1} parent=1 // pred_fallthru
      _
    // Predicated region
    $region54: #{lstm_model_forward.1} parent=1 // pred_check
      _
    $region55: #{lstm_model_forward.1} parent=1 // pred_check_branch
      %106 = sbr.rel (0) target = $region57
    $region56: #{lstm_model_forward.1} parent=1 // pred_region
      _
    $region57: #{lstm_model_forward.1} parent=1 // pred_fallthru
      _
    // Predicated region
    $region58: #{lstm_model_forward.1} parent=1 // pred_check
      _
    $region59: #{lstm_model_forward.1} parent=1 // pred_check_branch
      %108 = sbr.rel (0) target = $region61
    $region60: #{lstm_model_forward.1} parent=1 // pred_region
      _
    $region61: #{lstm_model_forward.1} parent=1 // pred_fallthru
      _
    // Predicated region
    $region62: #{lstm_model_forward.1} parent=1 // pred_check
      _
    $region63: #{lstm_model_forward.1} parent=1 // pred_check_branch
      %110 = sbr.rel (0) target = $region65
    $region64: #{lstm_model_forward.1} parent=1 // pred_region
      %111 = dma.done [#allocation3], 32
    $region65: #{lstm_model_forward.1} parent=1 // pred_fallthru
      _
    // Predicated region
    $region66: #{lstm_model_forward.1} parent=1 // pred_check
      _
    $region67: #{lstm_model_forward.1} parent=1 // pred_check_branch
      %113 = sbr.rel (0) target = $region69
    $region68: #{lstm_model_forward.1} parent=1 // pred_region
      %114 = dma.done [#allocation6], 1024
    $region69: #{lstm_model_forward.1} parent=1 // pred_fallthru
      _
    // Predicated region
    $region70: #{lstm_model_forward.1} parent=1 // pred_check
      _
    $region71: #{lstm_model_forward.1} parent=1 // pred_check_branch
      %116 = sbr.rel (0) target = $region73
    $region72: #{lstm_model_forward.1} parent=1 // pred_region
      %117 = dma.done [#allocation6], 32
    $region73: #{lstm_model_forward.1} parent=1 // pred_fallthru
      _
    // Predicated region
    $region74: #{lstm_model_forward.1} parent=1 // pred_check
      _
    $region75: #{lstm_model_forward.1} parent=1 // pred_check_branch
      %119 = sbr.rel (0) target = $region77
    $region76: #{lstm_model_forward.1} parent=1 // pred_region
      %120 = dma.done [#allocation9], 1024
    $region77: #{lstm_model_forward.1} parent=1 // pred_fallthru
      _
    // Predicated region
    $region78: #{lstm_model_forward.1} parent=1 // pred_check
      _
    $region79: #{lstm_model_forward.1} parent=1 // pred_check_branch
      %122 = sbr.rel (0) target = $region81
    $region80: #{lstm_model_forward.1} parent=1 // pred_region
      %123 = dma.done [#allocation9], 1024
    $region81: #{lstm_model_forward.1} parent=1 // pred_fallthru
      _
    // Predicated region
    $region82: #{lstm_model_forward.1} parent=1 // pred_check
      _
    $region83: #{lstm_model_forward.1} parent=1 // pred_check_branch
      %125 = sbr.rel (0) target = $region85
    $region84: #{lstm_model_forward.1} parent=1 // pred_region
      %126 = dma.done [#allocation12], 32
    $region85: #{lstm_model_forward.1} parent=1 // pred_fallthru
      _
    %v128 = vld [vmem:[%s1] sm:$0x3]
    %v129 = vlaneseq
    %v130 = vand.u32 %v129, 127
    %v131 = vadd.s32 %v130, 128
    %v132 = vand.u32 %v130, 32
    %v133 = vand.u32 %v131, 32
    %vm134 = vcmp.eq.s32.totalorder %v132, 0
    %vm135 = vcmp.eq.s32.totalorder %v133, 0
    %vm136 = vcmp.lt.s32.totalorder %v130, 32
    %v137 = vsel %vm136, 0, 7
    %138 = vset.pattern.permute.xlu0 0
    %139 = vperm.xlu0 %138, %v128
    %v140 = vpop.permute.xlu0 %139
    %vm141 = vcmp.lt.s32.totalorder %v137, %v140
    %v142 = vsel %vm136, 1, 6
    %vm143 = vcmp.lt.s32.totalorder %v142, %v140
    %v144 = vsel %vm136, 2, 5
    %vm145 = vcmp.lt.s32.totalorder %v144, %v140
    %v146 = vsel %vm136, 3, 4
    %vm147 = vcmp.lt.s32.totalorder %v146, %v140
    %v148 = vsel %vm136, 4, 3
    %vm149 = vcmp.lt.s32.totalorder %v148, %v140
    %v150 = vsel %vm136, 5, 2
    %vm151 = vcmp.lt.s32.totalorder %v150, %v140
    %v152 = vsel %vm136, 6, 1
    %vm153 = vcmp.lt.s32.totalorder %v152, %v140
    %v154 = vsel %vm136, 7, 0
    %vm155 = vcmp.lt.s32.totalorder %v154, %v140
    %v156 = vld [vmem:[%s0] sm:$0xff]
    %v157 = vld [vmem:[%s0 + $0x8] sm:$0xff]
    %v158 = vpack.c.bf16 %v157, %v156
    %v159 = vld [vmem:[%s2] sm:$0xff]
    %v160 = vld [vmem:[%s2 + $0x8] sm:$0xff]
    %v161 = vld [vmem:[%s3] sm:$0xff]
    %v162 = vld [vmem:[%s3 + $0x8] sm:$0xff]
    %v163 = vld [vmem:[%s3 + $0x10] sm:$0xff]
    %v164 = vld [vmem:[%s3 + $0x18] sm:$0xff]
    %v165 = vld [vmem:[%s3 + $0x20] sm:$0xff]
    %v166 = vld [vmem:[%s3 + $0x28] sm:$0xff]
    %v167 = vld [vmem:[%s3 + $0x30] sm:$0xff]
    %v168 = vld [vmem:[%s3 + $0x38] sm:$0xff]
    %v169 = vld [vmem:[#allocation2] sm:$0x3]
    %v171 = vlaneseq
    %v172 = vshrl.u32 %v171, 7
    %v173 = vsub.s32 0, %v172
    %v174 = vrot.slane %v169, %v173
    %v175 = vlaneseq
    %v176 = vshrl.u32 %v175, 7
    %v177 = vsub.s32 1, %v176
    %v178 = vrot.slane %v169, %v177
    %v183 = vunpack.c.l.b16 %v159
    %v184 = vunpack.c.h.b16 %v159
    %v185 = vunpack.c.l.b16 %v160
    %v186 = vunpack.c.h.b16 %v160
    %v187 = vpack.c.b16 %v185, %v183
    %v188 = vpack.c.b16 %v186, %v184
    %vm191 = vcmask 130048
    %v193 = vsel %vm191, %v158, 0
    %195 = vmatprep.subr.bf16.mxu0 %v188
    %196 = vmatpush1.bf16.msra.mxu0 %v187
    %197 = vmatprep.subr.bf16.mxu0 0
    %198 = vmatpush1.bf16.msra.mxu0 0
    %199 = vmatprep.subr.bf16.mxu0 0
    %200 = vmatpush1.bf16.msra.mxu0 0
    %201 = vmatprep.subr.bf16.mxu0 0
    %202 = vmatpush1.bf16.msra.mxu0 0
    %203 = vmatprep.subr.bf16.mxu0 0
    %204 = vmatpush1.bf16.msra.mxu0 0
    %205 = vmatprep.subr.bf16.mxu0 0
    %206 = vmatpush1.bf16.msra.mxu0 0
    %207 = vmatprep.subr.bf16.mxu0 0
    %208 = vmatpush1.bf16.msra.mxu0 0
    %209 = vmatprep.subr.bf16.mxu0 0
    %210 = vmatpush1.bf16.msra.mxu0 0
    %211 = vmatprep.subr.bf16.mxu0 0
    %212 = vmatpush1.bf16.msra.mxu0 0
    %213 = vmatprep.subr.bf16.mxu0 0
    %214 = vmatpush1.bf16.msra.mxu0 0
    %215 = vmatprep.subr.bf16.mxu0 0
    %216 = vmatpush1.bf16.msra.mxu0 0
    %217 = vmatprep.subr.bf16.mxu0 0
    %218 = vmatpush1.bf16.msra.mxu0 0
    %219 = vmatprep.subr.bf16.mxu0 0
    %220 = vmatpush1.bf16.msra.mxu0 0
    %221 = vmatprep.subr.bf16.mxu0 0
    %222 = vmatpush1.bf16.msra.mxu0 0
    %223 = vmatprep.subr.bf16.mxu0 0
    %224 = vmatpush1.bf16.msra.mxu0 0
    %225 = vmatprep.subr.bf16.mxu0 0
    %226 = vmatpush1.bf16.msra.mxu0 0
    %227 = vmatprep.mubr.bf16.mxu0 0
    %228 = vmatmul.mubr.bf16.gmra.mrb[0].mxu0 %v193
    %v229 = vpop.f32.mrb[0].mxu0
    %v230 = vadd.f32 %v174, %v229
    %v231 = vpop.f32.mrb[0].mxu0
    %v232 = vadd.f32 %v178, %v231
    %v233 = vpop.f32.mrb[0].mxu0
    %v234 = vadd.f32 %v174, %v233
    %v235 = vpop.f32.mrb[0].mxu0
    %v236 = vadd.f32 %v178, %v235
    %237 = vdwg.mxu0
    %v238 = vsel %vm134, 1, 0
    %v239 = vsel %vm135, 1, 0
    %vm240 = vcmp.eq.s32.totalorder %v238, 1
    %vm241 = vcmp.eq.s32.totalorder %v239, 1
    %v244 = vrot.slane %v234, 6
    %v245 = vrot.slane %v236, 6
    %v248 = vsel %vm240, %v230, %v244
    %v249 = vsel %vm241, %v232, %v245
    %v258 = vunpack.c.l.b16 %v161
    %v259 = vunpack.c.h.b16 %v161
    %v260 = vunpack.c.l.b16 %v162
    %v261 = vunpack.c.h.b16 %v162
    %v262 = vunpack.c.l.b16 %v163
    %v263 = vunpack.c.h.b16 %v163
    %v264 = vunpack.c.l.b16 %v164
    %v265 = vunpack.c.h.b16 %v164
    %v266 = vunpack.c.l.b16 %v165
    %v267 = vunpack.c.h.b16 %v165
    %v268 = vunpack.c.l.b16 %v166
    %v269 = vunpack.c.h.b16 %v166
    %v270 = vunpack.c.l.b16 %v167
    %v271 = vunpack.c.h.b16 %v167
    %v272 = vunpack.c.l.b16 %v168
    %v273 = vunpack.c.h.b16 %v168
    %v274 = vpack.c.b16 %v260, %v258
    %v275 = vpack.c.b16 %v261, %v259
    %v276 = vpack.c.b16 %v264, %v262
    %v277 = vpack.c.b16 %v265, %v263
    %v278 = vpack.c.b16 %v268, %v266
    %v279 = vpack.c.b16 %v269, %v267
    %v280 = vpack.c.b16 %v272, %v270
    %v281 = vpack.c.b16 %v273, %v271
    %vm290 = vcmask 523264
    %v292 = vsel %vm290, 0, 0
    %294 = vmatprep.subr.bf16.mxu0 %v275
    %295 = vmatpush1.bf16.msra.mxu0 %v274
    %296 = vmatprep.subr.bf16.mxu0 %v277
    %297 = vmatpush1.bf16.msra.mxu0 %v276
    %298 = vmatprep.subr.bf16.mxu0 %v279
    %299 = vmatpush1.bf16.msra.mxu0 %v278
    %300 = vmatprep.subr.bf16.mxu0 %v281
    %301 = vmatpush1.bf16.msra.mxu0 %v280
    %302 = vmatprep.subr.bf16.mxu0 0
    %303 = vmatpush1.bf16.msra.mxu0 0
    %304 = vmatprep.subr.bf16.mxu0 0
    %305 = vmatpush1.bf16.msra.mxu0 0
    %306 = vmatprep.subr.bf16.mxu0 0
    %307 = vmatpush1.bf16.msra.mxu0 0
    %308 = vmatprep.subr.bf16.mxu0 0
    %309 = vmatpush1.bf16.msra.mxu0 0
    %310 = vmatprep.subr.bf16.mxu0 0
    %311 = vmatpush1.bf16.msra.mxu0 0
    %312 = vmatprep.subr.bf16.mxu0 0
    %313 = vmatpush1.bf16.msra.mxu0 0
    %314 = vmatprep.subr.bf16.mxu0 0
    %315 = vmatpush1.bf16.msra.mxu0 0
    %316 = vmatprep.subr.bf16.mxu0 0
    %317 = vmatpush1.bf16.msra.mxu0 0
    %318 = vmatprep.subr.bf16.mxu0 0
    %319 = vmatpush1.bf16.msra.mxu0 0
    %320 = vmatprep.subr.bf16.mxu0 0
    %321 = vmatpush1.bf16.msra.mxu0 0
    %322 = vmatprep.subr.bf16.mxu0 0
    %323 = vmatpush1.bf16.msra.mxu0 0
    %324 = vmatprep.subr.bf16.mxu0 0
    %325 = vmatpush1.bf16.msra.mxu0 0
    %326 = vmatprep.mubr.bf16.mxu0 0
    %327 = vmatmul.mubr.bf16.gmra.mrb[0].mxu0 %v292
    %v328 = vpop.f32.mrb[0].mxu0
    %v329 = vadd.f32 0.0, %v328
    %v330 = vpop.f32.mrb[0].mxu0
    %v331 = vadd.f32 0.0, %v330
    %v332 = vpop.f32.mrb[0].mxu0
    %v333 = vpop.f32.mrb[0].mxu0
    %334 = vdwg.mxu0
    %v335 = vadd.f32 %v248, %v329
    %v336 = vadd.f32 %v249, %v331
    %v337 = vxor.u32 %v335, 2147483648
    %v338 = vxor.u32 %v336, 2147483648
    %v339 = vmul.f32 %v337, 1.442695
    %v340 = vpow.pop %v339
    %v341 = vmul.f32 %v338, 1.442695
    %v342 = vpow.pop %v341
    %v343 = vadd.f32 %v340, 1.0
    %v344 = vadd.f32 %v342, 1.0
    %v345 = vrcp.pop %v343
    %v346 = vmul.f32 1.0, %v345
    %v347 = vrcp.pop %v344
    %v348 = vmul.f32 1.0, %v347
    %v349 = vtanh.pop %v336
    %v350 = vmul.f32 %v346, 0.0
    %352 = vrot.lane.b32.xlu0 %v349, 64
    %v353 = vpop.permute.xlu0 %352
    %v355 = vmul.f32 %v346, %v353
    %357 = vrot.lane.b32.xlu0 %v355, 64
    %v358 = vpop.permute.xlu0 %357
    %v360 = vadd.f32 %v350, %v358
    %v361 = vtanh.pop %v360
    %363 = vrot.lane.b32.xlu0 %v361, 64
    %v364 = vpop.permute.xlu0 %363
    %v366 = vmul.f32 %v348, %v364
    %368 = vrot.lane.b32.xlu0 %v360, 64
    %v369 = vpop.permute.xlu0 %368
    %v371 = vsel %vm141, %v369, 0.0
    %v372 = vsel %vm141, %v366, 0.0
    %v373 = vrot.slane %v234, 2
    %v374 = vrot.slane %v236, 2
    %v377 = vsel %vm240, %v230, %v373
    %v378 = vsel %vm241, %v232, %v374
    %v379 = vpack.c.bf16 %v372, %v372
    %v381 = vsel %vm290, %v379, 0
    %383 = vmatprep.subr.bf16.mxu0 %v275
    %384 = vmatpush1.bf16.msra.mxu0 %v274
    %385 = vmatprep.subr.bf16.mxu0 %v277
    %386 = vmatpush1.bf16.msra.mxu0 %v276
    %387 = vmatprep.subr.bf16.mxu0 %v279
    %388 = vmatpush1.bf16.msra.mxu0 %v278
    %389 = vmatprep.subr.bf16.mxu0 %v281
    %390 = vmatpush1.bf16.msra.mxu0 %v280
    %391 = vmatprep.subr.bf16.mxu0 0
    %392 = vmatpush1.bf16.msra.mxu0 0
    %393 = vmatprep.subr.bf16.mxu0 0
    %394 = vmatpush1.bf16.msra.mxu0 0
    %395 = vmatprep.subr.bf16.mxu0 0
    %396 = vmatpush1.bf16.msra.mxu0 0
    %397 = vmatprep.subr.bf16.mxu0 0
    %398 = vmatpush1.bf16.msra.mxu0 0
    %399 = vmatprep.subr.bf16.mxu0 0
    %400 = vmatpush1.bf16.msra.mxu0 0
    %401 = vmatprep.subr.bf16.mxu0 0
    %402 = vmatpush1.bf16.msra.mxu0 0
    %403 = vmatprep.subr.bf16.mxu0 0
    %404 = vmatpush1.bf16.msra.mxu0 0
    %405 = vmatprep.subr.bf16.mxu0 0
    %406 = vmatpush1.bf16.msra.mxu0 0
    %407 = vmatprep.subr.bf16.mxu0 0
    %408 = vmatpush1.bf16.msra.mxu0 0
    %409 = vmatprep.subr.bf16.mxu0 0
    %410 = vmatpush1.bf16.msra.mxu0 0
    %411 = vmatprep.subr.bf16.mxu0 0
    %412 = vmatpush1.bf16.msra.mxu0 0
    %413 = vmatprep.subr.bf16.mxu0 0
    %414 = vmatpush1.bf16.msra.mxu0 0
    %415 = vmatprep.mubr.bf16.mxu0 0
    %416 = vmatmul.mubr.bf16.gmra.mrb[0].mxu0 %v381
    %v417 = vpop.f32.mrb[0].mxu0
    %v418 = vadd.f32 0.0, %v417
    %v419 = vpop.f32.mrb[0].mxu0
    %v420 = vadd.f32 0.0, %v419
    %v421 = vpop.f32.mrb[0].mxu0
    %v422 = vpop.f32.mrb[0].mxu0
    %423 = vdwg.mxu0
    %v426 = vrot.slane %v418, 6
    %v427 = vrot.slane %v420, 6
    %v430 = vadd.f32 %v377, %v426
    %v431 = vadd.f32 %v378, %v427
    %v432 = vxor.u32 %v430, 2147483648
    %v433 = vxor.u32 %v431, 2147483648
    %v434 = vmul.f32 %v432, 1.442695
    %v435 = vpow.pop %v434
    %v436 = vmul.f32 %v433, 1.442695
    %v437 = vpow.pop %v436
    %v438 = vadd.f32 %v435, 1.0
    %v439 = vadd.f32 %v437, 1.0
    %v440 = vrcp.pop %v438
    %v441 = vmul.f32 1.0, %v440
    %v442 = vrcp.pop %v439
    %v443 = vmul.f32 1.0, %v442
    %v444 = vtanh.pop %v431
    %v446 = vrot.slane %v371, 6
    %447 = vrot.lane.b32.xlu0 %v446, 64
    %v448 = vpop.permute.xlu0 %447
    %v450 = vmul.f32 %v441, %v448
    %452 = vrot.lane.b32.xlu0 %v444, 64
    %v453 = vpop.permute.xlu0 %452
    %v455 = vmul.f32 %v441, %v453
    %457 = vrot.lane.b32.xlu0 %v455, 64
    %v458 = vpop.permute.xlu0 %457
    %v460 = vadd.f32 %v450, %v458
    %v461 = vtanh.pop %v460
    %463 = vrot.lane.b32.xlu0 %v461, 64
    %v464 = vpop.permute.xlu0 %463
    %v466 = vmul.f32 %v443, %v464
    %v468 = vrot.slane %v460, 2
    %469 = vrot.lane.b32.xlu0 %v468, 64
    %v470 = vpop.permute.xlu0 %469
    %v472 = vsel %vm143, %v470, %v371
    %v474 = vrot.slane %v466, 2
    %v476 = vsel %vm143, %v474, %v372
    %v477 = vpack.c.bf16 %v476, %v476
    %v479 = vsel %vm290, %v477, 0
    %481 = vmatprep.subr.bf16.mxu0 %v275
    %482 = vmatpush1.bf16.msra.mxu0 %v274
    %483 = vmatprep.subr.bf16.mxu0 %v277
    %484 = vmatpush1.bf16.msra.mxu0 %v276
    %485 = vmatprep.subr.bf16.mxu0 %v279
    %486 = vmatpush1.bf16.msra.mxu0 %v278
    %487 = vmatprep.subr.bf16.mxu0 %v281
    %488 = vmatpush1.bf16.msra.mxu0 %v280
    %489 = vmatprep.subr.bf16.mxu0 0
    %490 = vmatpush1.bf16.msra.mxu0 0
    %491 = vmatprep.subr.bf16.mxu0 0
    %492 = vmatpush1.bf16.msra.mxu0 0
    %493 = vmatprep.subr.bf16.mxu0 0
    %494 = vmatpush1.bf16.msra.mxu0 0
    %495 = vmatprep.subr.bf16.mxu0 0
    %496 = vmatpush1.bf16.msra.mxu0 0
    %497 = vmatprep.subr.bf16.mxu0 0
    %498 = vmatpush1.bf16.msra.mxu0 0
    %499 = vmatprep.subr.bf16.mxu0 0
    %500 = vmatpush1.bf16.msra.mxu0 0
    %501 = vmatprep.subr.bf16.mxu0 0
    %502 = vmatpush1.bf16.msra.mxu0 0
    %503 = vmatprep.subr.bf16.mxu0 0
    %504 = vmatpush1.bf16.msra.mxu0 0
    %505 = vmatprep.subr.bf16.mxu0 0
    %506 = vmatpush1.bf16.msra.mxu0 0
    %507 = vmatprep.subr.bf16.mxu0 0
    %508 = vmatpush1.bf16.msra.mxu0 0
    %509 = vmatprep.subr.bf16.mxu0 0
    %510 = vmatpush1.bf16.msra.mxu0 0
    %511 = vmatprep.subr.bf16.mxu0 0
    %512 = vmatpush1.bf16.msra.mxu0 0
    %513 = vmatprep.mubr.bf16.mxu0 0
    %514 = vmatmul.mubr.bf16.gmra.mrb[0].mxu0 %v479
    %v515 = vpop.f32.mrb[0].mxu0
    %v516 = vadd.f32 0.0, %v515
    %v517 = vpop.f32.mrb[0].mxu0
    %v518 = vadd.f32 0.0, %v517
    %v519 = vpop.f32.mrb[0].mxu0
    %v520 = vpop.f32.mrb[0].mxu0
    %521 = vdwg.mxu0
    %v524 = vrot.slane %v516, 4
    %v525 = vrot.slane %v518, 4
    %v528 = vadd.f32 %v248, %v524
    %v529 = vadd.f32 %v249, %v525
    %v530 = vxor.u32 %v528, 2147483648
    %v531 = vxor.u32 %v529, 2147483648
    %v532 = vmul.f32 %v530, 1.442695
    %v533 = vpow.pop %v532
    %v534 = vmul.f32 %v531, 1.442695
    %v535 = vpow.pop %v534
    %v536 = vadd.f32 %v533, 1.0
    %v537 = vadd.f32 %v535, 1.0
    %v538 = vrcp.pop %v536
    %v539 = vmul.f32 1.0, %v538
    %v540 = vrcp.pop %v537
    %v541 = vmul.f32 1.0, %v540
    %v542 = vtanh.pop %v529
    %v544 = vrot.slane %v472, 4
    %545 = vrot.lane.b32.xlu0 %v544, 64
    %v546 = vpop.permute.xlu0 %545
    %v548 = vmul.f32 %v539, %v546
    %550 = vrot.lane.b32.xlu0 %v542, 64
    %v551 = vpop.permute.xlu0 %550
    %v553 = vmul.f32 %v539, %v551
    %555 = vrot.lane.b32.xlu0 %v553, 64
    %v556 = vpop.permute.xlu0 %555
    %v558 = vadd.f32 %v548, %v556
    %v559 = vtanh.pop %v558
    %561 = vrot.lane.b32.xlu0 %v559, 64
    %v562 = vpop.permute.xlu0 %561
    %v564 = vmul.f32 %v541, %v562
    %v566 = vrot.slane %v558, 4
    %567 = vrot.lane.b32.xlu0 %v566, 64
    %v568 = vpop.permute.xlu0 %567
    %v570 = vsel %vm145, %v568, %v472
    %v572 = vrot.slane %v564, 4
    %v574 = vsel %vm145, %v572, %v476
    %v575 = vpack.c.bf16 %v574, %v574
    %v577 = vsel %vm290, %v575, 0
    %579 = vmatprep.subr.bf16.mxu0 %v275
    %580 = vmatpush1.bf16.msra.mxu0 %v274
    %581 = vmatprep.subr.bf16.mxu0 %v277
    %582 = vmatpush1.bf16.msra.mxu0 %v276
    %583 = vmatprep.subr.bf16.mxu0 %v279
    %584 = vmatpush1.bf16.msra.mxu0 %v278
    %585 = vmatprep.subr.bf16.mxu0 %v281
    %586 = vmatpush1.bf16.msra.mxu0 %v280
    %587 = vmatprep.subr.bf16.mxu0 0
    %588 = vmatpush1.bf16.msra.mxu0 0
    %589 = vmatprep.subr.bf16.mxu0 0
    %590 = vmatpush1.bf16.msra.mxu0 0
    %591 = vmatprep.subr.bf16.mxu0 0
    %592 = vmatpush1.bf16.msra.mxu0 0
    %593 = vmatprep.subr.bf16.mxu0 0
    %594 = vmatpush1.bf16.msra.mxu0 0
    %595 = vmatprep.subr.bf16.mxu0 0
    %596 = vmatpush1.bf16.msra.mxu0 0
    %597 = vmatprep.subr.bf16.mxu0 0
    %598 = vmatpush1.bf16.msra.mxu0 0
    %599 = vmatprep.subr.bf16.mxu0 0
    %600 = vmatpush1.bf16.msra.mxu0 0
    %601 = vmatprep.subr.bf16.mxu0 0
    %602 = vmatpush1.bf16.msra.mxu0 0
    %603 = vmatprep.subr.bf16.mxu0 0
    %604 = vmatpush1.bf16.msra.mxu0 0
    %605 = vmatprep.subr.bf16.mxu0 0
    %606 = vmatpush1.bf16.msra.mxu0 0
    %607 = vmatprep.subr.bf16.mxu0 0
    %608 = vmatpush1.bf16.msra.mxu0 0
    %609 = vmatprep.subr.bf16.mxu0 0
    %610 = vmatpush1.bf16.msra.mxu0 0
    %611 = vmatprep.mubr.bf16.mxu0 0
    %612 = vmatmul.mubr.bf16.gmra.mrb[0].mxu0 %v577
    %v613 = vpop.f32.mrb[0].mxu0
    %v614 = vadd.f32 0.0, %v613
    %v615 = vpop.f32.mrb[0].mxu0
    %v616 = vadd.f32 0.0, %v615
    %v617 = vpop.f32.mrb[0].mxu0
    %v618 = vpop.f32.mrb[0].mxu0
    %619 = vdwg.mxu0
    %v622 = vrot.slane %v614, 2
    %v623 = vrot.slane %v616, 2
    %v626 = vadd.f32 %v377, %v622
    %v627 = vadd.f32 %v378, %v623
    %v628 = vxor.u32 %v626, 2147483648
    %v629 = vxor.u32 %v627, 2147483648
    %v630 = vmul.f32 %v628, 1.442695
    %v631 = vpow.pop %v630
    %v632 = vmul.f32 %v629, 1.442695
    %v633 = vpow.pop %v632
    %v634 = vadd.f32 %v631, 1.0
    %v635 = vadd.f32 %v633, 1.0
    %v636 = vrcp.pop %v634
    %v637 = vmul.f32 1.0, %v636
    %v638 = vrcp.pop %v635
    %v639 = vmul.f32 1.0, %v638
    %v640 = vtanh.pop %v627
    %v642 = vrot.slane %v570, 2
    %643 = vrot.lane.b32.xlu0 %v642, 64
    %v644 = vpop.permute.xlu0 %643
    %v646 = vmul.f32 %v637, %v644
    %648 = vrot.lane.b32.xlu0 %v640, 64
    %v649 = vpop.permute.xlu0 %648
    %v651 = vmul.f32 %v637, %v649
    %653 = vrot.lane.b32.xlu0 %v651, 64
    %v654 = vpop.permute.xlu0 %653
    %v656 = vadd.f32 %v646, %v654
    %v657 = vtanh.pop %v656
    %659 = vrot.lane.b32.xlu0 %v657, 64
    %v660 = vpop.permute.xlu0 %659
    %v662 = vmul.f32 %v639, %v660
    %v664 = vrot.slane %v656, 6
    %665 = vrot.lane.b32.xlu0 %v664, 64
    %v666 = vpop.permute.xlu0 %665
    %v668 = vsel %vm147, %v666, %v570
    %v670 = vrot.slane %v662, 6
    %v672 = vsel %vm147, %v670, %v574
    %v675 = vrot.slane %v230, 6
    %v676 = vrot.slane %v232, 6
    %v679 = vsel %vm240, %v234, %v675
    %v680 = vsel %vm241, %v236, %v676
    %v681 = vpack.c.bf16 %v672, %v672
    %v683 = vsel %vm290, %v681, 0
    %685 = vmatprep.subr.bf16.mxu0 %v275
    %686 = vmatpush1.bf16.msra.mxu0 %v274
    %687 = vmatprep.subr.bf16.mxu0 %v277
    %688 = vmatpush1.bf16.msra.mxu0 %v276
    %689 = vmatprep.subr.bf16.mxu0 %v279
    %690 = vmatpush1.bf16.msra.mxu0 %v278
    %691 = vmatprep.subr.bf16.mxu0 %v281
    %692 = vmatpush1.bf16.msra.mxu0 %v280
    %693 = vmatprep.subr.bf16.mxu0 0
    %694 = vmatpush1.bf16.msra.mxu0 0
    %695 = vmatprep.subr.bf16.mxu0 0
    %696 = vmatpush1.bf16.msra.mxu0 0
    %697 = vmatprep.subr.bf16.mxu0 0
    %698 = vmatpush1.bf16.msra.mxu0 0
    %699 = vmatprep.subr.bf16.mxu0 0
    %700 = vmatpush1.bf16.msra.mxu0 0
    %701 = vmatprep.subr.bf16.mxu0 0
    %702 = vmatpush1.bf16.msra.mxu0 0
    %703 = vmatprep.subr.bf16.mxu0 0
    %704 = vmatpush1.bf16.msra.mxu0 0
    %705 = vmatprep.subr.bf16.mxu0 0
    %706 = vmatpush1.bf16.msra.mxu0 0
    %707 = vmatprep.subr.bf16.mxu0 0
    %708 = vmatpush1.bf16.msra.mxu0 0
    %709 = vmatprep.subr.bf16.mxu0 0
    %710 = vmatpush1.bf16.msra.mxu0 0
    %711 = vmatprep.subr.bf16.mxu0 0
    %712 = vmatpush1.bf16.msra.mxu0 0
    %713 = vmatprep.subr.bf16.mxu0 0
    %714 = vmatpush1.bf16.msra.mxu0 0
    %715 = vmatprep.subr.bf16.mxu0 0
    %716 = vmatpush1.bf16.msra.mxu0 0
    %717 = vmatprep.mubr.bf16.mxu0 0
    %718 = vmatmul.mubr.bf16.gmra.mrb[0].mxu0 %v683
    %v719 = vpop.f32.mrb[0].mxu0
    %v720 = vadd.f32 0.0, %v719
    %v721 = vpop.f32.mrb[0].mxu0
    %v722 = vadd.f32 0.0, %v721
    %v723 = vpop.f32.mrb[0].mxu0
    %v724 = vpop.f32.mrb[0].mxu0
    %725 = vdwg.mxu0
    %v726 = vadd.f32 %v679, %v720
    %v727 = vadd.f32 %v680, %v722
    %v728 = vxor.u32 %v726, 2147483648
    %v729 = vxor.u32 %v727, 2147483648
    %v730 = vmul.f32 %v728, 1.442695
    %v731 = vpow.pop %v730
    %v732 = vmul.f32 %v729, 1.442695
    %v733 = vpow.pop %v732
    %v734 = vadd.f32 %v731, 1.0
    %v735 = vadd.f32 %v733, 1.0
    %v736 = vrcp.pop %v734
    %v737 = vmul.f32 1.0, %v736
    %v738 = vrcp.pop %v735
    %v739 = vmul.f32 1.0, %v738
    %v740 = vtanh.pop %v727
    %742 = vrot.lane.b32.xlu0 %v668, 64
    %v743 = vpop.permute.xlu0 %742
    %v745 = vmul.f32 %v737, %v743
    %747 = vrot.lane.b32.xlu0 %v740, 64
    %v748 = vpop.permute.xlu0 %747
    %v750 = vmul.f32 %v737, %v748
    %752 = vrot.lane.b32.xlu0 %v750, 64
    %v753 = vpop.permute.xlu0 %752
    %v755 = vadd.f32 %v745, %v753
    %v756 = vtanh.pop %v755
    %758 = vrot.lane.b32.xlu0 %v756, 64
    %v759 = vpop.permute.xlu0 %758
    %v761 = vmul.f32 %v739, %v759
    %763 = vrot.lane.b32.xlu0 %v755, 64
    %v764 = vpop.permute.xlu0 %763
    %v766 = vsel %vm149, %v764, %v668
    %v767 = vsel %vm149, %v761, %v672
    %v768 = vrot.slane %v230, 2
    %v769 = vrot.slane %v232, 2
    %v772 = vsel %vm240, %v234, %v768
    %v773 = vsel %vm241, %v236, %v769
    %v774 = vpack.c.bf16 %v767, %v767
    %v776 = vsel %vm290, %v774, 0
    %778 = vmatprep.subr.bf16.mxu0 %v275
    %779 = vmatpush1.bf16.msra.mxu0 %v274
    %780 = vmatprep.subr.bf16.mxu0 %v277
    %781 = vmatpush1.bf16.msra.mxu0 %v276
    %782 = vmatprep.subr.bf16.mxu0 %v279
    %783 = vmatpush1.bf16.msra.mxu0 %v278
    %784 = vmatprep.subr.bf16.mxu0 %v281
    %785 = vmatpush1.bf16.msra.mxu0 %v280
    %786 = vmatprep.subr.bf16.mxu0 0
    %787 = vmatpush1.bf16.msra.mxu0 0
    %788 = vmatprep.subr.bf16.mxu0 0
    %789 = vmatpush1.bf16.msra.mxu0 0
    %790 = vmatprep.subr.bf16.mxu0 0
    %791 = vmatpush1.bf16.msra.mxu0 0
    %792 = vmatprep.subr.bf16.mxu0 0
    %793 = vmatpush1.bf16.msra.mxu0 0
    %794 = vmatprep.subr.bf16.mxu0 0
    %795 = vmatpush1.bf16.msra.mxu0 0
    %796 = vmatprep.subr.bf16.mxu0 0
    %797 = vmatpush1.bf16.msra.mxu0 0
    %798 = vmatprep.subr.bf16.mxu0 0
    %799 = vmatpush1.bf16.msra.mxu0 0
    %800 = vmatprep.subr.bf16.mxu0 0
    %801 = vmatpush1.bf16.msra.mxu0 0
    %802 = vmatprep.subr.bf16.mxu0 0
    %803 = vmatpush1.bf16.msra.mxu0 0
    %804 = vmatprep.subr.bf16.mxu0 0
    %805 = vmatpush1.bf16.msra.mxu0 0
    %806 = vmatprep.subr.bf16.mxu0 0
    %807 = vmatpush1.bf16.msra.mxu0 0
    %808 = vmatprep.subr.bf16.mxu0 0
    %809 = vmatpush1.bf16.msra.mxu0 0
    %810 = vmatprep.mubr.bf16.mxu0 0
    %811 = vmatmul.mubr.bf16.gmra.mrb[0].mxu0 %v776
    %v812 = vpop.f32.mrb[0].mxu0
    %v813 = vadd.f32 0.0, %v812
    %v814 = vpop.f32.mrb[0].mxu0
    %v815 = vadd.f32 0.0, %v814
    %v816 = vpop.f32.mrb[0].mxu0
    %v817 = vpop.f32.mrb[0].mxu0
    %818 = vdwg.mxu0
    %v821 = vrot.slane %v813, 6
    %v822 = vrot.slane %v815, 6
    %v825 = vadd.f32 %v772, %v821
    %v826 = vadd.f32 %v773, %v822
    %v827 = vxor.u32 %v825, 2147483648
    %v828 = vxor.u32 %v826, 2147483648
    %v829 = vmul.f32 %v827, 1.442695
    %v830 = vpow.pop %v829
    %v831 = vmul.f32 %v828, 1.442695
    %v832 = vpow.pop %v831
    %v833 = vadd.f32 %v830, 1.0
    %v834 = vadd.f32 %v832, 1.0
    %v835 = vrcp.pop %v833
    %v836 = vmul.f32 1.0, %v835
    %v837 = vrcp.pop %v834
    %v838 = vmul.f32 1.0, %v837
    %v839 = vtanh.pop %v826
    %v841 = vrot.slane %v766, 6
    %842 = vrot.lane.b32.xlu0 %v841, 64
    %v843 = vpop.permute.xlu0 %842
    %v845 = vmul.f32 %v836, %v843
    %847 = vrot.lane.b32.xlu0 %v839, 64
    %v848 = vpop.permute.xlu0 %847
    %v850 = vmul.f32 %v836, %v848
    %852 = vrot.lane.b32.xlu0 %v850, 64
    %v853 = vpop.permute.xlu0 %852
    %v855 = vadd.f32 %v845, %v853
    %v856 = vtanh.pop %v855
    %858 = vrot.lane.b32.xlu0 %v856, 64
    %v859 = vpop.permute.xlu0 %858
    %v861 = vmul.f32 %v838, %v859
    %v863 = vrot.slane %v855, 2
    %864 = vrot.lane.b32.xlu0 %v863, 64
    %v865 = vpop.permute.xlu0 %864
    %v867 = vsel %vm151, %v865, %v766
    %v869 = vrot.slane %v861, 2
    %v871 = vsel %vm151, %v869, %v767
    %v872 = vpack.c.bf16 %v871, %v871
    %v874 = vsel %vm290, %v872, 0
    %876 = vmatprep.subr.bf16.mxu0 %v275
    %877 = vmatpush1.bf16.msra.mxu0 %v274
    %878 = vmatprep.subr.bf16.mxu0 %v277
    %879 = vmatpush1.bf16.msra.mxu0 %v276
    %880 = vmatprep.subr.bf16.mxu0 %v279
    %881 = vmatpush1.bf16.msra.mxu0 %v278
    %882 = vmatprep.subr.bf16.mxu0 %v281
    %883 = vmatpush1.bf16.msra.mxu0 %v280
    %884 = vmatprep.subr.bf16.mxu0 0
    %885 = vmatpush1.bf16.msra.mxu0 0
    %886 = vmatprep.subr.bf16.mxu0 0
    %887 = vmatpush1.bf16.msra.mxu0 0
    %888 = vmatprep.subr.bf16.mxu0 0
    %889 = vmatpush1.bf16.msra.mxu0 0
    %890 = vmatprep.subr.bf16.mxu0 0
    %891 = vmatpush1.bf16.msra.mxu0 0
    %892 = vmatprep.subr.bf16.mxu0 0
    %893 = vmatpush1.bf16.msra.mxu0 0
    %894 = vmatprep.subr.bf16.mxu0 0
    %895 = vmatpush1.bf16.msra.mxu0 0
    %896 = vmatprep.subr.bf16.mxu0 0
    %897 = vmatpush1.bf16.msra.mxu0 0
    %898 = vmatprep.subr.bf16.mxu0 0
    %899 = vmatpush1.bf16.msra.mxu0 0
    %900 = vmatprep.subr.bf16.mxu0 0
    %901 = vmatpush1.bf16.msra.mxu0 0
    %902 = vmatprep.subr.bf16.mxu0 0
    %903 = vmatpush1.bf16.msra.mxu0 0
    %904 = vmatprep.subr.bf16.mxu0 0
    %905 = vmatpush1.bf16.msra.mxu0 0
    %906 = vmatprep.subr.bf16.mxu0 0
    %907 = vmatpush1.bf16.msra.mxu0 0
    %908 = vmatprep.mubr.bf16.mxu0 0
    %909 = vmatmul.mubr.bf16.gmra.mrb[0].mxu0 %v874
    %v910 = vpop.f32.mrb[0].mxu0
    %v911 = vadd.f32 0.0, %v910
    %v912 = vpop.f32.mrb[0].mxu0
    %v913 = vadd.f32 0.0, %v912
    %v914 = vpop.f32.mrb[0].mxu0
    %v915 = vpop.f32.mrb[0].mxu0
    %916 = vdwg.mxu0
    %v919 = vrot.slane %v911, 4
    %v920 = vrot.slane %v913, 4
    %v923 = vadd.f32 %v679, %v919
    %v924 = vadd.f32 %v680, %v920
    %v925 = vxor.u32 %v923, 2147483648
    %v926 = vxor.u32 %v924, 2147483648
    %v927 = vmul.f32 %v925, 1.442695
    %v928 = vpow.pop %v927
    %v929 = vmul.f32 %v926, 1.442695
    %v930 = vpow.pop %v929
    %v931 = vadd.f32 %v928, 1.0
    %v932 = vadd.f32 %v930, 1.0
    %v933 = vrcp.pop %v931
    %v934 = vmul.f32 1.0, %v933
    %v935 = vrcp.pop %v932
    %v936 = vmul.f32 1.0, %v935
    %v937 = vtanh.pop %v924
    %v939 = vrot.slane %v867, 4
    %940 = vrot.lane.b32.xlu0 %v939, 64
    %v941 = vpop.permute.xlu0 %940
    %v943 = vmul.f32 %v934, %v941
    %945 = vrot.lane.b32.xlu0 %v937, 64
    %v946 = vpop.permute.xlu0 %945
    %v948 = vmul.f32 %v934, %v946
    %950 = vrot.lane.b32.xlu0 %v948, 64
    %v951 = vpop.permute.xlu0 %950
    %v953 = vadd.f32 %v943, %v951
    %v954 = vtanh.pop %v953
    %956 = vrot.lane.b32.xlu0 %v954, 64
    %v957 = vpop.permute.xlu0 %956
    %v959 = vmul.f32 %v936, %v957
    %v961 = vrot.slane %v953, 4
    %962 = vrot.lane.b32.xlu0 %v961, 64
    %v963 = vpop.permute.xlu0 %962
    %v965 = vsel %vm153, %v963, %v867
    %v967 = vrot.slane %v959, 4
    %v969 = vsel %vm153, %v967, %v871
    %v970 = vpack.c.bf16 %v969, %v969
    %v972 = vsel %vm290, %v970, 0
    %974 = vmatprep.subr.bf16.mxu0 %v275
    %975 = vmatpush1.bf16.msra.mxu0 %v274
    %976 = vmatprep.subr.bf16.mxu0 %v277
    %977 = vmatpush1.bf16.msra.mxu0 %v276
    %978 = vmatprep.subr.bf16.mxu0 %v279
    %979 = vmatpush1.bf16.msra.mxu0 %v278
    %980 = vmatprep.subr.bf16.mxu0 %v281
    %981 = vmatpush1.bf16.msra.mxu0 %v280
    %982 = vmatprep.subr.bf16.mxu0 0
    %983 = vmatpush1.bf16.msra.mxu0 0
    %984 = vmatprep.subr.bf16.mxu0 0
    %985 = vmatpush1.bf16.msra.mxu0 0
    %986 = vmatprep.subr.bf16.mxu0 0
    %987 = vmatpush1.bf16.msra.mxu0 0
    %988 = vmatprep.subr.bf16.mxu0 0
    %989 = vmatpush1.bf16.msra.mxu0 0
    %990 = vmatprep.subr.bf16.mxu0 0
    %991 = vmatpush1.bf16.msra.mxu0 0
    %992 = vmatprep.subr.bf16.mxu0 0
    %993 = vmatpush1.bf16.msra.mxu0 0
    %994 = vmatprep.subr.bf16.mxu0 0
    %995 = vmatpush1.bf16.msra.mxu0 0
    %996 = vmatprep.subr.bf16.mxu0 0
    %997 = vmatpush1.bf16.msra.mxu0 0
    %998 = vmatprep.subr.bf16.mxu0 0
    %999 = vmatpush1.bf16.msra.mxu0 0
    %1000 = vmatprep.subr.bf16.mxu0 0
    %1001 = vmatpush1.bf16.msra.mxu0 0
    %1002 = vmatprep.subr.bf16.mxu0 0
    %1003 = vmatpush1.bf16.msra.mxu0 0
    %1004 = vmatprep.subr.bf16.mxu0 0
    %1005 = vmatpush1.bf16.msra.mxu0 0
    %1006 = vmatprep.mubr.bf16.mxu0 0
    %1007 = vmatmul.mubr.bf16.gmra.mrb[0].mxu0 %v972
    %v1008 = vpop.f32.mrb[0].mxu0
    %v1009 = vadd.f32 0.0, %v1008
    %v1010 = vpop.f32.mrb[0].mxu0
    %v1011 = vadd.f32 0.0, %v1010
    %v1012 = vpop.f32.mrb[0].mxu0
    %v1013 = vpop.f32.mrb[0].mxu0
    %1014 = vdwg.mxu0
    %v1017 = vrot.slane %v1009, 2
    %v1018 = vrot.slane %v1011, 2
    %v1021 = vadd.f32 %v772, %v1017
    %v1022 = vadd.f32 %v773, %v1018
    %v1023 = vxor.u32 %v1021, 2147483648
    %v1024 = vxor.u32 %v1022, 2147483648
    %v1025 = vmul.f32 %v1023, 1.442695
    %v1026 = vpow.pop %v1025
    %v1027 = vmul.f32 %v1024, 1.442695
    %v1028 = vpow.pop %v1027
    %v1029 = vadd.f32 %v1026, 1.0
    %v1030 = vadd.f32 %v1028, 1.0
    %v1031 = vrcp.pop %v1029
    %v1032 = vmul.f32 1.0, %v1031
    %v1033 = vrcp.pop %v1030
    %v1034 = vmul.f32 1.0, %v1033
    %v1035 = vtanh.pop %v1022
    %v1037 = vrot.slane %v965, 2
    %1038 = vrot.lane.b32.xlu0 %v1037, 64
    %v1039 = vpop.permute.xlu0 %1038
    %v1041 = vmul.f32 %v1032, %v1039
    %1043 = vrot.lane.b32.xlu0 %v1035, 64
    %v1044 = vpop.permute.xlu0 %1043
    %v1046 = vmul.f32 %v1032, %v1044
    %1048 = vrot.lane.b32.xlu0 %v1046, 64
    %v1049 = vpop.permute.xlu0 %1048
    %v1051 = vadd.f32 %v1041, %v1049
    %v1052 = vtanh.pop %v1051
    %1054 = vrot.lane.b32.xlu0 %v1052, 64
    %v1055 = vpop.permute.xlu0 %1054
    %v1057 = vmul.f32 %v1034, %v1055
    %v1059 = vrot.slane %v1057, 6
    %v1061 = vsel %vm155, %v1059, %v969
    %v1063 = vrot.slane %v476, 6
    %v1066 = vrot.slane %v574, 4
    %v1069 = vrot.slane %v672, 2
    %v1072 = vrot.slane %v871, 6
    %v1075 = vrot.slane %v969, 4
    %v1078 = vrot.slane %v1061, 2
    %vm1080 = vcmask 1041408
    %v1081 = vsel %vm1080, %v372, %v1063
    %vm1082 = vcmask 1043456
    %v1083 = vsel %vm1082, %v1081, %v1066
    %vm1084 = vcmask 1045504
    %v1085 = vsel %vm1084, %v1083, %v1069
    %v1086 = vsel %vm1080, %v767, %v1072
    %v1087 = vsel %vm1082, %v1086, %v1075
    %v1088 = vsel %vm1084, %v1087, %v1078
    %v1089 = vrot.slane %v969, 6
    %v1091 = vrot.slane %v871, 4
    %v1094 = vrot.slane %v767, 2
    %v1096 = vrot.slane %v574, 6
    %v1098 = vrot.slane %v476, 4
    %v1101 = vrot.slane %v372, 2
    %v1103 = vsel %vm1080, %v1061, %v1089
    %v1104 = vsel %vm1082, %v1103, %v1091
    %v1105 = vsel %vm1084, %v1104, %v1094
    %v1106 = vsel %vm1080, %v672, %v1096
    %v1107 = vsel %vm1082, %v1106, %v1098
    %v1108 = vsel %vm1084, %v1107, %v1101
    %vm1109 = vcmask 261120
    %v1110 = vsel %vm1109, %v1085, %v1105
    %v1111 = vsel %vm1109, %v1088, %v1108
    %v1112 = vpack.c.bf16 %v1111, %v1110
    %v1113 = vld [vmem:[%s5] sm:$0xff]
    %v1114 = vld [vmem:[%s5 + $0x8] sm:$0xff]
    %v1115 = vld [vmem:[%s5 + $0x10] sm:$0xff]
    %v1116 = vld [vmem:[%s5 + $0x18] sm:$0xff]
    %v1117 = vld [vmem:[%s5 + $0x20] sm:$0xff]
    %v1118 = vld [vmem:[%s5 + $0x28] sm:$0xff]
    %v1119 = vld [vmem:[%s5 + $0x30] sm:$0xff]
    %v1120 = vld [vmem:[%s5 + $0x38] sm:$0xff]
    %v1121 = vld [vmem:[#allocation5] sm:$0xff]
    %v1122 = vld [vmem:[#allocation5 + $0x8] sm:$0xff]
    %v1123 = vld [vmem:[#allocation5 + $0x10] sm:$0xff]
    %v1124 = vld [vmem:[#allocation5 + $0x18] sm:$0xff]
    %v1125 = vld [vmem:[#allocation5 + $0x20] sm:$0xff]
    %v1126 = vld [vmem:[#allocation5 + $0x28] sm:$0xff]
    %v1127 = vld [vmem:[#allocation5 + $0x30] sm:$0xff]
    %v1128 = vld [vmem:[#allocation5 + $0x38] sm:$0xff]
    %v1129 = vld [vmem:[#allocation7] sm:$0x3]
    %v1131 = vlaneseq
    %v1132 = vshrl.u32 %v1131, 7
    %v1133 = vsub.s32 0, %v1132
    %v1134 = vrot.slane %v1129, %v1133
    %v1135 = vlaneseq
    %v1136 = vshrl.u32 %v1135, 7
    %v1137 = vsub.s32 1, %v1136
    %v1138 = vrot.slane %v1129, %v1137
    %v1149 = vunpack.c.l.b16 %v1113
    %v1150 = vunpack.c.h.b16 %v1113
    %v1151 = vunpack.c.l.b16 %v1114
    %v1152 = vunpack.c.h.b16 %v1114
    %v1153 = vunpack.c.l.b16 %v1115
    %v1154 = vunpack.c.h.b16 %v1115
    %v1155 = vunpack.c.l.b16 %v1116
    %v1156 = vunpack.c.h.b16 %v1116
    %v1157 = vunpack.c.l.b16 %v1117
    %v1158 = vunpack.c.h.b16 %v1117
    %v1159 = vunpack.c.l.b16 %v1118
    %v1160 = vunpack.c.h.b16 %v1118
    %v1161 = vunpack.c.l.b16 %v1119
    %v1162 = vunpack.c.h.b16 %v1119
    %v1163 = vunpack.c.l.b16 %v1120
    %v1164 = vunpack.c.h.b16 %v1120
    %v1165 = vpack.c.b16 %v1151, %v1149
    %v1166 = vpack.c.b16 %v1152, %v1150
    %v1167 = vpack.c.b16 %v1155, %v1153
    %v1168 = vpack.c.b16 %v1156, %v1154
    %v1169 = vpack.c.b16 %v1159, %v1157
    %v1170 = vpack.c.b16 %v1160, %v1158
    %v1171 = vpack.c.b16 %v1163, %v1161
    %v1172 = vpack.c.b16 %v1164, %v1162
    %v1182 = vsel %vm290, %v1112, 0
    %1184 = vmatprep.subr.bf16.mxu0 %v1166
    %1185 = vmatpush1.bf16.msra.mxu0 %v1165
    %1186 = vmatprep.subr.bf16.mxu0 %v1168
    %1187 = vmatpush1.bf16.msra.mxu0 %v1167
    %1188 = vmatprep.subr.bf16.mxu0 %v1170
    %1189 = vmatpush1.bf16.msra.mxu0 %v1169
    %1190 = vmatprep.subr.bf16.mxu0 %v1172
    %1191 = vmatpush1.bf16.msra.mxu0 %v1171
    %1192 = vmatprep.subr.bf16.mxu0 0
    %1193 = vmatpush1.bf16.msra.mxu0 0
    %1194 = vmatprep.subr.bf16.mxu0 0
    %1195 = vmatpush1.bf16.msra.mxu0 0
    %1196 = vmatprep.subr.bf16.mxu0 0
    %1197 = vmatpush1.bf16.msra.mxu0 0
    %1198 = vmatprep.subr.bf16.mxu0 0
    %1199 = vmatpush1.bf16.msra.mxu0 0
    %1200 = vmatprep.subr.bf16.mxu0 0
    %1201 = vmatpush1.bf16.msra.mxu0 0
    %1202 = vmatprep.subr.bf16.mxu0 0
    %1203 = vmatpush1.bf16.msra.mxu0 0
    %1204 = vmatprep.subr.bf16.mxu0 0
    %1205 = vmatpush1.bf16.msra.mxu0 0
    %1206 = vmatprep.subr.bf16.mxu0 0
    %1207 = vmatpush1.bf16.msra.mxu0 0
    %1208 = vmatprep.subr.bf16.mxu0 0
    %1209 = vmatpush1.bf16.msra.mxu0 0
    %1210 = vmatprep.subr.bf16.mxu0 0
    %1211 = vmatpush1.bf16.msra.mxu0 0
    %1212 = vmatprep.subr.bf16.mxu0 0
    %1213 = vmatpush1.bf16.msra.mxu0 0
    %1214 = vmatprep.subr.bf16.mxu0 0
    %1215 = vmatpush1.bf16.msra.mxu0 0
    %1216 = vmatprep.mubr.bf16.mxu0 0
    %1217 = vmatmul.mubr.bf16.gmra.mrb[0].mxu0 %v1182
    %v1218 = vpop.f32.mrb[0].mxu0
    %v1219 = vadd.f32 %v1134, %v1218
    %v1220 = vpop.f32.mrb[0].mxu0
    %v1221 = vadd.f32 %v1138, %v1220
    %v1222 = vpop.f32.mrb[0].mxu0
    %v1223 = vadd.f32 %v1134, %v1222
    %v1224 = vpop.f32.mrb[0].mxu0
    %v1225 = vadd.f32 %v1138, %v1224
    %1226 = vdwg.mxu0
    %v1229 = vrot.slane %v1223, 6
    %v1230 = vrot.slane %v1225, 6
    %v1233 = vsel %vm240, %v1219, %v1229
    %v1234 = vsel %vm241, %v1221, %v1230
    %v1243 = vunpack.c.l.b16 %v1121
    %v1244 = vunpack.c.h.b16 %v1121
    %v1245 = vunpack.c.l.b16 %v1122
    %v1246 = vunpack.c.h.b16 %v1122
    %v1247 = vunpack.c.l.b16 %v1123
    %v1248 = vunpack.c.h.b16 %v1123
    %v1249 = vunpack.c.l.b16 %v1124
    %v1250 = vunpack.c.h.b16 %v1124
    %v1251 = vunpack.c.l.b16 %v1125
    %v1252 = vunpack.c.h.b16 %v1125
    %v1253 = vunpack.c.l.b16 %v1126
    %v1254 = vunpack.c.h.b16 %v1126
    %v1255 = vunpack.c.l.b16 %v1127
    %v1256 = vunpack.c.h.b16 %v1127
    %v1257 = vunpack.c.l.b16 %v1128
    %v1258 = vunpack.c.h.b16 %v1128
    %v1259 = vpack.c.b16 %v1245, %v1243
    %v1260 = vpack.c.b16 %v1246, %v1244
    %v1261 = vpack.c.b16 %v1249, %v1247
    %v1262 = vpack.c.b16 %v1250, %v1248
    %v1263 = vpack.c.b16 %v1253, %v1251
    %v1264 = vpack.c.b16 %v1254, %v1252
    %v1265 = vpack.c.b16 %v1257, %v1255
    %v1266 = vpack.c.b16 %v1258, %v1256
    %1275 = vmatprep.subr.bf16.mxu0 %v1260
    %1276 = vmatpush1.bf16.msra.mxu0 %v1259
    %1277 = vmatprep.subr.bf16.mxu0 %v1262
    %1278 = vmatpush1.bf16.msra.mxu0 %v1261
    %1279 = vmatprep.subr.bf16.mxu0 %v1264
    %1280 = vmatpush1.bf16.msra.mxu0 %v1263
    %1281 = vmatprep.subr.bf16.mxu0 %v1266
    %1282 = vmatpush1.bf16.msra.mxu0 %v1265
    %1283 = vmatprep.subr.bf16.mxu0 0
    %1284 = vmatpush1.bf16.msra.mxu0 0
    %1285 = vmatprep.subr.bf16.mxu0 0
    %1286 = vmatpush1.bf16.msra.mxu0 0
    %1287 = vmatprep.subr.bf16.mxu0 0
    %1288 = vmatpush1.bf16.msra.mxu0 0
    %1289 = vmatprep.subr.bf16.mxu0 0
    %1290 = vmatpush1.bf16.msra.mxu0 0
    %1291 = vmatprep.subr.bf16.mxu0 0
    %1292 = vmatpush1.bf16.msra.mxu0 0
    %1293 = vmatprep.subr.bf16.mxu0 0
    %1294 = vmatpush1.bf16.msra.mxu0 0
    %1295 = vmatprep.subr.bf16.mxu0 0
    %1296 = vmatpush1.bf16.msra.mxu0 0
    %1297 = vmatprep.subr.bf16.mxu0 0
    %1298 = vmatpush1.bf16.msra.mxu0 0
    %1299 = vmatprep.subr.bf16.mxu0 0
    %1300 = vmatpush1.bf16.msra.mxu0 0
    %1301 = vmatprep.subr.bf16.mxu0 0
    %1302 = vmatpush1.bf16.msra.mxu0 0
    %1303 = vmatprep.subr.bf16.mxu0 0
    %1304 = vmatpush1.bf16.msra.mxu0 0
    %1305 = vmatprep.subr.bf16.mxu0 0
    %1306 = vmatpush1.bf16.msra.mxu0 0
    %1307 = vmatprep.mubr.bf16.mxu0 0
    %1308 = vmatmul.mubr.bf16.gmra.mrb[0].mxu0 %v292
    %v1309 = vpop.f32.mrb[0].mxu0
    %v1310 = vadd.f32 0.0, %v1309
    %v1311 = vpop.f32.mrb[0].mxu0
    %v1312 = vadd.f32 0.0, %v1311
    %v1313 = vpop.f32.mrb[0].mxu0
    %v1314 = vpop.f32.mrb[0].mxu0
    %1315 = vdwg.mxu0
    %v1316 = vadd.f32 %v1233, %v1310
    %v1317 = vadd.f32 %v1234, %v1312
    %v1318 = vxor.u32 %v1316, 2147483648
    %v1319 = vxor.u32 %v1317, 2147483648
    %v1320 = vmul.f32 %v1318, 1.442695
    %v1321 = vpow.pop %v1320
    %v1322 = vmul.f32 %v1319, 1.442695
    %v1323 = vpow.pop %v1322
    %v1324 = vadd.f32 %v1321, 1.0
    %v1325 = vadd.f32 %v1323, 1.0
    %v1326 = vrcp.pop %v1324
    %v1327 = vmul.f32 1.0, %v1326
    %v1328 = vrcp.pop %v1325
    %v1329 = vmul.f32 1.0, %v1328
    %v1330 = vtanh.pop %v1317
    %v1331 = vmul.f32 %v1327, 0.0
    %1333 = vrot.lane.b32.xlu0 %v1330, 64
    %v1334 = vpop.permute.xlu0 %1333
    %v1336 = vmul.f32 %v1327, %v1334
    %1338 = vrot.lane.b32.xlu0 %v1336, 64
    %v1339 = vpop.permute.xlu0 %1338
    %v1341 = vadd.f32 %v1331, %v1339
    %v1342 = vtanh.pop %v1341
    %1344 = vrot.lane.b32.xlu0 %v1342, 64
    %v1345 = vpop.permute.xlu0 %1344
    %v1347 = vmul.f32 %v1329, %v1345
    %1349 = vrot.lane.b32.xlu0 %v1341, 64
    %v1350 = vpop.permute.xlu0 %1349
    %v1352 = vsel %vm141, %v1350, 0.0
    %v1353 = vsel %vm141, %v1347, 0.0
    %v1354 = vrot.slane %v1223, 2
    %v1355 = vrot.slane %v1225, 2
    %v1358 = vsel %vm240, %v1219, %v1354
    %v1359 = vsel %vm241, %v1221, %v1355
    %v1360 = vpack.c.bf16 %v1353, %v1353
    %v1362 = vsel %vm290, %v1360, 0
    %1364 = vmatprep.subr.bf16.mxu0 %v1260
    %1365 = vmatpush1.bf16.msra.mxu0 %v1259
    %1366 = vmatprep.subr.bf16.mxu0 %v1262
    %1367 = vmatpush1.bf16.msra.mxu0 %v1261
    %1368 = vmatprep.subr.bf16.mxu0 %v1264
    %1369 = vmatpush1.bf16.msra.mxu0 %v1263
    %1370 = vmatprep.subr.bf16.mxu0 %v1266
    %1371 = vmatpush1.bf16.msra.mxu0 %v1265
    %1372 = vmatprep.subr.bf16.mxu0 0
    %1373 = vmatpush1.bf16.msra.mxu0 0
    %1374 = vmatprep.subr.bf16.mxu0 0
    %1375 = vmatpush1.bf16.msra.mxu0 0
    %1376 = vmatprep.subr.bf16.mxu0 0
    %1377 = vmatpush1.bf16.msra.mxu0 0
    %1378 = vmatprep.subr.bf16.mxu0 0
    %1379 = vmatpush1.bf16.msra.mxu0 0
    %1380 = vmatprep.subr.bf16.mxu0 0
    %1381 = vmatpush1.bf16.msra.mxu0 0
    %1382 = vmatprep.subr.bf16.mxu0 0
    %1383 = vmatpush1.bf16.msra.mxu0 0
    %1384 = vmatprep.subr.bf16.mxu0 0
    %1385 = vmatpush1.bf16.msra.mxu0 0
    %1386 = vmatprep.subr.bf16.mxu0 0
    %1387 = vmatpush1.bf16.msra.mxu0 0
    %1388 = vmatprep.subr.bf16.mxu0 0
    %1389 = vmatpush1.bf16.msra.mxu0 0
    %1390 = vmatprep.subr.bf16.mxu0 0
    %1391 = vmatpush1.bf16.msra.mxu0 0
    %1392 = vmatprep.subr.bf16.mxu0 0
    %1393 = vmatpush1.bf16.msra.mxu0 0
    %1394 = vmatprep.subr.bf16.mxu0 0
    %1395 = vmatpush1.bf16.msra.mxu0 0
    %1396 = vmatprep.mubr.bf16.mxu0 0
    %1397 = vmatmul.mubr.bf16.gmra.mrb[0].mxu0 %v1362
    %v1398 = vpop.f32.mrb[0].mxu0
    %v1399 = vadd.f32 0.0, %v1398
    %v1400 = vpop.f32.mrb[0].mxu0
    %v1401 = vadd.f32 0.0, %v1400
    %v1402 = vpop.f32.mrb[0].mxu0
    %v1403 = vpop.f32.mrb[0].mxu0
    %1404 = vdwg.mxu0
    %v1407 = vrot.slane %v1399, 6
    %v1408 = vrot.slane %v1401, 6
    %v1411 = vadd.f32 %v1358, %v1407
    %v1412 = vadd.f32 %v1359, %v1408
    %v1413 = vxor.u32 %v1411, 2147483648
    %v1414 = vxor.u32 %v1412, 2147483648
    %v1415 = vmul.f32 %v1413, 1.442695
    %v1416 = vpow.pop %v1415
    %v1417 = vmul.f32 %v1414, 1.442695
    %v1418 = vpow.pop %v1417
    %v1419 = vadd.f32 %v1416, 1.0
    %v1420 = vadd.f32 %v1418, 1.0
    %v1421 = vrcp.pop %v1419
    %v1422 = vmul.f32 1.0, %v1421
    %v1423 = vrcp.pop %v1420
    %v1424 = vmul.f32 1.0, %v1423
    %v1425 = vtanh.pop %v1412
    %v1427 = vrot.slane %v1352, 6
    %1428 = vrot.lane.b32.xlu0 %v1427, 64
    %v1429 = vpop.permute.xlu0 %1428
    %v1431 = vmul.f32 %v1422, %v1429
    %1433 = vrot.lane.b32.xlu0 %v1425, 64
    %v1434 = vpop.permute.xlu0 %1433
    %v1436 = vmul.f32 %v1422, %v1434
    %1438 = vrot.lane.b32.xlu0 %v1436, 64
    %v1439 = vpop.permute.xlu0 %1438
    %v1441 = vadd.f32 %v1431, %v1439
    %v1442 = vtanh.pop %v1441
    %1444 = vrot.lane.b32.xlu0 %v1442, 64
    %v1445 = vpop.permute.xlu0 %1444
    %v1447 = vmul.f32 %v1424, %v1445
    %v1449 = vrot.slane %v1441, 2
    %1450 = vrot.lane.b32.xlu0 %v1449, 64
    %v1451 = vpop.permute.xlu0 %1450
    %v1453 = vsel %vm143, %v1451, %v1352
    %v1455 = vrot.slane %v1447, 2
    %v1457 = vsel %vm143, %v1455, %v1353
    %v1458 = vpack.c.bf16 %v1457, %v1457
    %v1460 = vsel %vm290, %v1458, 0
    %1462 = vmatprep.subr.bf16.mxu0 %v1260
    %1463 = vmatpush1.bf16.msra.mxu0 %v1259
    %1464 = vmatprep.subr.bf16.mxu0 %v1262
    %1465 = vmatpush1.bf16.msra.mxu0 %v1261
    %1466 = vmatprep.subr.bf16.mxu0 %v1264
    %1467 = vmatpush1.bf16.msra.mxu0 %v1263
    %1468 = vmatprep.subr.bf16.mxu0 %v1266
    %1469 = vmatpush1.bf16.msra.mxu0 %v1265
    %1470 = vmatprep.subr.bf16.mxu0 0
    %1471 = vmatpush1.bf16.msra.mxu0 0
    %1472 = vmatprep.subr.bf16.mxu0 0
    %1473 = vmatpush1.bf16.msra.mxu0 0
    %1474 = vmatprep.subr.bf16.mxu0 0
    %1475 = vmatpush1.bf16.msra.mxu0 0
    %1476 = vmatprep.subr.bf16.mxu0 0
    %1477 = vmatpush1.bf16.msra.mxu0 0
    %1478 = vmatprep.subr.bf16.mxu0 0
    %1479 = vmatpush1.bf16.msra.mxu0 0
    %1480 = vmatprep.subr.bf16.mxu0 0
    %1481 = vmatpush1.bf16.msra.mxu0 0
    %1482 = vmatprep.subr.bf16.mxu0 0
    %1483 = vmatpush1.bf16.msra.mxu0 0
    %1484 = vmatprep.subr.bf16.mxu0 0
    %1485 = vmatpush1.bf16.msra.mxu0 0
    %1486 = vmatprep.subr.bf16.mxu0 0
    %1487 = vmatpush1.bf16.msra.mxu0 0
    %1488 = vmatprep.subr.bf16.mxu0 0
    %1489 = vmatpush1.bf16.msra.mxu0 0
    %1490 = vmatprep.subr.bf16.mxu0 0
    %1491 = vmatpush1.bf16.msra.mxu0 0
    %1492 = vmatprep.subr.bf16.mxu0 0
    %1493 = vmatpush1.bf16.msra.mxu0 0
    %1494 = vmatprep.mubr.bf16.mxu0 0
    %1495 = vmatmul.mubr.bf16.gmra.mrb[0].mxu0 %v1460
    %v1496 = vpop.f32.mrb[0].mxu0
    %v1497 = vadd.f32 0.0, %v1496
    %v1498 = vpop.f32.mrb[0].mxu0
    %v1499 = vadd.f32 0.0, %v1498
    %v1500 = vpop.f32.mrb[0].mxu0
    %v1501 = vpop.f32.mrb[0].mxu0
    %1502 = vdwg.mxu0
    %v1505 = vrot.slane %v1497, 4
    %v1506 = vrot.slane %v1499, 4
    %v1509 = vadd.f32 %v1233, %v1505
    %v1510 = vadd.f32 %v1234, %v1506
    %v1511 = vxor.u32 %v1509, 2147483648
    %v1512 = vxor.u32 %v1510, 2147483648
    %v1513 = vmul.f32 %v1511, 1.442695
    %v1514 = vpow.pop %v1513
    %v1515 = vmul.f32 %v1512, 1.442695
    %v1516 = vpow.pop %v1515
    %v1517 = vadd.f32 %v1514, 1.0
    %v1518 = vadd.f32 %v1516, 1.0
    %v1519 = vrcp.pop %v1517
    %v1520 = vmul.f32 1.0, %v1519
    %v1521 = vrcp.pop %v1518
    %v1522 = vmul.f32 1.0, %v1521
    %v1523 = vtanh.pop %v1510
    %v1525 = vrot.slane %v1453, 4
    %1526 = vrot.lane.b32.xlu0 %v1525, 64
    %v1527 = vpop.permute.xlu0 %1526
    %v1529 = vmul.f32 %v1520, %v1527
    %1531 = vrot.lane.b32.xlu0 %v1523, 64
    %v1532 = vpop.permute.xlu0 %1531
    %v1534 = vmul.f32 %v1520, %v1532
    %1536 = vrot.lane.b32.xlu0 %v1534, 64
    %v1537 = vpop.permute.xlu0 %1536
    %v1539 = vadd.f32 %v1529, %v1537
    %v1540 = vtanh.pop %v1539
    %1542 = vrot.lane.b32.xlu0 %v1540, 64
    %v1543 = vpop.permute.xlu0 %1542
    %v1545 = vmul.f32 %v1522, %v1543
    %v1547 = vrot.slane %v1539, 4
    %1548 = vrot.lane.b32.xlu0 %v1547, 64
    %v1549 = vpop.permute.xlu0 %1548
    %v1551 = vsel %vm145, %v1549, %v1453
    %v1553 = vrot.slane %v1545, 4
    %v1555 = vsel %vm145, %v1553, %v1457
    %v1556 = vpack.c.bf16 %v1555, %v1555
    %v1558 = vsel %vm290, %v1556, 0
    %1560 = vmatprep.subr.bf16.mxu0 %v1260
    %1561 = vmatpush1.bf16.msra.mxu0 %v1259
    %1562 = vmatprep.subr.bf16.mxu0 %v1262
    %1563 = vmatpush1.bf16.msra.mxu0 %v1261
    %1564 = vmatprep.subr.bf16.mxu0 %v1264
    %1565 = vmatpush1.bf16.msra.mxu0 %v1263
    %1566 = vmatprep.subr.bf16.mxu0 %v1266
    %1567 = vmatpush1.bf16.msra.mxu0 %v1265
    %1568 = vmatprep.subr.bf16.mxu0 0
    %1569 = vmatpush1.bf16.msra.mxu0 0
    %1570 = vmatprep.subr.bf16.mxu0 0
    %1571 = vmatpush1.bf16.msra.mxu0 0
    %1572 = vmatprep.subr.bf16.mxu0 0
    %1573 = vmatpush1.bf16.msra.mxu0 0
    %1574 = vmatprep.subr.bf16.mxu0 0
    %1575 = vmatpush1.bf16.msra.mxu0 0
    %1576 = vmatprep.subr.bf16.mxu0 0
    %1577 = vmatpush1.bf16.msra.mxu0 0
    %1578 = vmatprep.subr.bf16.mxu0 0
    %1579 = vmatpush1.bf16.msra.mxu0 0
    %1580 = vmatprep.subr.bf16.mxu0 0
    %1581 = vmatpush1.bf16.msra.mxu0 0
    %1582 = vmatprep.subr.bf16.mxu0 0
    %1583 = vmatpush1.bf16.msra.mxu0 0
    %1584 = vmatprep.subr.bf16.mxu0 0
    %1585 = vmatpush1.bf16.msra.mxu0 0
    %1586 = vmatprep.subr.bf16.mxu0 0
    %1587 = vmatpush1.bf16.msra.mxu0 0
    %1588 = vmatprep.subr.bf16.mxu0 0
    %1589 = vmatpush1.bf16.msra.mxu0 0
    %1590 = vmatprep.subr.bf16.mxu0 0
    %1591 = vmatpush1.bf16.msra.mxu0 0
    %1592 = vmatprep.mubr.bf16.mxu0 0
    %1593 = vmatmul.mubr.bf16.gmra.mrb[0].mxu0 %v1558
    %v1594 = vpop.f32.mrb[0].mxu0
    %v1595 = vadd.f32 0.0, %v1594
    %v1596 = vpop.f32.mrb[0].mxu0
    %v1597 = vadd.f32 0.0, %v1596
    %v1598 = vpop.f32.mrb[0].mxu0
    %v1599 = vpop.f32.mrb[0].mxu0
    %1600 = vdwg.mxu0
    %v1603 = vrot.slane %v1595, 2
    %v1604 = vrot.slane %v1597, 2
    %v1607 = vadd.f32 %v1358, %v1603
    %v1608 = vadd.f32 %v1359, %v1604
    %v1609 = vxor.u32 %v1607, 2147483648
    %v1610 = vxor.u32 %v1608, 2147483648
    %v1611 = vmul.f32 %v1609, 1.442695
    %v1612 = vpow.pop %v1611
    %v1613 = vmul.f32 %v1610, 1.442695
    %v1614 = vpow.pop %v1613
    %v1615 = vadd.f32 %v1612, 1.0
    %v1616 = vadd.f32 %v1614, 1.0
    %v1617 = vrcp.pop %v1615
    %v1618 = vmul.f32 1.0, %v1617
    %v1619 = vrcp.pop %v1616
    %v1620 = vmul.f32 1.0, %v1619
    %v1621 = vtanh.pop %v1608
    %v1623 = vrot.slane %v1551, 2
    %1624 = vrot.lane.b32.xlu0 %v1623, 64
    %v1625 = vpop.permute.xlu0 %1624
    %v1627 = vmul.f32 %v1618, %v1625
    %1629 = vrot.lane.b32.xlu0 %v1621, 64
    %v1630 = vpop.permute.xlu0 %1629
    %v1632 = vmul.f32 %v1618, %v1630
    %1634 = vrot.lane.b32.xlu0 %v1632, 64
    %v1635 = vpop.permute.xlu0 %1634
    %v1637 = vadd.f32 %v1627, %v1635
    %v1638 = vtanh.pop %v1637
    %1640 = vrot.lane.b32.xlu0 %v1638, 64
    %v1641 = vpop.permute.xlu0 %1640
    %v1643 = vmul.f32 %v1620, %v1641
    %v1645 = vrot.slane %v1637, 6
    %1646 = vrot.lane.b32.xlu0 %v1645, 64
    %v1647 = vpop.permute.xlu0 %1646
    %v1649 = vsel %vm147, %v1647, %v1551
    %v1651 = vrot.slane %v1643, 6
    %v1653 = vsel %vm147, %v1651, %v1555
    %v1656 = vrot.slane %v1219, 6
    %v1657 = vrot.slane %v1221, 6
    %v1660 = vsel %vm240, %v1223, %v1656
    %v1661 = vsel %vm241, %v1225, %v1657
    %v1662 = vpack.c.bf16 %v1653, %v1653
    %v1664 = vsel %vm290, %v1662, 0
    %1666 = vmatprep.subr.bf16.mxu0 %v1260
    %1667 = vmatpush1.bf16.msra.mxu0 %v1259
    %1668 = vmatprep.subr.bf16.mxu0 %v1262
    %1669 = vmatpush1.bf16.msra.mxu0 %v1261
    %1670 = vmatprep.subr.bf16.mxu0 %v1264
    %1671 = vmatpush1.bf16.msra.mxu0 %v1263
    %1672 = vmatprep.subr.bf16.mxu0 %v1266
    %1673 = vmatpush1.bf16.msra.mxu0 %v1265
    %1674 = vmatprep.subr.bf16.mxu0 0
    %1675 = vmatpush1.bf16.msra.mxu0 0
    %1676 = vmatprep.subr.bf16.mxu0 0
    %1677 = vmatpush1.bf16.msra.mxu0 0
    %1678 = vmatprep.subr.bf16.mxu0 0
    %1679 = vmatpush1.bf16.msra.mxu0 0
    %1680 = vmatprep.subr.bf16.mxu0 0
    %1681 = vmatpush1.bf16.msra.mxu0 0
    %1682 = vmatprep.subr.bf16.mxu0 0
    %1683 = vmatpush1.bf16.msra.mxu0 0
    %1684 = vmatprep.subr.bf16.mxu0 0
    %1685 = vmatpush1.bf16.msra.mxu0 0
    %1686 = vmatprep.subr.bf16.mxu0 0
    %1687 = vmatpush1.bf16.msra.mxu0 0
    %1688 = vmatprep.subr.bf16.mxu0 0
    %1689 = vmatpush1.bf16.msra.mxu0 0
    %1690 = vmatprep.subr.bf16.mxu0 0
    %1691 = vmatpush1.bf16.msra.mxu0 0
    %1692 = vmatprep.subr.bf16.mxu0 0
    %1693 = vmatpush1.bf16.msra.mxu0 0
    %1694 = vmatprep.subr.bf16.mxu0 0
    %1695 = vmatpush1.bf16.msra.mxu0 0
    %1696 = vmatprep.subr.bf16.mxu0 0
    %1697 = vmatpush1.bf16.msra.mxu0 0
    %1698 = vmatprep.mubr.bf16.mxu0 0
    %1699 = vmatmul.mubr.bf16.gmra.mrb[0].mxu0 %v1664
    %v1700 = vpop.f32.mrb[0].mxu0
    %v1701 = vadd.f32 0.0, %v1700
    %v1702 = vpop.f32.mrb[0].mxu0
    %v1703 = vadd.f32 0.0, %v1702
    %v1704 = vpop.f32.mrb[0].mxu0
    %v1705 = vpop.f32.mrb[0].mxu0
    %1706 = vdwg.mxu0
    %v1707 = vadd.f32 %v1660, %v1701
    %v1708 = vadd.f32 %v1661, %v1703
    %v1709 = vxor.u32 %v1707, 2147483648
    %v1710 = vxor.u32 %v1708, 2147483648
    %v1711 = vmul.f32 %v1709, 1.442695
    %v1712 = vpow.pop %v1711
    %v1713 = vmul.f32 %v1710, 1.442695
    %v1714 = vpow.pop %v1713
    %v1715 = vadd.f32 %v1712, 1.0
    %v1716 = vadd.f32 %v1714, 1.0
    %v1717 = vrcp.pop %v1715
    %v1718 = vmul.f32 1.0, %v1717
    %v1719 = vrcp.pop %v1716
    %v1720 = vmul.f32 1.0, %v1719
    %v1721 = vtanh.pop %v1708
    %1723 = vrot.lane.b32.xlu0 %v1649, 64
    %v1724 = vpop.permute.xlu0 %1723
    %v1726 = vmul.f32 %v1718, %v1724
    %1728 = vrot.lane.b32.xlu0 %v1721, 64
    %v1729 = vpop.permute.xlu0 %1728
    %v1731 = vmul.f32 %v1718, %v1729
    %1733 = vrot.lane.b32.xlu0 %v1731, 64
    %v1734 = vpop.permute.xlu0 %1733
    %v1736 = vadd.f32 %v1726, %v1734
    %v1737 = vtanh.pop %v1736
    %1739 = vrot.lane.b32.xlu0 %v1737, 64
    %v1740 = vpop.permute.xlu0 %1739
    %v1742 = vmul.f32 %v1720, %v1740
    %1744 = vrot.lane.b32.xlu0 %v1736, 64
    %v1745 = vpop.permute.xlu0 %1744
    %v1747 = vsel %vm149, %v1745, %v1649
    %v1748 = vsel %vm149, %v1742, %v1653
    %v1749 = vrot.slane %v1219, 2
    %v1750 = vrot.slane %v1221, 2
    %v1753 = vsel %vm240, %v1223, %v1749
    %v1754 = vsel %vm241, %v1225, %v1750
    %v1755 = vpack.c.bf16 %v1748, %v1748
    %v1757 = vsel %vm290, %v1755, 0
    %1759 = vmatprep.subr.bf16.mxu0 %v1260
    %1760 = vmatpush1.bf16.msra.mxu0 %v1259
    %1761 = vmatprep.subr.bf16.mxu0 %v1262
    %1762 = vmatpush1.bf16.msra.mxu0 %v1261
    %1763 = vmatprep.subr.bf16.mxu0 %v1264
    %1764 = vmatpush1.bf16.msra.mxu0 %v1263
    %1765 = vmatprep.subr.bf16.mxu0 %v1266
    %1766 = vmatpush1.bf16.msra.mxu0 %v1265
    %1767 = vmatprep.subr.bf16.mxu0 0
    %1768 = vmatpush1.bf16.msra.mxu0 0
    %1769 = vmatprep.subr.bf16.mxu0 0
    %1770 = vmatpush1.bf16.msra.mxu0 0
    %1771 = vmatprep.subr.bf16.mxu0 0
    %1772 = vmatpush1.bf16.msra.mxu0 0
    %1773 = vmatprep.subr.bf16.mxu0 0
    %1774 = vmatpush1.bf16.msra.mxu0 0
    %1775 = vmatprep.subr.bf16.mxu0 0
    %1776 = vmatpush1.bf16.msra.mxu0 0
    %1777 = vmatprep.subr.bf16.mxu0 0
    %1778 = vmatpush1.bf16.msra.mxu0 0
    %1779 = vmatprep.subr.bf16.mxu0 0
    %1780 = vmatpush1.bf16.msra.mxu0 0
    %1781 = vmatprep.subr.bf16.mxu0 0
    %1782 = vmatpush1.bf16.msra.mxu0 0
    %1783 = vmatprep.subr.bf16.mxu0 0
    %1784 = vmatpush1.bf16.msra.mxu0 0
    %1785 = vmatprep.subr.bf16.mxu0 0
    %1786 = vmatpush1.bf16.msra.mxu0 0
    %1787 = vmatprep.subr.bf16.mxu0 0
    %1788 = vmatpush1.bf16.msra.mxu0 0
    %1789 = vmatprep.subr.bf16.mxu0 0
    %1790 = vmatpush1.bf16.msra.mxu0 0
    %1791 = vmatprep.mubr.bf16.mxu0 0
    %1792 = vmatmul.mubr.bf16.gmra.mrb[0].mxu0 %v1757
    %v1793 = vpop.f32.mrb[0].mxu0
    %v1794 = vadd.f32 0.0, %v1793
    %v1795 = vpop.f32.mrb[0].mxu0
    %v1796 = vadd.f32 0.0, %v1795
    %v1797 = vpop.f32.mrb[0].mxu0
    %v1798 = vpop.f32.mrb[0].mxu0
    %1799 = vdwg.mxu0
    %v1802 = vrot.slane %v1794, 6
    %v1803 = vrot.slane %v1796, 6
    %v1806 = vadd.f32 %v1753, %v1802
    %v1807 = vadd.f32 %v1754, %v1803
    %v1808 = vxor.u32 %v1806, 2147483648
    %v1809 = vxor.u32 %v1807, 2147483648
    %v1810 = vmul.f32 %v1808, 1.442695
    %v1811 = vpow.pop %v1810
    %v1812 = vmul.f32 %v1809, 1.442695
    %v1813 = vpow.pop %v1812
    %v1814 = vadd.f32 %v1811, 1.0
    %v1815 = vadd.f32 %v1813, 1.0
    %v1816 = vrcp.pop %v1814
    %v1817 = vmul.f32 1.0, %v1816
    %v1818 = vrcp.pop %v1815
    %v1819 = vmul.f32 1.0, %v1818
    %v1820 = vtanh.pop %v1807
    %v1822 = vrot.slane %v1747, 6
    %1823 = vrot.lane.b32.xlu0 %v1822, 64
    %v1824 = vpop.permute.xlu0 %1823
    %v1826 = vmul.f32 %v1817, %v1824
    %1828 = vrot.lane.b32.xlu0 %v1820, 64
    %v1829 = vpop.permute.xlu0 %1828
    %v1831 = vmul.f32 %v1817, %v1829
    %1833 = vrot.lane.b32.xlu0 %v1831, 64
    %v1834 = vpop.permute.xlu0 %1833
    %v1836 = vadd.f32 %v1826, %v1834
    %v1837 = vtanh.pop %v1836
    %1839 = vrot.lane.b32.xlu0 %v1837, 64
    %v1840 = vpop.permute.xlu0 %1839
    %v1842 = vmul.f32 %v1819, %v1840
    %v1844 = vrot.slane %v1836, 2
    %1845 = vrot.lane.b32.xlu0 %v1844, 64
    %v1846 = vpop.permute.xlu0 %1845
    %v1848 = vsel %vm151, %v1846, %v1747
    %v1850 = vrot.slane %v1842, 2
    %v1852 = vsel %vm151, %v1850, %v1748
    %v1853 = vpack.c.bf16 %v1852, %v1852
    %v1855 = vsel %vm290, %v1853, 0
    %1857 = vmatprep.subr.bf16.mxu0 %v1260
    %1858 = vmatpush1.bf16.msra.mxu0 %v1259
    %1859 = vmatprep.subr.bf16.mxu0 %v1262
    %1860 = vmatpush1.bf16.msra.mxu0 %v1261
    %1861 = vmatprep.subr.bf16.mxu0 %v1264
    %1862 = vmatpush1.bf16.msra.mxu0 %v1263
    %1863 = vmatprep.subr.bf16.mxu0 %v1266
    %1864 = vmatpush1.bf16.msra.mxu0 %v1265
    %1865 = vmatprep.subr.bf16.mxu0 0
    %1866 = vmatpush1.bf16.msra.mxu0 0
    %1867 = vmatprep.subr.bf16.mxu0 0
    %1868 = vmatpush1.bf16.msra.mxu0 0
    %1869 = vmatprep.subr.bf16.mxu0 0
    %1870 = vmatpush1.bf16.msra.mxu0 0
    %1871 = vmatprep.subr.bf16.mxu0 0
    %1872 = vmatpush1.bf16.msra.mxu0 0
    %1873 = vmatprep.subr.bf16.mxu0 0
    %1874 = vmatpush1.bf16.msra.mxu0 0
    %1875 = vmatprep.subr.bf16.mxu0 0
    %1876 = vmatpush1.bf16.msra.mxu0 0
    %1877 = vmatprep.subr.bf16.mxu0 0
    %1878 = vmatpush1.bf16.msra.mxu0 0
    %1879 = vmatprep.subr.bf16.mxu0 0
    %1880 = vmatpush1.bf16.msra.mxu0 0
    %1881 = vmatprep.subr.bf16.mxu0 0
    %1882 = vmatpush1.bf16.msra.mxu0 0
    %1883 = vmatprep.subr.bf16.mxu0 0
    %1884 = vmatpush1.bf16.msra.mxu0 0
    %1885 = vmatprep.subr.bf16.mxu0 0
    %1886 = vmatpush1.bf16.msra.mxu0 0
    %1887 = vmatprep.subr.bf16.mxu0 0
    %1888 = vmatpush1.bf16.msra.mxu0 0
    %1889 = vmatprep.mubr.bf16.mxu0 0
    %1890 = vmatmul.mubr.bf16.gmra.mrb[0].mxu0 %v1855
    %v1891 = vpop.f32.mrb[0].mxu0
    %v1892 = vadd.f32 0.0, %v1891
    %v1893 = vpop.f32.mrb[0].mxu0
    %v1894 = vadd.f32 0.0, %v1893
    %v1895 = vpop.f32.mrb[0].mxu0
    %v1896 = vpop.f32.mrb[0].mxu0
    %1897 = vdwg.mxu0
    %v1900 = vrot.slane %v1892, 4
    %v1901 = vrot.slane %v1894, 4
    %v1904 = vadd.f32 %v1660, %v1900
    %v1905 = vadd.f32 %v1661, %v1901
    %v1906 = vxor.u32 %v1904, 2147483648
    %v1907 = vxor.u32 %v1905, 2147483648
    %v1908 = vmul.f32 %v1906, 1.442695
    %v1909 = vpow.pop %v1908
    %v1910 = vmul.f32 %v1907, 1.442695
    %v1911 = vpow.pop %v1910
    %v1912 = vadd.f32 %v1909, 1.0
    %v1913 = vadd.f32 %v1911, 1.0
    %v1914 = vrcp.pop %v1912
    %v1915 = vmul.f32 1.0, %v1914
    %v1916 = vrcp.pop %v1913
    %v1917 = vmul.f32 1.0, %v1916
    %v1918 = vtanh.pop %v1905
    %v1920 = vrot.slane %v1848, 4
    %1921 = vrot.lane.b32.xlu0 %v1920, 64
    %v1922 = vpop.permute.xlu0 %1921
    %v1924 = vmul.f32 %v1915, %v1922
    %1926 = vrot.lane.b32.xlu0 %v1918, 64
    %v1927 = vpop.permute.xlu0 %1926
    %v1929 = vmul.f32 %v1915, %v1927
    %1931 = vrot.lane.b32.xlu0 %v1929, 64
    %v1932 = vpop.permute.xlu0 %1931
    %v1934 = vadd.f32 %v1924, %v1932
    %v1935 = vtanh.pop %v1934
    %1937 = vrot.lane.b32.xlu0 %v1935, 64
    %v1938 = vpop.permute.xlu0 %1937
    %v1940 = vmul.f32 %v1917, %v1938
    %v1942 = vrot.slane %v1934, 4
    %1943 = vrot.lane.b32.xlu0 %v1942, 64
    %v1944 = vpop.permute.xlu0 %1943
    %v1946 = vsel %vm153, %v1944, %v1848
    %v1948 = vrot.slane %v1940, 4
    %v1950 = vsel %vm153, %v1948, %v1852
    %v1951 = vpack.c.bf16 %v1950, %v1950
    %v1953 = vsel %vm290, %v1951, 0
    %1955 = vmatprep.subr.bf16.mxu0 %v1260
    %1956 = vmatpush1.bf16.msra.mxu0 %v1259
    %1957 = vmatprep.subr.bf16.mxu0 %v1262
    %1958 = vmatpush1.bf16.msra.mxu0 %v1261
    %1959 = vmatprep.subr.bf16.mxu0 %v1264
    %1960 = vmatpush1.bf16.msra.mxu0 %v1263
    %1961 = vmatprep.subr.bf16.mxu0 %v1266
    %1962 = vmatpush1.bf16.msra.mxu0 %v1265
    %1963 = vmatprep.subr.bf16.mxu0 0
    %1964 = vmatpush1.bf16.msra.mxu0 0
    %1965 = vmatprep.subr.bf16.mxu0 0
    %1966 = vmatpush1.bf16.msra.mxu0 0
    %1967 = vmatprep.subr.bf16.mxu0 0
    %1968 = vmatpush1.bf16.msra.mxu0 0
    %1969 = vmatprep.subr.bf16.mxu0 0
    %1970 = vmatpush1.bf16.msra.mxu0 0
    %1971 = vmatprep.subr.bf16.mxu0 0
    %1972 = vmatpush1.bf16.msra.mxu0 0
    %1973 = vmatprep.subr.bf16.mxu0 0
    %1974 = vmatpush1.bf16.msra.mxu0 0
    %1975 = vmatprep.subr.bf16.mxu0 0
    %1976 = vmatpush1.bf16.msra.mxu0 0
    %1977 = vmatprep.subr.bf16.mxu0 0
    %1978 = vmatpush1.bf16.msra.mxu0 0
    %1979 = vmatprep.subr.bf16.mxu0 0
    %1980 = vmatpush1.bf16.msra.mxu0 0
    %1981 = vmatprep.subr.bf16.mxu0 0
    %1982 = vmatpush1.bf16.msra.mxu0 0
    %1983 = vmatprep.subr.bf16.mxu0 0
    %1984 = vmatpush1.bf16.msra.mxu0 0
    %1985 = vmatprep.subr.bf16.mxu0 0
    %1986 = vmatpush1.bf16.msra.mxu0 0
    %1987 = vmatprep.mubr.bf16.mxu0 0
    %1988 = vmatmul.mubr.bf16.gmra.mrb[0].mxu0 %v1953
    %v1989 = vpop.f32.mrb[0].mxu0
    %v1990 = vadd.f32 0.0, %v1989
    %v1991 = vpop.f32.mrb[0].mxu0
    %v1992 = vadd.f32 0.0, %v1991
    %v1993 = vpop.f32.mrb[0].mxu0
    %v1994 = vpop.f32.mrb[0].mxu0
    %1995 = vdwg.mxu0
    %v1998 = vrot.slane %v1990, 2
    %v1999 = vrot.slane %v1992, 2
    %v2002 = vadd.f32 %v1753, %v1998
    %v2003 = vadd.f32 %v1754, %v1999
    %v2004 = vxor.u32 %v2002, 2147483648
    %v2005 = vxor.u32 %v2003, 2147483648
    %v2006 = vmul.f32 %v2004, 1.442695
    %v2007 = vpow.pop %v2006
    %v2008 = vmul.f32 %v2005, 1.442695
    %v2009 = vpow.pop %v2008
    %v2010 = vadd.f32 %v2007, 1.0
    %v2011 = vadd.f32 %v2009, 1.0
    %v2012 = vrcp.pop %v2010
    %v2013 = vmul.f32 1.0, %v2012
    %v2014 = vrcp.pop %v2011
    %v2015 = vmul.f32 1.0, %v2014
    %v2016 = vtanh.pop %v2003
    %v2018 = vrot.slane %v1946, 2
    %2019 = vrot.lane.b32.xlu0 %v2018, 64
    %v2020 = vpop.permute.xlu0 %2019
    %v2022 = vmul.f32 %v2013, %v2020
    %2024 = vrot.lane.b32.xlu0 %v2016, 64
    %v2025 = vpop.permute.xlu0 %2024
    %v2027 = vmul.f32 %v2013, %v2025
    %2029 = vrot.lane.b32.xlu0 %v2027, 64
    %v2030 = vpop.permute.xlu0 %2029
    %v2032 = vadd.f32 %v2022, %v2030
    %v2033 = vtanh.pop %v2032
    %2035 = vrot.lane.b32.xlu0 %v2033, 64
    %v2036 = vpop.permute.xlu0 %2035
    %v2038 = vmul.f32 %v2015, %v2036
    %v2040 = vrot.slane %v2038, 6
    %v2042 = vsel %vm155, %v2040, %v1950
    %v2044 = vrot.slane %v1457, 6
    %v2047 = vrot.slane %v1555, 4
    %v2050 = vrot.slane %v1653, 2
    %v2053 = vrot.slane %v1852, 6
    %v2056 = vrot.slane %v1950, 4
    %v2059 = vrot.slane %v2042, 2
    %v2061 = vsel %vm1080, %v1353, %v2044
    %v2062 = vsel %vm1082, %v2061, %v2047
    %v2063 = vsel %vm1084, %v2062, %v2050
    %v2064 = vsel %vm1080, %v1748, %v2053
    %v2065 = vsel %vm1082, %v2064, %v2056
    %v2066 = vsel %vm1084, %v2065, %v2059
    %v2067 = vrot.slane %v1950, 6
    %v2069 = vrot.slane %v1852, 4
    %v2072 = vrot.slane %v1748, 2
    %v2074 = vrot.slane %v1555, 6
    %v2076 = vrot.slane %v1457, 4
    %v2079 = vrot.slane %v1353, 2
    %v2081 = vsel %vm1080, %v2042, %v2067
    %v2082 = vsel %vm1082, %v2081, %v2069
    %v2083 = vsel %vm1084, %v2082, %v2072
    %v2084 = vsel %vm1080, %v1653, %v2074
    %v2085 = vsel %vm1082, %v2084, %v2076
    %v2086 = vsel %vm1084, %v2085, %v2079
    %v2087 = vsel %vm1109, %v2063, %v2083
    %v2088 = vsel %vm1109, %v2066, %v2086
    %v2089 = vpack.c.bf16 %v2088, %v2087
    %v2090 = vld [vmem:[#allocation8] sm:$0xff]
    %v2091 = vld [vmem:[#allocation8 + $0x8] sm:$0xff]
    %v2092 = vld [vmem:[#allocation8 + $0x10] sm:$0xff]
    %v2093 = vld [vmem:[#allocation8 + $0x18] sm:$0xff]
    %v2094 = vld [vmem:[#allocation8 + $0x20] sm:$0xff]
    %v2095 = vld [vmem:[#allocation8 + $0x28] sm:$0xff]
    %v2096 = vld [vmem:[#allocation8 + $0x30] sm:$0xff]
    %v2097 = vld [vmem:[#allocation8 + $0x38] sm:$0xff]
    %v2098 = vld [vmem:[#allocation10] sm:$0xff]
    %v2099 = vld [vmem:[#allocation10 + $0x8] sm:$0xff]
    %v2100 = vld [vmem:[#allocation10 + $0x10] sm:$0xff]
    %v2101 = vld [vmem:[#allocation10 + $0x18] sm:$0xff]
    %v2102 = vld [vmem:[#allocation10 + $0x20] sm:$0xff]
    %v2103 = vld [vmem:[#allocation10 + $0x28] sm:$0xff]
    %v2104 = vld [vmem:[#allocation10 + $0x30] sm:$0xff]
    %v2105 = vld [vmem:[#allocation10 + $0x38] sm:$0xff]
    %v2106 = vld [vmem:[#allocation11] sm:$0x3]
    %v2108 = vlaneseq
    %v2109 = vshrl.u32 %v2108, 7
    %v2110 = vsub.s32 0, %v2109
    %v2111 = vrot.slane %v2106, %v2110
    %v2112 = vlaneseq
    %v2113 = vshrl.u32 %v2112, 7
    %v2114 = vsub.s32 1, %v2113
    %v2115 = vrot.slane %v2106, %v2114
    %v2126 = vunpack.c.l.b16 %v2090
    %v2127 = vunpack.c.h.b16 %v2090
    %v2128 = vunpack.c.l.b16 %v2091
    %v2129 = vunpack.c.h.b16 %v2091
    %v2130 = vunpack.c.l.b16 %v2092
    %v2131 = vunpack.c.h.b16 %v2092
    %v2132 = vunpack.c.l.b16 %v2093
    %v2133 = vunpack.c.h.b16 %v2093
    %v2134 = vunpack.c.l.b16 %v2094
    %v2135 = vunpack.c.h.b16 %v2094
    %v2136 = vunpack.c.l.b16 %v2095
    %v2137 = vunpack.c.h.b16 %v2095
    %v2138 = vunpack.c.l.b16 %v2096
    %v2139 = vunpack.c.h.b16 %v2096
    %v2140 = vunpack.c.l.b16 %v2097
    %v2141 = vunpack.c.h.b16 %v2097
    %v2142 = vpack.c.b16 %v2128, %v2126
    %v2143 = vpack.c.b16 %v2129, %v2127
    %v2144 = vpack.c.b16 %v2132, %v2130
    %v2145 = vpack.c.b16 %v2133, %v2131
    %v2146 = vpack.c.b16 %v2136, %v2134
    %v2147 = vpack.c.b16 %v2137, %v2135
    %v2148 = vpack.c.b16 %v2140, %v2138
    %v2149 = vpack.c.b16 %v2141, %v2139
    %v2159 = vsel %vm290, %v2089, 0
    %2161 = vmatprep.subr.bf16.mxu0 %v2143
    %2162 = vmatpush1.bf16.msra.mxu0 %v2142
    %2163 = vmatprep.subr.bf16.mxu0 %v2145
    %2164 = vmatpush1.bf16.msra.mxu0 %v2144
    %2165 = vmatprep.subr.bf16.mxu0 %v2147
    %2166 = vmatpush1.bf16.msra.mxu0 %v2146
    %2167 = vmatprep.subr.bf16.mxu0 %v2149
    %2168 = vmatpush1.bf16.msra.mxu0 %v2148
    %2169 = vmatprep.subr.bf16.mxu0 0
    %2170 = vmatpush1.bf16.msra.mxu0 0
    %2171 = vmatprep.subr.bf16.mxu0 0
    %2172 = vmatpush1.bf16.msra.mxu0 0
    %2173 = vmatprep.subr.bf16.mxu0 0
    %2174 = vmatpush1.bf16.msra.mxu0 0
    %2175 = vmatprep.subr.bf16.mxu0 0
    %2176 = vmatpush1.bf16.msra.mxu0 0
    %2177 = vmatprep.subr.bf16.mxu0 0
    %2178 = vmatpush1.bf16.msra.mxu0 0
    %2179 = vmatprep.subr.bf16.mxu0 0
    %2180 = vmatpush1.bf16.msra.mxu0 0
    %2181 = vmatprep.subr.bf16.mxu0 0
    %2182 = vmatpush1.bf16.msra.mxu0 0
    %2183 = vmatprep.subr.bf16.mxu0 0
    %2184 = vmatpush1.bf16.msra.mxu0 0
    %2185 = vmatprep.subr.bf16.mxu0 0
    %2186 = vmatpush1.bf16.msra.mxu0 0
    %2187 = vmatprep.subr.bf16.mxu0 0
    %2188 = vmatpush1.bf16.msra.mxu0 0
    %2189 = vmatprep.subr.bf16.mxu0 0
    %2190 = vmatpush1.bf16.msra.mxu0 0
    %2191 = vmatprep.subr.bf16.mxu0 0
    %2192 = vmatpush1.bf16.msra.mxu0 0
    %2193 = vmatprep.mubr.bf16.mxu0 0
    %2194 = vmatmul.mubr.bf16.gmra.mrb[0].mxu0 %v2159
    %v2195 = vpop.f32.mrb[0].mxu0
    %v2196 = vadd.f32 %v2111, %v2195
    %v2197 = vpop.f32.mrb[0].mxu0
    %v2198 = vadd.f32 %v2115, %v2197
    %v2199 = vpop.f32.mrb[0].mxu0
    %v2200 = vadd.f32 %v2111, %v2199
    %v2201 = vpop.f32.mrb[0].mxu0
    %v2202 = vadd.f32 %v2115, %v2201
    %2203 = vdwg.mxu0
    %v2206 = vrot.slane %v2200, 6
    %v2207 = vrot.slane %v2202, 6
    %v2210 = vsel %vm240, %v2196, %v2206
    %v2211 = vsel %vm241, %v2198, %v2207
    %v2220 = vunpack.c.l.b16 %v2098
    %v2221 = vunpack.c.h.b16 %v2098
    %v2222 = vunpack.c.l.b16 %v2099
    %v2223 = vunpack.c.h.b16 %v2099
    %v2224 = vunpack.c.l.b16 %v2100
    %v2225 = vunpack.c.h.b16 %v2100
    %v2226 = vunpack.c.l.b16 %v2101
    %v2227 = vunpack.c.h.b16 %v2101
    %v2228 = vunpack.c.l.b16 %v2102
    %v2229 = vunpack.c.h.b16 %v2102
    %v2230 = vunpack.c.l.b16 %v2103
    %v2231 = vunpack.c.h.b16 %v2103
    %v2232 = vunpack.c.l.b16 %v2104
    %v2233 = vunpack.c.h.b16 %v2104
    %v2234 = vunpack.c.l.b16 %v2105
    %v2235 = vunpack.c.h.b16 %v2105
    %v2236 = vpack.c.b16 %v2222, %v2220
    %v2237 = vpack.c.b16 %v2223, %v2221
    %v2238 = vpack.c.b16 %v2226, %v2224
    %v2239 = vpack.c.b16 %v2227, %v2225
    %v2240 = vpack.c.b16 %v2230, %v2228
    %v2241 = vpack.c.b16 %v2231, %v2229
    %v2242 = vpack.c.b16 %v2234, %v2232
    %v2243 = vpack.c.b16 %v2235, %v2233
    %2252 = vmatprep.subr.bf16.mxu0 %v2237
    %2253 = vmatpush1.bf16.msra.mxu0 %v2236
    %2254 = vmatprep.subr.bf16.mxu0 %v2239
    %2255 = vmatpush1.bf16.msra.mxu0 %v2238
    %2256 = vmatprep.subr.bf16.mxu0 %v2241
    %2257 = vmatpush1.bf16.msra.mxu0 %v2240
    %2258 = vmatprep.subr.bf16.mxu0 %v2243
    %2259 = vmatpush1.bf16.msra.mxu0 %v2242
    %2260 = vmatprep.subr.bf16.mxu0 0
    %2261 = vmatpush1.bf16.msra.mxu0 0
    %2262 = vmatprep.subr.bf16.mxu0 0
    %2263 = vmatpush1.bf16.msra.mxu0 0
    %2264 = vmatprep.subr.bf16.mxu0 0
    %2265 = vmatpush1.bf16.msra.mxu0 0
    %2266 = vmatprep.subr.bf16.mxu0 0
    %2267 = vmatpush1.bf16.msra.mxu0 0
    %2268 = vmatprep.subr.bf16.mxu0 0
    %2269 = vmatpush1.bf16.msra.mxu0 0
    %2270 = vmatprep.subr.bf16.mxu0 0
    %2271 = vmatpush1.bf16.msra.mxu0 0
    %2272 = vmatprep.subr.bf16.mxu0 0
    %2273 = vmatpush1.bf16.msra.mxu0 0
    %2274 = vmatprep.subr.bf16.mxu0 0
    %2275 = vmatpush1.bf16.msra.mxu0 0
    %2276 = vmatprep.subr.bf16.mxu0 0
    %2277 = vmatpush1.bf16.msra.mxu0 0
    %2278 = vmatprep.subr.bf16.mxu0 0
    %2279 = vmatpush1.bf16.msra.mxu0 0
    %2280 = vmatprep.subr.bf16.mxu0 0
    %2281 = vmatpush1.bf16.msra.mxu0 0
    %2282 = vmatprep.subr.bf16.mxu0 0
    %2283 = vmatpush1.bf16.msra.mxu0 0
    %2284 = vmatprep.mubr.bf16.mxu0 0
    %2285 = vmatmul.mubr.bf16.gmra.mrb[0].mxu0 %v292
    %v2286 = vpop.f32.mrb[0].mxu0
    %v2287 = vadd.f32 0.0, %v2286
    %v2288 = vpop.f32.mrb[0].mxu0
    %v2289 = vadd.f32 0.0, %v2288
    %v2290 = vpop.f32.mrb[0].mxu0
    %v2291 = vpop.f32.mrb[0].mxu0
    %2292 = vdwg.mxu0
    %v2293 = vadd.f32 %v2210, %v2287
    %v2294 = vadd.f32 %v2211, %v2289
    %v2295 = vxor.u32 %v2293, 2147483648
    %v2296 = vxor.u32 %v2294, 2147483648
    %v2297 = vmul.f32 %v2295, 1.442695
    %v2298 = vpow.pop %v2297
    %v2299 = vmul.f32 %v2296, 1.442695
    %v2300 = vpow.pop %v2299
    %v2301 = vadd.f32 %v2298, 1.0
    %v2302 = vadd.f32 %v2300, 1.0
    %v2303 = vrcp.pop %v2301
    %v2304 = vmul.f32 1.0, %v2303
    %v2305 = vrcp.pop %v2302
    %v2306 = vmul.f32 1.0, %v2305
    %v2307 = vtanh.pop %v2294
    %v2308 = vmul.f32 %v2304, 0.0
    %2310 = vrot.lane.b32.xlu0 %v2307, 64
    %v2311 = vpop.permute.xlu0 %2310
    %v2313 = vmul.f32 %v2304, %v2311
    %2315 = vrot.lane.b32.xlu0 %v2313, 64
    %v2316 = vpop.permute.xlu0 %2315
    %v2318 = vadd.f32 %v2308, %v2316
    %v2319 = vtanh.pop %v2318
    %2321 = vrot.lane.b32.xlu0 %v2319, 64
    %v2322 = vpop.permute.xlu0 %2321
    %v2324 = vmul.f32 %v2306, %v2322
    %2326 = vrot.lane.b32.xlu0 %v2318, 64
    %v2327 = vpop.permute.xlu0 %2326
    %v2329 = vsel %vm141, %v2327, 0.0
    %v2330 = vsel %vm141, %v2324, 0.0
    %v2331 = vrot.slane %v2200, 2
    %v2332 = vrot.slane %v2202, 2
    %v2335 = vsel %vm240, %v2196, %v2331
    %v2336 = vsel %vm241, %v2198, %v2332
    %v2337 = vpack.c.bf16 %v2330, %v2330
    %v2339 = vsel %vm290, %v2337, 0
    %2341 = vmatprep.subr.bf16.mxu0 %v2237
    %2342 = vmatpush1.bf16.msra.mxu0 %v2236
    %2343 = vmatprep.subr.bf16.mxu0 %v2239
    %2344 = vmatpush1.bf16.msra.mxu0 %v2238
    %2345 = vmatprep.subr.bf16.mxu0 %v2241
    %2346 = vmatpush1.bf16.msra.mxu0 %v2240
    %2347 = vmatprep.subr.bf16.mxu0 %v2243
    %2348 = vmatpush1.bf16.msra.mxu0 %v2242
    %2349 = vmatprep.subr.bf16.mxu0 0
    %2350 = vmatpush1.bf16.msra.mxu0 0
    %2351 = vmatprep.subr.bf16.mxu0 0
    %2352 = vmatpush1.bf16.msra.mxu0 0
    %2353 = vmatprep.subr.bf16.mxu0 0
    %2354 = vmatpush1.bf16.msra.mxu0 0
    %2355 = vmatprep.subr.bf16.mxu0 0
    %2356 = vmatpush1.bf16.msra.mxu0 0
    %2357 = vmatprep.subr.bf16.mxu0 0
    %2358 = vmatpush1.bf16.msra.mxu0 0
    %2359 = vmatprep.subr.bf16.mxu0 0
    %2360 = vmatpush1.bf16.msra.mxu0 0
    %2361 = vmatprep.subr.bf16.mxu0 0
    %2362 = vmatpush1.bf16.msra.mxu0 0
    %2363 = vmatprep.subr.bf16.mxu0 0
    %2364 = vmatpush1.bf16.msra.mxu0 0
    %2365 = vmatprep.subr.bf16.mxu0 0
    %2366 = vmatpush1.bf16.msra.mxu0 0
    %2367 = vmatprep.subr.bf16.mxu0 0
    %2368 = vmatpush1.bf16.msra.mxu0 0
    %2369 = vmatprep.subr.bf16.mxu0 0
    %2370 = vmatpush1.bf16.msra.mxu0 0
    %2371 = vmatprep.subr.bf16.mxu0 0
    %2372 = vmatpush1.bf16.msra.mxu0 0
    %2373 = vmatprep.mubr.bf16.mxu0 0
    %2374 = vmatmul.mubr.bf16.gmra.mrb[0].mxu0 %v2339
    %v2375 = vpop.f32.mrb[0].mxu0
    %v2376 = vadd.f32 0.0, %v2375
    %v2377 = vpop.f32.mrb[0].mxu0
    %v2378 = vadd.f32 0.0, %v2377
    %v2379 = vpop.f32.mrb[0].mxu0
    %v2380 = vpop.f32.mrb[0].mxu0
    %2381 = vdwg.mxu0
    %v2384 = vrot.slane %v2376, 6
    %v2385 = vrot.slane %v2378, 6
    %v2388 = vadd.f32 %v2335, %v2384
    %v2389 = vadd.f32 %v2336, %v2385
    %v2390 = vxor.u32 %v2388, 2147483648
    %v2391 = vxor.u32 %v2389, 2147483648
    %v2392 = vmul.f32 %v2390, 1.442695
    %v2393 = vpow.pop %v2392
    %v2394 = vmul.f32 %v2391, 1.442695
    %v2395 = vpow.pop %v2394
    %v2396 = vadd.f32 %v2393, 1.0
    %v2397 = vadd.f32 %v2395, 1.0
    %v2398 = vrcp.pop %v2396
    %v2399 = vmul.f32 1.0, %v2398
    %v2400 = vrcp.pop %v2397
    %v2401 = vmul.f32 1.0, %v2400
    %v2402 = vtanh.pop %v2389
    %v2404 = vrot.slane %v2329, 6
    %2405 = vrot.lane.b32.xlu0 %v2404, 64
    %v2406 = vpop.permute.xlu0 %2405
    %v2408 = vmul.f32 %v2399, %v2406
    %2410 = vrot.lane.b32.xlu0 %v2402, 64
    %v2411 = vpop.permute.xlu0 %2410
    %v2413 = vmul.f32 %v2399, %v2411
    %2415 = vrot.lane.b32.xlu0 %v2413, 64
    %v2416 = vpop.permute.xlu0 %2415
    %v2418 = vadd.f32 %v2408, %v2416
    %v2419 = vtanh.pop %v2418
    %2421 = vrot.lane.b32.xlu0 %v2419, 64
    %v2422 = vpop.permute.xlu0 %2421
    %v2424 = vmul.f32 %v2401, %v2422
    %v2426 = vrot.slane %v2418, 2
    %2427 = vrot.lane.b32.xlu0 %v2426, 64
    %v2428 = vpop.permute.xlu0 %2427
    %v2430 = vsel %vm143, %v2428, %v2329
    %v2432 = vrot.slane %v2424, 2
    %v2434 = vsel %vm143, %v2432, %v2330
    %v2435 = vpack.c.bf16 %v2434, %v2434
    %v2437 = vsel %vm290, %v2435, 0
    %2439 = vmatprep.subr.bf16.mxu0 %v2237
    %2440 = vmatpush1.bf16.msra.mxu0 %v2236
    %2441 = vmatprep.subr.bf16.mxu0 %v2239
    %2442 = vmatpush1.bf16.msra.mxu0 %v2238
    %2443 = vmatprep.subr.bf16.mxu0 %v2241
    %2444 = vmatpush1.bf16.msra.mxu0 %v2240
    %2445 = vmatprep.subr.bf16.mxu0 %v2243
    %2446 = vmatpush1.bf16.msra.mxu0 %v2242
    %2447 = vmatprep.subr.bf16.mxu0 0
    %2448 = vmatpush1.bf16.msra.mxu0 0
    %2449 = vmatprep.subr.bf16.mxu0 0
    %2450 = vmatpush1.bf16.msra.mxu0 0
    %2451 = vmatprep.subr.bf16.mxu0 0
    %2452 = vmatpush1.bf16.msra.mxu0 0
    %2453 = vmatprep.subr.bf16.mxu0 0
    %2454 = vmatpush1.bf16.msra.mxu0 0
    %2455 = vmatprep.subr.bf16.mxu0 0
    %2456 = vmatpush1.bf16.msra.mxu0 0
    %2457 = vmatprep.subr.bf16.mxu0 0
    %2458 = vmatpush1.bf16.msra.mxu0 0
    %2459 = vmatprep.subr.bf16.mxu0 0
    %2460 = vmatpush1.bf16.msra.mxu0 0
    %2461 = vmatprep.subr.bf16.mxu0 0
    %2462 = vmatpush1.bf16.msra.mxu0 0
    %2463 = vmatprep.subr.bf16.mxu0 0
    %2464 = vmatpush1.bf16.msra.mxu0 0
    %2465 = vmatprep.subr.bf16.mxu0 0
    %2466 = vmatpush1.bf16.msra.mxu0 0
    %2467 = vmatprep.subr.bf16.mxu0 0
    %2468 = vmatpush1.bf16.msra.mxu0 0
    %2469 = vmatprep.subr.bf16.mxu0 0
    %2470 = vmatpush1.bf16.msra.mxu0 0
    %2471 = vmatprep.mubr.bf16.mxu0 0
    %2472 = vmatmul.mubr.bf16.gmra.mrb[0].mxu0 %v2437
    %v2473 = vpop.f32.mrb[0].mxu0
    %v2474 = vadd.f32 0.0, %v2473
    %v2475 = vpop.f32.mrb[0].mxu0
    %v2476 = vadd.f32 0.0, %v2475
    %v2477 = vpop.f32.mrb[0].mxu0
    %v2478 = vpop.f32.mrb[0].mxu0
    %2479 = vdwg.mxu0
    %v2482 = vrot.slane %v2474, 4
    %v2483 = vrot.slane %v2476, 4
    %v2486 = vadd.f32 %v2210, %v2482
    %v2487 = vadd.f32 %v2211, %v2483
    %v2488 = vxor.u32 %v2486, 2147483648
    %v2489 = vxor.u32 %v2487, 2147483648
    %v2490 = vmul.f32 %v2488, 1.442695
    %v2491 = vpow.pop %v2490
    %v2492 = vmul.f32 %v2489, 1.442695
    %v2493 = vpow.pop %v2492
    %v2494 = vadd.f32 %v2491, 1.0
    %v2495 = vadd.f32 %v2493, 1.0
    %v2496 = vrcp.pop %v2494
    %v2497 = vmul.f32 1.0, %v2496
    %v2498 = vrcp.pop %v2495
    %v2499 = vmul.f32 1.0, %v2498
    %v2500 = vtanh.pop %v2487
    %v2502 = vrot.slane %v2430, 4
    %2503 = vrot.lane.b32.xlu0 %v2502, 64
    %v2504 = vpop.permute.xlu0 %2503
    %v2506 = vmul.f32 %v2497, %v2504
    %2508 = vrot.lane.b32.xlu0 %v2500, 64
    %v2509 = vpop.permute.xlu0 %2508
    %v2511 = vmul.f32 %v2497, %v2509
    %2513 = vrot.lane.b32.xlu0 %v2511, 64
    %v2514 = vpop.permute.xlu0 %2513
    %v2516 = vadd.f32 %v2506, %v2514
    %v2517 = vtanh.pop %v2516
    %2519 = vrot.lane.b32.xlu0 %v2517, 64
    %v2520 = vpop.permute.xlu0 %2519
    %v2522 = vmul.f32 %v2499, %v2520
    %v2524 = vrot.slane %v2516, 4
    %2525 = vrot.lane.b32.xlu0 %v2524, 64
    %v2526 = vpop.permute.xlu0 %2525
    %v2528 = vsel %vm145, %v2526, %v2430
    %v2530 = vrot.slane %v2522, 4
    %v2532 = vsel %vm145, %v2530, %v2434
    %v2533 = vpack.c.bf16 %v2532, %v2532
    %v2535 = vsel %vm290, %v2533, 0
    %2537 = vmatprep.subr.bf16.mxu0 %v2237
    %2538 = vmatpush1.bf16.msra.mxu0 %v2236
    %2539 = vmatprep.subr.bf16.mxu0 %v2239
    %2540 = vmatpush1.bf16.msra.mxu0 %v2238
    %2541 = vmatprep.subr.bf16.mxu0 %v2241
    %2542 = vmatpush1.bf16.msra.mxu0 %v2240
    %2543 = vmatprep.subr.bf16.mxu0 %v2243
    %2544 = vmatpush1.bf16.msra.mxu0 %v2242
    %2545 = vmatprep.subr.bf16.mxu0 0
    %2546 = vmatpush1.bf16.msra.mxu0 0
    %2547 = vmatprep.subr.bf16.mxu0 0
    %2548 = vmatpush1.bf16.msra.mxu0 0
    %2549 = vmatprep.subr.bf16.mxu0 0
    %2550 = vmatpush1.bf16.msra.mxu0 0
    %2551 = vmatprep.subr.bf16.mxu0 0
    %2552 = vmatpush1.bf16.msra.mxu0 0
    %2553 = vmatprep.subr.bf16.mxu0 0
    %2554 = vmatpush1.bf16.msra.mxu0 0
    %2555 = vmatprep.subr.bf16.mxu0 0
    %2556 = vmatpush1.bf16.msra.mxu0 0
    %2557 = vmatprep.subr.bf16.mxu0 0
    %2558 = vmatpush1.bf16.msra.mxu0 0
    %2559 = vmatprep.subr.bf16.mxu0 0
    %2560 = vmatpush1.bf16.msra.mxu0 0
    %2561 = vmatprep.subr.bf16.mxu0 0
    %2562 = vmatpush1.bf16.msra.mxu0 0
    %2563 = vmatprep.subr.bf16.mxu0 0
    %2564 = vmatpush1.bf16.msra.mxu0 0
    %2565 = vmatprep.subr.bf16.mxu0 0
    %2566 = vmatpush1.bf16.msra.mxu0 0
    %2567 = vmatprep.subr.bf16.mxu0 0
    %2568 = vmatpush1.bf16.msra.mxu0 0
    %2569 = vmatprep.mubr.bf16.mxu0 0
    %2570 = vmatmul.mubr.bf16.gmra.mrb[0].mxu0 %v2535
    %v2571 = vpop.f32.mrb[0].mxu0
    %v2572 = vadd.f32 0.0, %v2571
    %v2573 = vpop.f32.mrb[0].mxu0
    %v2574 = vadd.f32 0.0, %v2573
    %v2575 = vpop.f32.mrb[0].mxu0
    %v2576 = vpop.f32.mrb[0].mxu0
    %2577 = vdwg.mxu0
    %v2580 = vrot.slane %v2572, 2
    %v2581 = vrot.slane %v2574, 2
    %v2584 = vadd.f32 %v2335, %v2580
    %v2585 = vadd.f32 %v2336, %v2581
    %v2586 = vxor.u32 %v2584, 2147483648
    %v2587 = vxor.u32 %v2585, 2147483648
    %v2588 = vmul.f32 %v2586, 1.442695
    %v2589 = vpow.pop %v2588
    %v2590 = vmul.f32 %v2587, 1.442695
    %v2591 = vpow.pop %v2590
    %v2592 = vadd.f32 %v2589, 1.0
    %v2593 = vadd.f32 %v2591, 1.0
    %v2594 = vrcp.pop %v2592
    %v2595 = vmul.f32 1.0, %v2594
    %v2596 = vrcp.pop %v2593
    %v2597 = vmul.f32 1.0, %v2596
    %v2598 = vtanh.pop %v2585
    %v2600 = vrot.slane %v2528, 2
    %2601 = vrot.lane.b32.xlu0 %v2600, 64
    %v2602 = vpop.permute.xlu0 %2601
    %v2604 = vmul.f32 %v2595, %v2602
    %2606 = vrot.lane.b32.xlu0 %v2598, 64
    %v2607 = vpop.permute.xlu0 %2606
    %v2609 = vmul.f32 %v2595, %v2607
    %2611 = vrot.lane.b32.xlu0 %v2609, 64
    %v2612 = vpop.permute.xlu0 %2611
    %v2614 = vadd.f32 %v2604, %v2612
    %v2615 = vtanh.pop %v2614
    %2617 = vrot.lane.b32.xlu0 %v2615, 64
    %v2618 = vpop.permute.xlu0 %2617
    %v2620 = vmul.f32 %v2597, %v2618
    %v2622 = vrot.slane %v2614, 6
    %2623 = vrot.lane.b32.xlu0 %v2622, 64
    %v2624 = vpop.permute.xlu0 %2623
    %v2626 = vsel %vm147, %v2624, %v2528
    %v2628 = vrot.slane %v2620, 6
    %v2630 = vsel %vm147, %v2628, %v2532
    %v2633 = vrot.slane %v2196, 6
    %v2634 = vrot.slane %v2198, 6
    %v2637 = vsel %vm240, %v2200, %v2633
    %v2638 = vsel %vm241, %v2202, %v2634
    %v2639 = vpack.c.bf16 %v2630, %v2630
    %v2641 = vsel %vm290, %v2639, 0
    %2643 = vmatprep.subr.bf16.mxu0 %v2237
    %2644 = vmatpush1.bf16.msra.mxu0 %v2236
    %2645 = vmatprep.subr.bf16.mxu0 %v2239
    %2646 = vmatpush1.bf16.msra.mxu0 %v2238
    %2647 = vmatprep.subr.bf16.mxu0 %v2241
    %2648 = vmatpush1.bf16.msra.mxu0 %v2240
    %2649 = vmatprep.subr.bf16.mxu0 %v2243
    %2650 = vmatpush1.bf16.msra.mxu0 %v2242
    %2651 = vmatprep.subr.bf16.mxu0 0
    %2652 = vmatpush1.bf16.msra.mxu0 0
    %2653 = vmatprep.subr.bf16.mxu0 0
    %2654 = vmatpush1.bf16.msra.mxu0 0
    %2655 = vmatprep.subr.bf16.mxu0 0
    %2656 = vmatpush1.bf16.msra.mxu0 0
    %2657 = vmatprep.subr.bf16.mxu0 0
    %2658 = vmatpush1.bf16.msra.mxu0 0
    %2659 = vmatprep.subr.bf16.mxu0 0
    %2660 = vmatpush1.bf16.msra.mxu0 0
    %2661 = vmatprep.subr.bf16.mxu0 0
    %2662 = vmatpush1.bf16.msra.mxu0 0
    %2663 = vmatprep.subr.bf16.mxu0 0
    %2664 = vmatpush1.bf16.msra.mxu0 0
    %2665 = vmatprep.subr.bf16.mxu0 0
    %2666 = vmatpush1.bf16.msra.mxu0 0
    %2667 = vmatprep.subr.bf16.mxu0 0
    %2668 = vmatpush1.bf16.msra.mxu0 0
    %2669 = vmatprep.subr.bf16.mxu0 0
    %2670 = vmatpush1.bf16.msra.mxu0 0
    %2671 = vmatprep.subr.bf16.mxu0 0
    %2672 = vmatpush1.bf16.msra.mxu0 0
    %2673 = vmatprep.subr.bf16.mxu0 0
    %2674 = vmatpush1.bf16.msra.mxu0 0
    %2675 = vmatprep.mubr.bf16.mxu0 0
    %2676 = vmatmul.mubr.bf16.gmra.mrb[0].mxu0 %v2641
    %v2677 = vpop.f32.mrb[0].mxu0
    %v2678 = vadd.f32 0.0, %v2677
    %v2679 = vpop.f32.mrb[0].mxu0
    %v2680 = vadd.f32 0.0, %v2679
    %v2681 = vpop.f32.mrb[0].mxu0
    %v2682 = vpop.f32.mrb[0].mxu0
    %2683 = vdwg.mxu0
    %v2684 = vadd.f32 %v2637, %v2678
    %v2685 = vadd.f32 %v2638, %v2680
    %v2686 = vxor.u32 %v2684, 2147483648
    %v2687 = vxor.u32 %v2685, 2147483648
    %v2688 = vmul.f32 %v2686, 1.442695
    %v2689 = vpow.pop %v2688
    %v2690 = vmul.f32 %v2687, 1.442695
    %v2691 = vpow.pop %v2690
    %v2692 = vadd.f32 %v2689, 1.0
    %v2693 = vadd.f32 %v2691, 1.0
    %v2694 = vrcp.pop %v2692
    %v2695 = vmul.f32 1.0, %v2694
    %v2696 = vrcp.pop %v2693
    %v2697 = vmul.f32 1.0, %v2696
    %v2698 = vtanh.pop %v2685
    %2700 = vrot.lane.b32.xlu0 %v2626, 64
    %v2701 = vpop.permute.xlu0 %2700
    %v2703 = vmul.f32 %v2695, %v2701
    %2705 = vrot.lane.b32.xlu0 %v2698, 64
    %v2706 = vpop.permute.xlu0 %2705
    %v2708 = vmul.f32 %v2695, %v2706
    %2710 = vrot.lane.b32.xlu0 %v2708, 64
    %v2711 = vpop.permute.xlu0 %2710
    %v2713 = vadd.f32 %v2703, %v2711
    %v2714 = vtanh.pop %v2713
    %2716 = vrot.lane.b32.xlu0 %v2714, 64
    %v2717 = vpop.permute.xlu0 %2716
    %v2719 = vmul.f32 %v2697, %v2717
    %2721 = vrot.lane.b32.xlu0 %v2713, 64
    %v2722 = vpop.permute.xlu0 %2721
    %v2724 = vsel %vm149, %v2722, %v2626
    %v2725 = vsel %vm149, %v2719, %v2630
    %v2726 = vrot.slane %v2196, 2
    %v2727 = vrot.slane %v2198, 2
    %v2730 = vsel %vm240, %v2200, %v2726
    %v2731 = vsel %vm241, %v2202, %v2727
    %v2732 = vpack.c.bf16 %v2725, %v2725
    %v2734 = vsel %vm290, %v2732, 0
    %2736 = vmatprep.subr.bf16.mxu0 %v2237
    %2737 = vmatpush1.bf16.msra.mxu0 %v2236
    %2738 = vmatprep.subr.bf16.mxu0 %v2239
    %2739 = vmatpush1.bf16.msra.mxu0 %v2238
    %2740 = vmatprep.subr.bf16.mxu0 %v2241
    %2741 = vmatpush1.bf16.msra.mxu0 %v2240
    %2742 = vmatprep.subr.bf16.mxu0 %v2243
    %2743 = vmatpush1.bf16.msra.mxu0 %v2242
    %2744 = vmatprep.subr.bf16.mxu0 0
    %2745 = vmatpush1.bf16.msra.mxu0 0
    %2746 = vmatprep.subr.bf16.mxu0 0
    %2747 = vmatpush1.bf16.msra.mxu0 0
    %2748 = vmatprep.subr.bf16.mxu0 0
    %2749 = vmatpush1.bf16.msra.mxu0 0
    %2750 = vmatprep.subr.bf16.mxu0 0
    %2751 = vmatpush1.bf16.msra.mxu0 0
    %2752 = vmatprep.subr.bf16.mxu0 0
    %2753 = vmatpush1.bf16.msra.mxu0 0
    %2754 = vmatprep.subr.bf16.mxu0 0
    %2755 = vmatpush1.bf16.msra.mxu0 0
    %2756 = vmatprep.subr.bf16.mxu0 0
    %2757 = vmatpush1.bf16.msra.mxu0 0
    %2758 = vmatprep.subr.bf16.mxu0 0
    %2759 = vmatpush1.bf16.msra.mxu0 0
    %2760 = vmatprep.subr.bf16.mxu0 0
    %2761 = vmatpush1.bf16.msra.mxu0 0
    %2762 = vmatprep.subr.bf16.mxu0 0
    %2763 = vmatpush1.bf16.msra.mxu0 0
    %2764 = vmatprep.subr.bf16.mxu0 0
    %2765 = vmatpush1.bf16.msra.mxu0 0
    %2766 = vmatprep.subr.bf16.mxu0 0
    %2767 = vmatpush1.bf16.msra.mxu0 0
    %2768 = vmatprep.mubr.bf16.mxu0 0
    %2769 = vmatmul.mubr.bf16.gmra.mrb[0].mxu0 %v2734
    %v2770 = vpop.f32.mrb[0].mxu0
    %v2771 = vadd.f32 0.0, %v2770
    %v2772 = vpop.f32.mrb[0].mxu0
    %v2773 = vadd.f32 0.0, %v2772
    %v2774 = vpop.f32.mrb[0].mxu0
    %v2775 = vpop.f32.mrb[0].mxu0
    %2776 = vdwg.mxu0
    %v2779 = vrot.slane %v2771, 6
    %v2780 = vrot.slane %v2773, 6
    %v2783 = vadd.f32 %v2730, %v2779
    %v2784 = vadd.f32 %v2731, %v2780
    %v2785 = vxor.u32 %v2783, 2147483648
    %v2786 = vxor.u32 %v2784, 2147483648
    %v2787 = vmul.f32 %v2785, 1.442695
    %v2788 = vpow.pop %v2787
    %v2789 = vmul.f32 %v2786, 1.442695
    %v2790 = vpow.pop %v2789
    %v2791 = vadd.f32 %v2788, 1.0
    %v2792 = vadd.f32 %v2790, 1.0
    %v2793 = vrcp.pop %v2791
    %v2794 = vmul.f32 1.0, %v2793
    %v2795 = vrcp.pop %v2792
    %v2796 = vmul.f32 1.0, %v2795
    %v2797 = vtanh.pop %v2784
    %v2799 = vrot.slane %v2724, 6
    %2800 = vrot.lane.b32.xlu0 %v2799, 64
    %v2801 = vpop.permute.xlu0 %2800
    %v2803 = vmul.f32 %v2794, %v2801
    %2805 = vrot.lane.b32.xlu0 %v2797, 64
    %v2806 = vpop.permute.xlu0 %2805
    %v2808 = vmul.f32 %v2794, %v2806
    %2810 = vrot.lane.b32.xlu0 %v2808, 64
    %v2811 = vpop.permute.xlu0 %2810
    %v2813 = vadd.f32 %v2803, %v2811
    %v2814 = vtanh.pop %v2813
    %2816 = vrot.lane.b32.xlu0 %v2814, 64
    %v2817 = vpop.permute.xlu0 %2816
    %v2819 = vmul.f32 %v2796, %v2817
    %v2821 = vrot.slane %v2813, 2
    %2822 = vrot.lane.b32.xlu0 %v2821, 64
    %v2823 = vpop.permute.xlu0 %2822
    %v2825 = vsel %vm151, %v2823, %v2724
    %v2827 = vrot.slane %v2819, 2
    %v2829 = vsel %vm151, %v2827, %v2725
    %v2830 = vpack.c.bf16 %v2829, %v2829
    %v2832 = vsel %vm290, %v2830, 0
    %2834 = vmatprep.subr.bf16.mxu0 %v2237
    %2835 = vmatpush1.bf16.msra.mxu0 %v2236
    %2836 = vmatprep.subr.bf16.mxu0 %v2239
    %2837 = vmatpush1.bf16.msra.mxu0 %v2238
    %2838 = vmatprep.subr.bf16.mxu0 %v2241
    %2839 = vmatpush1.bf16.msra.mxu0 %v2240
    %2840 = vmatprep.subr.bf16.mxu0 %v2243
    %2841 = vmatpush1.bf16.msra.mxu0 %v2242
    %2842 = vmatprep.subr.bf16.mxu0 0
    %2843 = vmatpush1.bf16.msra.mxu0 0
    %2844 = vmatprep.subr.bf16.mxu0 0
    %2845 = vmatpush1.bf16.msra.mxu0 0
    %2846 = vmatprep.subr.bf16.mxu0 0
    %2847 = vmatpush1.bf16.msra.mxu0 0
    %2848 = vmatprep.subr.bf16.mxu0 0
    %2849 = vmatpush1.bf16.msra.mxu0 0
    %2850 = vmatprep.subr.bf16.mxu0 0
    %2851 = vmatpush1.bf16.msra.mxu0 0
    %2852 = vmatprep.subr.bf16.mxu0 0
    %2853 = vmatpush1.bf16.msra.mxu0 0
    %2854 = vmatprep.subr.bf16.mxu0 0
    %2855 = vmatpush1.bf16.msra.mxu0 0
    %2856 = vmatprep.subr.bf16.mxu0 0
    %2857 = vmatpush1.bf16.msra.mxu0 0
    %2858 = vmatprep.subr.bf16.mxu0 0
    %2859 = vmatpush1.bf16.msra.mxu0 0
    %2860 = vmatprep.subr.bf16.mxu0 0
    %2861 = vmatpush1.bf16.msra.mxu0 0
    %2862 = vmatprep.subr.bf16.mxu0 0
    %2863 = vmatpush1.bf16.msra.mxu0 0
    %2864 = vmatprep.subr.bf16.mxu0 0
    %2865 = vmatpush1.bf16.msra.mxu0 0
    %2866 = vmatprep.mubr.bf16.mxu0 0
    %2867 = vmatmul.mubr.bf16.gmra.mrb[0].mxu0 %v2832
    %v2868 = vpop.f32.mrb[0].mxu0
    %v2869 = vadd.f32 0.0, %v2868
    %v2870 = vpop.f32.mrb[0].mxu0
    %v2871 = vadd.f32 0.0, %v2870
    %v2872 = vpop.f32.mrb[0].mxu0
    %v2873 = vpop.f32.mrb[0].mxu0
    %2874 = vdwg.mxu0
    %v2877 = vrot.slane %v2869, 4
    %v2878 = vrot.slane %v2871, 4
    %v2881 = vadd.f32 %v2637, %v2877
    %v2882 = vadd.f32 %v2638, %v2878
    %v2883 = vxor.u32 %v2881, 2147483648
    %v2884 = vxor.u32 %v2882, 2147483648
    %v2885 = vmul.f32 %v2883, 1.442695
    %v2886 = vpow.pop %v2885
    %v2887 = vmul.f32 %v2884, 1.442695
    %v2888 = vpow.pop %v2887
    %v2889 = vadd.f32 %v2886, 1.0
    %v2890 = vadd.f32 %v2888, 1.0
    %v2891 = vrcp.pop %v2889
    %v2892 = vmul.f32 1.0, %v2891
    %v2893 = vrcp.pop %v2890
    %v2894 = vmul.f32 1.0, %v2893
    %v2895 = vtanh.pop %v2882
    %v2897 = vrot.slane %v2825, 4
    %2898 = vrot.lane.b32.xlu0 %v2897, 64
    %v2899 = vpop.permute.xlu0 %2898
    %v2901 = vmul.f32 %v2892, %v2899
    %2903 = vrot.lane.b32.xlu0 %v2895, 64
    %v2904 = vpop.permute.xlu0 %2903
    %v2906 = vmul.f32 %v2892, %v2904
    %2908 = vrot.lane.b32.xlu0 %v2906, 64
    %v2909 = vpop.permute.xlu0 %2908
    %v2911 = vadd.f32 %v2901, %v2909
    %v2912 = vtanh.pop %v2911
    %2914 = vrot.lane.b32.xlu0 %v2912, 64
    %v2915 = vpop.permute.xlu0 %2914
    %v2917 = vmul.f32 %v2894, %v2915
    %v2919 = vrot.slane %v2911, 4
    %2920 = vrot.lane.b32.xlu0 %v2919, 64
    %v2921 = vpop.permute.xlu0 %2920
    %v2923 = vsel %vm153, %v2921, %v2825
    %v2925 = vrot.slane %v2917, 4
    %v2927 = vsel %vm153, %v2925, %v2829
    %v2928 = vpack.c.bf16 %v2927, %v2927
    %v2930 = vsel %vm290, %v2928, 0
    %2932 = vmatprep.subr.bf16.mxu0 %v2237
    %2933 = vmatpush1.bf16.msra.mxu0 %v2236
    %2934 = vmatprep.subr.bf16.mxu0 %v2239
    %2935 = vmatpush1.bf16.msra.mxu0 %v2238
    %2936 = vmatprep.subr.bf16.mxu0 %v2241
    %2937 = vmatpush1.bf16.msra.mxu0 %v2240
    %2938 = vmatprep.subr.bf16.mxu0 %v2243
    %2939 = vmatpush1.bf16.msra.mxu0 %v2242
    %2940 = vmatprep.subr.bf16.mxu0 0
    %2941 = vmatpush1.bf16.msra.mxu0 0
    %2942 = vmatprep.subr.bf16.mxu0 0
    %2943 = vmatpush1.bf16.msra.mxu0 0
    %2944 = vmatprep.subr.bf16.mxu0 0
    %2945 = vmatpush1.bf16.msra.mxu0 0
    %2946 = vmatprep.subr.bf16.mxu0 0
    %2947 = vmatpush1.bf16.msra.mxu0 0
    %2948 = vmatprep.subr.bf16.mxu0 0
    %2949 = vmatpush1.bf16.msra.mxu0 0
    %2950 = vmatprep.subr.bf16.mxu0 0
    %2951 = vmatpush1.bf16.msra.mxu0 0
    %2952 = vmatprep.subr.bf16.mxu0 0
    %2953 = vmatpush1.bf16.msra.mxu0 0
    %2954 = vmatprep.subr.bf16.mxu0 0
    %2955 = vmatpush1.bf16.msra.mxu0 0
    %2956 = vmatprep.subr.bf16.mxu0 0
    %2957 = vmatpush1.bf16.msra.mxu0 0
    %2958 = vmatprep.subr.bf16.mxu0 0
    %2959 = vmatpush1.bf16.msra.mxu0 0
    %2960 = vmatprep.subr.bf16.mxu0 0
    %2961 = vmatpush1.bf16.msra.mxu0 0
    %2962 = vmatprep.subr.bf16.mxu0 0
    %2963 = vmatpush1.bf16.msra.mxu0 0
    %2964 = vmatprep.mubr.bf16.mxu0 0
    %2965 = vmatmul.mubr.bf16.gmra.mrb[0].mxu0 %v2930
    %v2966 = vpop.f32.mrb[0].mxu0
    %v2967 = vadd.f32 0.0, %v2966
    %v2968 = vpop.f32.mrb[0].mxu0
    %v2969 = vadd.f32 0.0, %v2968
    %v2970 = vpop.f32.mrb[0].mxu0
    %v2971 = vpop.f32.mrb[0].mxu0
    %2972 = vdwg.mxu0
    %v2975 = vrot.slane %v2967, 2
    %v2976 = vrot.slane %v2969, 2
    %v2979 = vadd.f32 %v2730, %v2975
    %v2980 = vadd.f32 %v2731, %v2976
    %v2981 = vxor.u32 %v2979, 2147483648
    %v2982 = vxor.u32 %v2980, 2147483648
    %v2983 = vmul.f32 %v2981, 1.442695
    %v2984 = vpow.pop %v2983
    %v2985 = vmul.f32 %v2982, 1.442695
    %v2986 = vpow.pop %v2985
    %v2987 = vadd.f32 %v2984, 1.0
    %v2988 = vadd.f32 %v2986, 1.0
    %v2989 = vrcp.pop %v2987
    %v2990 = vmul.f32 1.0, %v2989
    %v2991 = vrcp.pop %v2988
    %v2992 = vmul.f32 1.0, %v2991
    %v2993 = vtanh.pop %v2980
    %v2995 = vrot.slane %v2923, 2
    %2996 = vrot.lane.b32.xlu0 %v2995, 64
    %v2997 = vpop.permute.xlu0 %2996
    %v2999 = vmul.f32 %v2990, %v2997
    %3001 = vrot.lane.b32.xlu0 %v2993, 64
    %v3002 = vpop.permute.xlu0 %3001
    %v3004 = vmul.f32 %v2990, %v3002
    %3006 = vrot.lane.b32.xlu0 %v3004, 64
    %v3007 = vpop.permute.xlu0 %3006
    %v3009 = vadd.f32 %v2999, %v3007
    %v3010 = vtanh.pop %v3009
    %3012 = vrot.lane.b32.xlu0 %v3010, 64
    %v3013 = vpop.permute.xlu0 %3012
    %v3015 = vmul.f32 %v2992, %v3013
    %v3017 = vrot.slane %v3015, 6
    %v3019 = vsel %vm155, %v3017, %v2927
    %v3020 = vld [vmem:[%s11] sm:$0xff]
    %v3021 = vld [vmem:[%s11 + $0x8] sm:$0xff]
    %v3022 = vld [vmem:[%s11 + $0x10] sm:$0xff]
    %v3023 = vld [vmem:[%s11 + $0x18] sm:$0xff]
    %v3024 = vld [vmem:[%s11 + $0x20] sm:$0xff]
    %v3025 = vld [vmem:[%s11 + $0x28] sm:$0xff]
    %v3026 = vld [vmem:[%s11 + $0x30] sm:$0xff]
    %v3027 = vld [vmem:[%s11 + $0x38] sm:$0xff]
    %v3028 = vld [vmem:[%s12] sm:$0x1]
    %v3030 = vlaneseq
    %v3031 = vshrl.u32 %v3030, 7
    %v3032 = vsub.s32 0, %v3031
    %v3033 = vrot.slane %v3028, %v3032
    %v3036 = vsel %vm290, %v3019, 0
    %3038 = vmatprep.subr.mxu0 0.0
    %3039 = vmatpush1.msra.mxu0 %v3020
    %3040 = vmatprep.subr.mxu0 0.0
    %3041 = vmatpush1.msra.mxu0 %v3021
    %3042 = vmatprep.subr.mxu0 0.0
    %3043 = vmatpush1.msra.mxu0 %v3022
    %3044 = vmatprep.subr.mxu0 0.0
    %3045 = vmatpush1.msra.mxu0 %v3023
    %3046 = vmatprep.subr.mxu0 0.0
    %3047 = vmatpush1.msra.mxu0 %v3024
    %3048 = vmatprep.subr.mxu0 0.0
    %3049 = vmatpush1.msra.mxu0 %v3025
    %3050 = vmatprep.subr.mxu0 0.0
    %3051 = vmatpush1.msra.mxu0 %v3026
    %3052 = vmatprep.subr.mxu0 0.0
    %3053 = vmatpush1.msra.mxu0 %v3027
    %3054 = vmatprep.subr.mxu0 0.0
    %3055 = vmatpush1.msra.mxu0 0.0
    %3056 = vmatprep.subr.mxu0 0.0
    %3057 = vmatpush1.msra.mxu0 0.0
    %3058 = vmatprep.subr.mxu0 0.0
    %3059 = vmatpush1.msra.mxu0 0.0
    %3060 = vmatprep.subr.mxu0 0.0
    %3061 = vmatpush1.msra.mxu0 0.0
    %3062 = vmatprep.subr.mxu0 0.0
    %3063 = vmatpush1.msra.mxu0 0.0
    %3064 = vmatprep.subr.mxu0 0.0
    %3065 = vmatpush1.msra.mxu0 0.0
    %3066 = vmatprep.subr.mxu0 0.0
    %3067 = vmatpush1.msra.mxu0 0.0
    %3068 = vmatprep.subr.mxu0 0.0
    %3069 = vmatpush1.msra.mxu0 0.0
    %3070 = vmatprep.subr.mxu0 0.0
    %3071 = vmatpush1.msra.mxu0 0.0
    %3072 = vmatprep.subr.mxu0 0.0
    %3073 = vmatpush1.msra.mxu0 0.0
    %3074 = vmatprep.subr.mxu0 0.0
    %3075 = vmatpush1.msra.mxu0 0.0
    %3076 = vmatprep.subr.mxu0 0.0
    %3077 = vmatpush1.msra.mxu0 0.0
    %3078 = vmatprep.subr.mxu0 0.0
    %3079 = vmatpush1.msra.mxu0 0.0
    %3080 = vmatprep.subr.mxu0 0.0
    %3081 = vmatpush1.msra.mxu0 0.0
    %3082 = vmatprep.subr.mxu0 0.0
    %3083 = vmatpush1.msra.mxu0 0.0
    %3084 = vmatprep.subr.mxu0 0.0
    %3085 = vmatpush1.msra.mxu0 0.0
    %3086 = vmatprep.subr.mxu0 0.0
    %3087 = vmatpush1.msra.mxu0 0.0
    %3088 = vmatprep.subr.mxu0 0.0
    %3089 = vmatpush1.msra.mxu0 0.0
    %3090 = vmatprep.subr.mxu0 0.0
    %3091 = vmatpush1.msra.mxu0 0.0
    %3092 = vmatprep.subr.mxu0 0.0
    %3093 = vmatpush1.msra.mxu0 0.0
    %3094 = vmatprep.subr.mxu0 0.0
    %3095 = vmatpush1.msra.mxu0 0.0
    %3096 = vmatprep.subr.mxu0 0.0
    %3097 = vmatpush1.msra.mxu0 0.0
    %3098 = vmatprep.subr.mxu0 0.0
    %3099 = vmatpush1.msra.mxu0 0.0
    %3100 = vmatprep.subr.mxu0 0.0
    %3101 = vmatpush1.msra.mxu0 0.0
    %3102 = vmatprep.mubr.f32.mxu0 0.0
    %3103 = vmatmul.mubr.f32.gmra.mrb[0].mxu0 %v3036
    %v3104 = vpop.f32.mrb[0].mxu0
    %v3105 = vadd.f32 %v3033, %v3104
    %v3106 = vpop.f32.mrb[0].mxu0
    %3107 = vdwg.mxu0
    %v3108 = vmax.f32 %v3105, 0.0
    %v3109 = vld [vmem:[%s13] sm:$0xff]
    %v3110 = vld [vmem:[%s13 + $0x8] sm:$0xff]
    %v3111 = vld [vmem:[%s14] sm:$0x1]
    %v3113 = vlaneseq
    %v3114 = vshrl.u32 %v3113, 7
    %v3115 = vsub.s32 0, %v3114
    %v3116 = vrot.slane %v3111, %v3115
    %v3119 = vsel %vm191, %v3108, 0
    %3121 = vmatprep.subr.mxu0 0.0
    %3122 = vmatpush1.msra.mxu0 %v3109
    %3123 = vmatprep.subr.mxu0 0.0
    %3124 = vmatpush1.msra.mxu0 %v3110
    %3125 = vmatprep.subr.mxu0 0.0
    %3126 = vmatpush1.msra.mxu0 0.0
    %3127 = vmatprep.subr.mxu0 0.0
    %3128 = vmatpush1.msra.mxu0 0.0
    %3129 = vmatprep.subr.mxu0 0.0
    %3130 = vmatpush1.msra.mxu0 0.0
    %3131 = vmatprep.subr.mxu0 0.0
    %3132 = vmatpush1.msra.mxu0 0.0
    %3133 = vmatprep.subr.mxu0 0.0
    %3134 = vmatpush1.msra.mxu0 0.0
    %3135 = vmatprep.subr.mxu0 0.0
    %3136 = vmatpush1.msra.mxu0 0.0
    %3137 = vmatprep.subr.mxu0 0.0
    %3138 = vmatpush1.msra.mxu0 0.0
    %3139 = vmatprep.subr.mxu0 0.0
    %3140 = vmatpush1.msra.mxu0 0.0
    %3141 = vmatprep.subr.mxu0 0.0
    %3142 = vmatpush1.msra.mxu0 0.0
    %3143 = vmatprep.subr.mxu0 0.0
    %3144 = vmatpush1.msra.mxu0 0.0
    %3145 = vmatprep.subr.mxu0 0.0
    %3146 = vmatpush1.msra.mxu0 0.0
    %3147 = vmatprep.subr.mxu0 0.0
    %3148 = vmatpush1.msra.mxu0 0.0
    %3149 = vmatprep.subr.mxu0 0.0
    %3150 = vmatpush1.msra.mxu0 0.0
    %3151 = vmatprep.subr.mxu0 0.0
    %3152 = vmatpush1.msra.mxu0 0.0
    %3153 = vmatprep.subr.mxu0 0.0
    %3154 = vmatpush1.msra.mxu0 0.0
    %3155 = vmatprep.subr.mxu0 0.0
    %3156 = vmatpush1.msra.mxu0 0.0
    %3157 = vmatprep.subr.mxu0 0.0
    %3158 = vmatpush1.msra.mxu0 0.0
    %3159 = vmatprep.subr.mxu0 0.0
    %3160 = vmatpush1.msra.mxu0 0.0
    %3161 = vmatprep.subr.mxu0 0.0
    %3162 = vmatpush1.msra.mxu0 0.0
    %3163 = vmatprep.subr.mxu0 0.0
    %3164 = vmatpush1.msra.mxu0 0.0
    %3165 = vmatprep.subr.mxu0 0.0
    %3166 = vmatpush1.msra.mxu0 0.0
    %3167 = vmatprep.subr.mxu0 0.0
    %3168 = vmatpush1.msra.mxu0 0.0
    %3169 = vmatprep.subr.mxu0 0.0
    %3170 = vmatpush1.msra.mxu0 0.0
    %3171 = vmatprep.subr.mxu0 0.0
    %3172 = vmatpush1.msra.mxu0 0.0
    %3173 = vmatprep.subr.mxu0 0.0
    %3174 = vmatpush1.msra.mxu0 0.0
    %3175 = vmatprep.subr.mxu0 0.0
    %3176 = vmatpush1.msra.mxu0 0.0
    %3177 = vmatprep.subr.mxu0 0.0
    %3178 = vmatpush1.msra.mxu0 0.0
    %3179 = vmatprep.subr.mxu0 0.0
    %3180 = vmatpush1.msra.mxu0 0.0
    %3181 = vmatprep.subr.mxu0 0.0
    %3182 = vmatpush1.msra.mxu0 0.0
    %3183 = vmatprep.subr.mxu0 0.0
    %3184 = vmatpush1.msra.mxu0 0.0
    %3185 = vmatprep.mubr.f32.mxu0 0.0
    %3186 = vmatmul.mubr.f32.gmra.mrb[0].mxu0 %v3119
    %v3187 = vpop.f32.mrb[0].mxu0
    %v3188 = vadd.f32 %v3116, %v3187
    %v3189 = vpop.f32.mrb[0].mxu0
    %3190 = vdwg.mxu0
    %vm3191 = vcmask 33792
    %3192 = vst.msk [vmem:[#allocation13] sm:$0x3] %vm3191, %v3188
    // Predicated region
    $region86: #{lstm_model_forward.1} parent=1 // pred_check
      _
    $region87: #{lstm_model_forward.1} parent=1 // pred_check_branch
      %3194 = sbr.rel (0) target = $region89
    $region88: #{lstm_model_forward.1} parent=1 // pred_region
      %s3196 = ssub.s32 32, 32
      %3197 = vsyncadd [#allocation4], %s3196
      %s3199 = sshll.u32 [#allocation13], 4
      %s3200 = int_to_ptr.vmem [resolvable:$true] %s3199
      %3202 = dma.vmem_to_hbm [thread:$0]  %s3200, 32, %s15, [#allocation4]
    $region89: #{lstm_model_forward.1} parent=1 // pred_fallthru
      _
    // Predicated region
    $region90: #{lstm_model_forward.1} parent=1 // pred_check
      _
    $region91: #{lstm_model_forward.1} parent=1 // pred_check_branch
      %3204 = sbr.rel (0) target = $region93
    $region92: #{lstm_model_forward.1} parent=1 // pred_region
      %3205 = dma.done [#allocation4], 32
    $region93: #{lstm_model_forward.1} parent=1 // pred_fallthru
      _
    %3206 = vsyncpa [#allocation3], 1
    %3207 = vsyncpa [#allocation6], 1
    %3208 = vsyncpa [#allocation9], 1
    %3209 = vsyncpa [#allocation12], 1
    %3210 = vsyncpa [#allocation4], 1

</llo_original>
